<compile_context>
chip_gen: v7x
topology: tpu7x:2x2x1
jax: 0.10.0
libtpu: 0.0.40
codegen_flags: <defaults>
</compile_context>

<pallas_src>
import jax
import jax.numpy as jnp
import numpy as np
from jax.experimental import pallas as pl
from jax.experimental.pallas import tpu as pltpu

COMPUTE_DTYPE = jnp.bfloat16   # matmul operand dtype (accumulation stays fp32)
_EPS = 1e-5

# Fixed MNIST geometry (28x28x1 -> conv/pool -> 14x14x16 -> conv/pool -> 7x7x32 -> 10)
_HP1, _WC1 = 32, 32            # zero-padded layer-1 input rows / lanes (Wp * Cin)
_H1 = 28                       # layer-1 conv output rows (full H, before pooling)
_N1 = 14 * 16                  # layer-1 banded output lanes (W2 * Cout) = 224
_K1F = 5 * _WC1                # layer-1 ky-fused contraction depth = 160
_H2 = 14                       # layer-2 conv output rows (full H)
_WC2 = 14 * 16                 # layer-2 input lanes (unpadded W * Cin) = 224
_N2 = 7 * 32                   # layer-2 banded output lanes (W2 * Cout) = 224
_NFC = 128                     # fc output lanes (10 padded to 128)


# ------------------------------ fused kernel --------------------------------

def _mnist_fused_kernel(x_ref, w1_ref, b1_ref, w2_ref, b2_ref, wfc_ref, bfc_ref, o_ref):
    # x_ref:   (bn, 32, 32)        zero-padded 28x28x1 images           (bf16)
    # w1_ref:  (2, 160, 224)       banded conv1 weights (ky-fused), BN scale folded
    # b1_ref:  (1, 224)            folded BN1 bias (f32)
    # w2_ref:  (2, 5, 224, 224)    banded conv2 weights, BN scale folded
    # b2_ref:  (1, 224)            folded BN2 bias (f32)
    # wfc_ref: (7, 224, 128)       fc weight, rows in NHWC order, out padded 10->128
    # bfc_ref: (1, 128)            fc bias padded 10->128 (f32)
    # o_ref:   (bn, 1, 128)        logits (columns 10..127 are zero)
    bn = x_ref.shape[0]
    x = x_ref[...]                                              # (bn, 32, 32)

    # ---- layer 1: 5x5 SAME conv, all 5 ky taps fused into one K=160 matmul ----
    lhs1 = jnp.concatenate([x[:, ky:ky + _H1, :] for ky in range(5)], axis=-1)
    lhs1 = lhs1.reshape(bn * _H1, _K1F)                         # (bn*28, 160)
    c1a = jnp.dot(lhs1, w1_ref[0], preferred_element_type=jnp.float32)  # even cols
    c1b = jnp.dot(lhs1, w1_ref[1], preferred_element_type=jnp.float32)  # odd  cols
    conv1 = jnp.maximum(c1a, c1b)                               # column-phase pool
    conv1 = jnp.max(conv1.reshape(bn, _H2, 2, _N1), axis=2)     # row pool -> (bn,14,224)
    y1 = jnp.maximum(conv1 + b1_ref[...], 0.0)                  # BN bias + ReLU (once)
    y1 = y1.astype(COMPUTE_DTYPE)

    # ---- layer 2: W pad folded into the band; H pad = 2 in-register zero rows ----
    zrow = jnp.zeros((bn, 2, _WC2), COMPUTE_DTYPE)
    y1p = jnp.concatenate([zrow, y1, zrow], axis=1)             # (bn, 18, 224)
    acc_a = jnp.zeros((bn * _H2, _N2), jnp.float32)
    acc_b = jnp.zeros((bn * _H2, _N2), jnp.float32)
    for ky in range(5):                                         # K=224 per tap
        slab = y1p[:, ky:ky + _H2, :].reshape(bn * _H2, _WC2)   # (bn*14, 224)
        acc_a = acc_a + jnp.dot(slab, w2_ref[0, ky], preferred_element_type=jnp.float32)
        acc_b = acc_b + jnp.dot(slab, w2_ref[1, ky], preferred_element_type=jnp.float32)
    conv2 = jnp.maximum(acc_a, acc_b)                           # column-phase pool
    conv2 = jnp.max(conv2.reshape(bn, 7, 2, _N2), axis=2)       # row pool -> (bn,7,224)
    y2 = jnp.maximum(conv2 + b2_ref[...], 0.0).astype(COMPUTE_DTYPE)

    # ---- fc: batched over the block (M=bn), contraction split over 7 pooled rows ----
    acc = jnp.zeros((bn, _NFC), jnp.float32)
    for h in range(7):
        acc = acc + jnp.dot(y2[:, h, :], wfc_ref[h], preferred_element_type=jnp.float32)
    o_ref[...] = (acc + bfc_ref[...])[:, None, :]               # aligned (bn,1,128) store


# ------------------------------- wrappers ------------------------------------

def _block_plan(n):
    """Return (images per grid step, padded batch size).

    Up to 32 images per step.  Tiny batches use one fat step (no per-step
    overhead); larger batches keep >=2 balanced steps so v7x's two TensorCores
    split the grid; awkward sizes are padded instead of degrading to 1/step.
    """
    cap = 32
    if n <= 8:
        return n, n
    if n <= 2 * cap:
        bn = (n + 1) // 2
        return bn, 2 * bn
    steps = -(-n // cap)
    return cap, steps * cap


# Weights + per-block activations total a few MB, far below every generation's
# VMEM (including v7x's 64 MiB physical); 32 MiB scoped limit is safe everywhere.
_COMPILER_PARAMS = pltpu.CompilerParams(
    dimension_semantics=("parallel",),
    vmem_limit_bytes=32 * 1024 * 1024,
)


def mnist_forward(x_nchw, prep):
    N = x_nchw.shape[0]
    assert x_nchw.shape[1:] == (1, 28, 28), x_nchw.shape
    bn, n_pad = _block_plan(N)

    # NCHW -> zero-padded NHWC flattened to (Hp, Wp*Cin) per image (tiny glue).
    x = jnp.transpose(x_nchw, (0, 2, 3, 1)).astype(jnp.float32)       # (N,28,28,1)
    x = jnp.pad(x, ((0, n_pad - N), (2, 2), (2, 2), (0, 0)))          # (n_pad,32,32,1)
    x = x.reshape(n_pad, _HP1, _WC1).astype(COMPUTE_DTYPE)

    out = pl.pallas_call(
        _mnist_fused_kernel,
        out_shape=jax.ShapeDtypeStruct((n_pad, 1, _NFC), jnp.float32),
        grid=(n_pad // bn,),
        in_specs=[
            pl.BlockSpec((bn, _HP1, _WC1), lambda n: (n, 0, 0)),
            pl.BlockSpec((2, _K1F, _N1), lambda n: (0, 0, 0)),
            pl.BlockSpec((1, _N1), lambda n: (0, 0)),
            pl.BlockSpec((2, 5, _WC2, _N2), lambda n: (0, 0, 0, 0)),
            pl.BlockSpec((1, _N2), lambda n: (0, 0)),
            pl.BlockSpec((7, _WC2, _NFC), lambda n: (0, 0, 0)),
            pl.BlockSpec((1, _NFC), lambda n: (0, 0)),
        ],
        out_specs=pl.BlockSpec((bn, 1, _NFC), lambda n: (n, 0, 0)),
        compiler_params=_COMPILER_PARAMS,
    )(x, prep["w1"], prep["b1"], prep["w2"], prep["b2"], prep["wfc"], prep["bfc"])

    return out[:N].reshape(N, _NFC)[:, :10]


# ----------------------- parameters / host-side prep -------------------------

def init_params(key):
    ks = jax.random.split(key, 14)
    p = {}
    p["conv1_w"] = 0.1 * jax.random.normal(ks[0], (16, 1, 5, 5), jnp.float32)
    p["conv1_b"] = 0.1 * jax.random.normal(ks[1], (16,), jnp.float32)
    p["bn1_gamma"] = 1.0 + 0.1 * jax.random.normal(ks[2], (16,), jnp.float32)
    p["bn1_beta"] = 0.1 * jax.random.normal(ks[3], (16,), jnp.float32)
    p["bn1_mean"] = 0.1 * jax.random.normal(ks[4], (16,), jnp.float32)
    p["bn1_var"] = jax.random.uniform(ks[5], (16,), jnp.float32, 0.5, 1.5)
    p["conv2_w"] = 0.05 * jax.random.normal(ks[6], (32, 16, 5, 5), jnp.float32)
    p["conv2_b"] = 0.1 * jax.random.normal(ks[7], (32,), jnp.float32)
    p["bn2_gamma"] = 1.0 + 0.1 * jax.random.normal(ks[8], (32,), jnp.float32)
    p["bn2_beta"] = 0.1 * jax.random.normal(ks[9], (32,), jnp.float32)
    p["bn2_mean"] = 0.1 * jax.random.normal(ks[10], (32,), jnp.float32)
    p["bn2_var"] = jax.random.uniform(ks[11], (32,), jnp.float32, 0.5, 1.5)
    p["fc_w"] = 0.05 * jax.random.normal(ks[12], (10, 7 * 7 * 32), jnp.float32)
    p["fc_b"] = 0.1 * jax.random.normal(ks[13], (10,), jnp.float32)
    return p


def _fold_bn(conv_b, gamma, beta, mean, var):
    gamma, beta, mean, var, conv_b = (np.asarray(t, np.float32)
                                      for t in (gamma, beta, mean, var, conv_b))
    scale = gamma / np.sqrt(var + _EPS)
    bias = beta + scale * (conv_b - mean)
    return scale, bias


def _band_conv1_fused(conv_w, scale):
    """Layer-1 banded weights with the 5 ky taps fused along K (shape (2,160,224)).

    B[dx, ky*32 + wq, w2*16 + co] maps the ky-concatenated padded-image row slab
    to scale[co] * conv1_out[., 2*w2 + dx, co].
    """
    w = np.asarray(conv_w, np.float32)              # (Cout=16, Cin=1, 5, 5) OIHW
    Cout, Cin, K, _ = w.shape
    assert Cin == 1
    Wp, W2 = _WC1, 14
    B = np.zeros((2, K * Wp, W2 * Cout), np.float32)
    for dx in range(2):
        for ky in range(K):
            for kx in range(K):
                tap = w[:, 0, ky, kx] * scale       # (Cout,)
                for w2 in range(W2):
                    wq = 2 * w2 + dx + kx           # padded input column (pad=2)
                    B[dx, ky * Wp + wq, w2 * Cout:(w2 + 1) * Cout] = tap
    return B


def _band_conv2(conv_w, scale):
    """Layer-2 banded weights (shape (2,5,224,224)); the SAME-conv W padding is
    folded in by omitting out-of-range input columns, so the kernel feeds the
    *unpadded* 224-lane layer-1 output directly."""
    w = np.asarray(conv_w, np.float32)              # (Cout=32, Cin=16, 5, 5) OIHW
    Cout, Cin, K, _ = w.shape
    Win, W2 = 14, 7
    B = np.zeros((2, K, Win * Cin, W2 * Cout), np.float32)
    for dx in range(2):
        for ky in range(K):
            for kx in range(K):
                tap = (w[:, :, ky, kx] * scale[:, None]).T       # (Cin, Cout)
                for w2 in range(W2):
                    win = 2 * w2 + dx + kx - 2                   # data column (pad=2)
                    if 0 <= win < Win:
                        B[dx, ky, win * Cin:(win + 1) * Cin,
                          w2 * Cout:(w2 + 1) * Cout] = tap
    return B


def prepare_params(p):
    """One-time host-side weight prep (BN fold, banding, FC permute/pad, bf16)."""
    s1, t1 = _fold_bn(p["conv1_b"], p["bn1_gamma"], p["bn1_beta"],
                      p["bn1_mean"], p["bn1_var"])
    s2, t2 = _fold_bn(p["conv2_b"], p["bn2_gamma"], p["bn2_beta"],
                      p["bn2_mean"], p["bn2_var"])
    w1 = _band_conv1_fused(p["conv1_w"], s1)                     # (2, 160, 224)
    w2 = _band_conv2(p["conv2_w"], s2)                           # (2, 5, 224, 224)
    # fc: permute input rows from PyTorch's NCHW flatten order to the kernel's
    # (h, w*32 + c) order and pad the 10 outputs to 128 lanes.
    fcw = np.asarray(p["fc_w"], np.float32).reshape(10, 32, 7, 7)
    fcw = fcw.transpose(2, 3, 1, 0).reshape(7, 7 * 32, 10)       # (h, w*32+c, o)
    wfc = np.zeros((7, _N2, _NFC), np.float32)
    wfc[:, :, :10] = fcw
    bfc = np.zeros((1, _NFC), np.float32)
    bfc[0, :10] = np.asarray(p["fc_b"], np.float32)
    return {
        "w1": jnp.asarray(w1, COMPUTE_DTYPE),
        "b1": jnp.asarray(np.tile(t1, 14).reshape(1, _N1), jnp.float32),
        "w2": jnp.asarray(w2, COMPUTE_DTYPE),
        "b2": jnp.asarray(np.tile(t2, 7).reshape(1, _N2), jnp.float32),
        "wfc": jnp.asarray(wfc, COMPUTE_DTYPE),
        "bfc": jnp.asarray(bfc, jnp.float32),
    }


# ------------------------------- reference -----------------------------------

def mnist_reference(x_nchw, p):
    def conv(x, w, b):
        y = jax.lax.conv_general_dilated(
            x, w, window_strides=(1, 1), padding=((2, 2), (2, 2)),
            dimension_numbers=("NCHW", "OIHW", "NCHW"))
        return y + b.reshape(1, -1, 1, 1)

    def bn(x, g, be, m, v):
        g, be, m, v = (t.reshape(1, -1, 1, 1) for t in (g, be, m, v))
        return (x - m) / jnp.sqrt(v + _EPS) * g + be

    def pool(x):
        N, C, H, W = x.shape
        return jnp.max(x.reshape(N, C, H // 2, 2, W // 2, 2), axis=(3, 5))

    y = pool(jax.nn.relu(bn(conv(x_nchw, p["conv1_w"], p["conv1_b"]),
                            p["bn1_gamma"], p["bn1_beta"],
                            p["bn1_mean"], p["bn1_var"])))
    y = pool(jax.nn.relu(bn(conv(y, p["conv2_w"], p["conv2_b"]),
                            p["bn2_gamma"], p["bn2_beta"],
                            p["bn2_mean"], p["bn2_var"])))
    flat = y.reshape(y.shape[0], -1)
    return flat @ p["fc_w"].T + p["fc_b"]


# --------------------------------- main ---------------------------------------

if __name__ == "__main__":
    key = jax.random.PRNGKey(0)
    k_param, k_x = jax.random.split(key)
    params = init_params(k_param)
    prep = prepare_params(params)

    # MNIST-shaped input (batch=2, 1 channel, 28x28); 28 is required by fc(7*7*32).
    x = jax.random.normal(k_x, (2, 1, 28, 28), jnp.float32)

    fwd = jax.jit(mnist_forward)
    out = jax.block_until_ready(fwd(x, prep))
    assert out.shape == (2, 10), out.shape

    ref = jax.block_until_ready(mnist_reference(x, params))
    max_err = float(jnp.max(jnp.abs(out - ref)))
    # bf16 matmul operands (f32 accumulation, f32 inter-layer activation) give
    # ~1e-2-level absolute error vs the f32 reference.
    tol = 1e-3 if COMPUTE_DTYPE == jnp.float32 else 1.5e-1
    assert max_err < tol, f"mismatch vs reference: {max_err}"

    print("KERNEL_OK")
</pallas_src>

<mosaic_0001>
module attributes {stable_mosaic.version = 11 : i64} {
  func.func @_mnist_fused_kernel(%arg0: i32, %arg1: memref<2x32x32xbf16, #tpu.memory_space<vmem>>, %arg2: memref<2x160x224xbf16, #tpu.memory_space<vmem>>, %arg3: memref<1x224xf32, #tpu.memory_space<vmem>>, %arg4: memref<2x5x224x224xbf16, #tpu.memory_space<vmem>>, %arg5: memref<1x224xf32, #tpu.memory_space<vmem>>, %arg6: memref<7x224x128xbf16, #tpu.memory_space<vmem>>, %arg7: memref<1x128xf32, #tpu.memory_space<vmem>>, %arg8: memref<2x1x128xf32, #tpu.memory_space<vmem>>) attributes {dimension_semantics = [#tpu.dimension_semantics<parallel>], iteration_bounds = array<i64: 1>, scalar_prefetch = 0 : i64, scratch_operands = 0 : i64, tpu.core_type = #tpu.core_type<tc>, window_params = [{transform_indices = @transform_0, window_bounds = array<i64: 2, 32, 32>}, {pipeline_mode = #tpu.pipeline_mode<synchronous>, transform_indices = @transform_1, window_bounds = array<i64: 2, 160, 224>}, {pipeline_mode = #tpu.pipeline_mode<synchronous>, transform_indices = @transform_2, window_bounds = array<i64: 1, 224>}, {pipeline_mode = #tpu.pipeline_mode<synchronous>, transform_indices = @transform_3, window_bounds = array<i64: 2, 5, 224, 224>}, {pipeline_mode = #tpu.pipeline_mode<synchronous>, transform_indices = @transform_4, window_bounds = array<i64: 1, 224>}, {pipeline_mode = #tpu.pipeline_mode<synchronous>, transform_indices = @transform_5, window_bounds = array<i64: 7, 224, 128>}, {pipeline_mode = #tpu.pipeline_mode<synchronous>, transform_indices = @transform_6, window_bounds = array<i64: 1, 128>}, {transform_indices = @transform_7, window_bounds = array<i64: 2, 1, 128>}]} {
    %c0 = arith.constant 0 : index
    %c0_0 = arith.constant 0 : index
    %c0_1 = arith.constant 0 : index
    %0 = vector.load %arg1[%c0, %c0_0, %c0_1] : memref<2x32x32xbf16, #tpu.memory_space<vmem>>, vector<2x32x32xbf16>
    %1 = vector.extract_strided_slice %0 {offsets = [0, 0, 0], sizes = [2, 28, 32], strides = [1, 1, 1]} : vector<2x32x32xbf16> to vector<2x28x32xbf16>
    %2 = vector.extract_strided_slice %0 {offsets = [0, 1, 0], sizes = [2, 28, 32], strides = [1, 1, 1]} : vector<2x32x32xbf16> to vector<2x28x32xbf16>
    %3 = vector.extract_strided_slice %0 {offsets = [0, 2, 0], sizes = [2, 28, 32], strides = [1, 1, 1]} : vector<2x32x32xbf16> to vector<2x28x32xbf16>
    %4 = vector.extract_strided_slice %0 {offsets = [0, 3, 0], sizes = [2, 28, 32], strides = [1, 1, 1]} : vector<2x32x32xbf16> to vector<2x28x32xbf16>
    %5 = vector.extract_strided_slice %0 {offsets = [0, 4, 0], sizes = [2, 28, 32], strides = [1, 1, 1]} : vector<2x32x32xbf16> to vector<2x28x32xbf16>
    %6 = tpu.concatenate %1, %2, %3, %4, %5 in 2 : vector<2x28x32xbf16>, vector<2x28x32xbf16>, vector<2x28x32xbf16>, vector<2x28x32xbf16>, vector<2x28x32xbf16> -> vector<2x28x160xbf16>
    %7 = vector.shape_cast %6 : vector<2x28x160xbf16> to vector<56x160xbf16>
    %c0_2 = arith.constant 0 : index
    %c0_3 = arith.constant 0 : index
    %c0_4 = arith.constant 0 : index
    %8 = vector.load %arg2[%c0_2, %c0_3, %c0_4] : memref<2x160x224xbf16, #tpu.memory_space<vmem>>, vector<1x160x224xbf16>
    %9 = vector.shape_cast %8 : vector<1x160x224xbf16> to vector<160x224xbf16>
    %cst = arith.constant dense<0.000000e+00> : vector<56x224xf32>
    %10 = tpu.matmul %7, %9, %cst {dimension_numbers = #tpu.dot_dimension_numbers<[1], [0], [0], [1], [0, 0, 1, 1], [], []>} : vector<56x160xbf16>, vector<160x224xbf16>, vector<56x224xf32> -> vector<56x224xf32>
    %c1 = arith.constant 1 : index
    %c0_5 = arith.constant 0 : index
    %c0_6 = arith.constant 0 : index
    %11 = vector.load %arg2[%c1, %c0_5, %c0_6] : memref<2x160x224xbf16, #tpu.memory_space<vmem>>, vector<1x160x224xbf16>
    %12 = vector.shape_cast %11 : vector<1x160x224xbf16> to vector<160x224xbf16>
    %cst_7 = arith.constant dense<0.000000e+00> : vector<56x224xf32>
    %13 = tpu.matmul %7, %12, %cst_7 {dimension_numbers = #tpu.dot_dimension_numbers<[1], [0], [0], [1], [0, 0, 1, 1], [], []>} : vector<56x160xbf16>, vector<160x224xbf16>, vector<56x224xf32> -> vector<56x224xf32>
    %14 = arith.maximumf %10, %13 : vector<56x224xf32>
    %15 = vector.shape_cast %14 : vector<56x224xf32> to vector<2x14x2x224xf32>
    %cst_8 = arith.constant dense<0xFF800000> : vector<2x14x224xf32>
    %16 = vector.multi_reduction <maximumf>, %15, %cst_8 [2] : vector<2x14x2x224xf32> to vector<2x14x224xf32>
    %c0_9 = arith.constant 0 : index
    %c0_10 = arith.constant 0 : index
    %17 = vector.load %arg3[%c0_9, %c0_10] : memref<1x224xf32, #tpu.memory_space<vmem>>, vector<1x224xf32>
    %18 = vector.shape_cast %17 : vector<1x224xf32> to vector<1x1x224xf32>
    %19 = vector.broadcast %18 : vector<1x1x224xf32> to vector<2x14x224xf32>
    %20 = arith.addf %16, %19 : vector<2x14x224xf32>
    %cst_11 = arith.constant 0.000000e+00 : f32
    %21 = vector.broadcast %cst_11 : f32 to vector<2x14x224xf32>
    %22 = arith.maximumf %20, %21 : vector<2x14x224xf32>
    %23 = arith.truncf %22 : vector<2x14x224xf32> to vector<2x14x224xbf16>
    %cst_12 = arith.constant 0.000000e+00 : bf16
    %24 = vector.broadcast %cst_12 : bf16 to vector<2x2x224xbf16>
    %25 = tpu.concatenate %24, %23, %24 in 1 : vector<2x2x224xbf16>, vector<2x14x224xbf16>, vector<2x2x224xbf16> -> vector<2x18x224xbf16>
    %cst_13 = arith.constant 0.000000e+00 : f32
    %26 = vector.broadcast %cst_13 : f32 to vector<28x224xf32>
    %cst_14 = arith.constant 0.000000e+00 : f32
    %27 = vector.broadcast %cst_14 : f32 to vector<28x224xf32>
    %28 = vector.extract_strided_slice %25 {offsets = [0, 0, 0], sizes = [2, 14, 224], strides = [1, 1, 1]} : vector<2x18x224xbf16> to vector<2x14x224xbf16>
    %29 = vector.shape_cast %28 : vector<2x14x224xbf16> to vector<28x224xbf16>
    %c0_15 = arith.constant 0 : index
    %c0_16 = arith.constant 0 : index
    %c0_17 = arith.constant 0 : index
    %c0_18 = arith.constant 0 : index
    %30 = vector.load %arg4[%c0_15, %c0_16, %c0_17, %c0_18] : memref<2x5x224x224xbf16, #tpu.memory_space<vmem>>, vector<1x1x224x224xbf16>
    %31 = vector.shape_cast %30 : vector<1x1x224x224xbf16> to vector<224x224xbf16>
    %cst_19 = arith.constant dense<0.000000e+00> : vector<28x224xf32>
    %32 = tpu.matmul %29, %31, %cst_19 {dimension_numbers = #tpu.dot_dimension_numbers<[1], [0], [0], [1], [0, 0, 1, 1], [], []>} : vector<28x224xbf16>, vector<224x224xbf16>, vector<28x224xf32> -> vector<28x224xf32>
    %33 = arith.addf %26, %32 : vector<28x224xf32>
    %c1_20 = arith.constant 1 : index
    %c0_21 = arith.constant 0 : index
    %c0_22 = arith.constant 0 : index
    %c0_23 = arith.constant 0 : index
    %34 = vector.load %arg4[%c1_20, %c0_21, %c0_22, %c0_23] : memref<2x5x224x224xbf16, #tpu.memory_space<vmem>>, vector<1x1x224x224xbf16>
    %35 = vector.shape_cast %34 : vector<1x1x224x224xbf16> to vector<224x224xbf16>
    %cst_24 = arith.constant dense<0.000000e+00> : vector<28x224xf32>
    %36 = tpu.matmul %29, %35, %cst_24 {dimension_numbers = #tpu.dot_dimension_numbers<[1], [0], [0], [1], [0, 0, 1, 1], [], []>} : vector<28x224xbf16>, vector<224x224xbf16>, vector<28x224xf32> -> vector<28x224xf32>
    %37 = arith.addf %27, %36 : vector<28x224xf32>
    %38 = vector.extract_strided_slice %25 {offsets = [0, 1, 0], sizes = [2, 14, 224], strides = [1, 1, 1]} : vector<2x18x224xbf16> to vector<2x14x224xbf16>
    %39 = vector.shape_cast %38 : vector<2x14x224xbf16> to vector<28x224xbf16>
    %c0_25 = arith.constant 0 : index
    %c1_26 = arith.constant 1 : index
    %c0_27 = arith.constant 0 : index
    %c0_28 = arith.constant 0 : index
    %40 = vector.load %arg4[%c0_25, %c1_26, %c0_27, %c0_28] : memref<2x5x224x224xbf16, #tpu.memory_space<vmem>>, vector<1x1x224x224xbf16>
    %41 = vector.shape_cast %40 : vector<1x1x224x224xbf16> to vector<224x224xbf16>
    %cst_29 = arith.constant dense<0.000000e+00> : vector<28x224xf32>
    %42 = tpu.matmul %39, %41, %cst_29 {dimension_numbers = #tpu.dot_dimension_numbers<[1], [0], [0], [1], [0, 0, 1, 1], [], []>} : vector<28x224xbf16>, vector<224x224xbf16>, vector<28x224xf32> -> vector<28x224xf32>
    %43 = arith.addf %33, %42 : vector<28x224xf32>
    %c1_30 = arith.constant 1 : index
    %c1_31 = arith.constant 1 : index
    %c0_32 = arith.constant 0 : index
    %c0_33 = arith.constant 0 : index
    %44 = vector.load %arg4[%c1_30, %c1_31, %c0_32, %c0_33] : memref<2x5x224x224xbf16, #tpu.memory_space<vmem>>, vector<1x1x224x224xbf16>
    %45 = vector.shape_cast %44 : vector<1x1x224x224xbf16> to vector<224x224xbf16>
    %cst_34 = arith.constant dense<0.000000e+00> : vector<28x224xf32>
    %46 = tpu.matmul %39, %45, %cst_34 {dimension_numbers = #tpu.dot_dimension_numbers<[1], [0], [0], [1], [0, 0, 1, 1], [], []>} : vector<28x224xbf16>, vector<224x224xbf16>, vector<28x224xf32> -> vector<28x224xf32>
    %47 = arith.addf %37, %46 : vector<28x224xf32>
    %48 = vector.extract_strided_slice %25 {offsets = [0, 2, 0], sizes = [2, 14, 224], strides = [1, 1, 1]} : vector<2x18x224xbf16> to vector<2x14x224xbf16>
    %49 = vector.shape_cast %48 : vector<2x14x224xbf16> to vector<28x224xbf16>
    %c0_35 = arith.constant 0 : index
    %c2 = arith.constant 2 : index
    %c0_36 = arith.constant 0 : index
    %c0_37 = arith.constant 0 : index
    %50 = vector.load %arg4[%c0_35, %c2, %c0_36, %c0_37] : memref<2x5x224x224xbf16, #tpu.memory_space<vmem>>, vector<1x1x224x224xbf16>
    %51 = vector.shape_cast %50 : vector<1x1x224x224xbf16> to vector<224x224xbf16>
    %cst_38 = arith.constant dense<0.000000e+00> : vector<28x224xf32>
    %52 = tpu.matmul %49, %51, %cst_38 {dimension_numbers = #tpu.dot_dimension_numbers<[1], [0], [0], [1], [0, 0, 1, 1], [], []>} : vector<28x224xbf16>, vector<224x224xbf16>, vector<28x224xf32> -> vector<28x224xf32>
    %53 = arith.addf %43, %52 : vector<28x224xf32>
    %c1_39 = arith.constant 1 : index
    %c2_40 = arith.constant 2 : index
    %c0_41 = arith.constant 0 : index
    %c0_42 = arith.constant 0 : index
    %54 = vector.load %arg4[%c1_39, %c2_40, %c0_41, %c0_42] : memref<2x5x224x224xbf16, #tpu.memory_space<vmem>>, vector<1x1x224x224xbf16>
    %55 = vector.shape_cast %54 : vector<1x1x224x224xbf16> to vector<224x224xbf16>
    %cst_43 = arith.constant dense<0.000000e+00> : vector<28x224xf32>
    %56 = tpu.matmul %49, %55, %cst_43 {dimension_numbers = #tpu.dot_dimension_numbers<[1], [0], [0], [1], [0, 0, 1, 1], [], []>} : vector<28x224xbf16>, vector<224x224xbf16>, vector<28x224xf32> -> vector<28x224xf32>
    %57 = arith.addf %47, %56 : vector<28x224xf32>
    %58 = vector.extract_strided_slice %25 {offsets = [0, 3, 0], sizes = [2, 14, 224], strides = [1, 1, 1]} : vector<2x18x224xbf16> to vector<2x14x224xbf16>
    %59 = vector.shape_cast %58 : vector<2x14x224xbf16> to vector<28x224xbf16>
    %c0_44 = arith.constant 0 : index
    %c3 = arith.constant 3 : index
    %c0_45 = arith.constant 0 : index
    %c0_46 = arith.constant 0 : index
    %60 = vector.load %arg4[%c0_44, %c3, %c0_45, %c0_46] : memref<2x5x224x224xbf16, #tpu.memory_space<vmem>>, vector<1x1x224x224xbf16>
    %61 = vector.shape_cast %60 : vector<1x1x224x224xbf16> to vector<224x224xbf16>
    %cst_47 = arith.constant dense<0.000000e+00> : vector<28x224xf32>
    %62 = tpu.matmul %59, %61, %cst_47 {dimension_numbers = #tpu.dot_dimension_numbers<[1], [0], [0], [1], [0, 0, 1, 1], [], []>} : vector<28x224xbf16>, vector<224x224xbf16>, vector<28x224xf32> -> vector<28x224xf32>
    %63 = arith.addf %53, %62 : vector<28x224xf32>
    %c1_48 = arith.constant 1 : index
    %c3_49 = arith.constant 3 : index
    %c0_50 = arith.constant 0 : index
    %c0_51 = arith.constant 0 : index
    %64 = vector.load %arg4[%c1_48, %c3_49, %c0_50, %c0_51] : memref<2x5x224x224xbf16, #tpu.memory_space<vmem>>, vector<1x1x224x224xbf16>
    %65 = vector.shape_cast %64 : vector<1x1x224x224xbf16> to vector<224x224xbf16>
    %cst_52 = arith.constant dense<0.000000e+00> : vector<28x224xf32>
    %66 = tpu.matmul %59, %65, %cst_52 {dimension_numbers = #tpu.dot_dimension_numbers<[1], [0], [0], [1], [0, 0, 1, 1], [], []>} : vector<28x224xbf16>, vector<224x224xbf16>, vector<28x224xf32> -> vector<28x224xf32>
    %67 = arith.addf %57, %66 : vector<28x224xf32>
    %68 = vector.extract_strided_slice %25 {offsets = [0, 4, 0], sizes = [2, 14, 224], strides = [1, 1, 1]} : vector<2x18x224xbf16> to vector<2x14x224xbf16>
    %69 = vector.shape_cast %68 : vector<2x14x224xbf16> to vector<28x224xbf16>
    %c0_53 = arith.constant 0 : index
    %c4 = arith.constant 4 : index
    %c0_54 = arith.constant 0 : index
    %c0_55 = arith.constant 0 : index
    %70 = vector.load %arg4[%c0_53, %c4, %c0_54, %c0_55] : memref<2x5x224x224xbf16, #tpu.memory_space<vmem>>, vector<1x1x224x224xbf16>
    %71 = vector.shape_cast %70 : vector<1x1x224x224xbf16> to vector<224x224xbf16>
    %cst_56 = arith.constant dense<0.000000e+00> : vector<28x224xf32>
    %72 = tpu.matmul %69, %71, %cst_56 {dimension_numbers = #tpu.dot_dimension_numbers<[1], [0], [0], [1], [0, 0, 1, 1], [], []>} : vector<28x224xbf16>, vector<224x224xbf16>, vector<28x224xf32> -> vector<28x224xf32>
    %73 = arith.addf %63, %72 : vector<28x224xf32>
    %c1_57 = arith.constant 1 : index
    %c4_58 = arith.constant 4 : index
    %c0_59 = arith.constant 0 : index
    %c0_60 = arith.constant 0 : index
    %74 = vector.load %arg4[%c1_57, %c4_58, %c0_59, %c0_60] : memref<2x5x224x224xbf16, #tpu.memory_space<vmem>>, vector<1x1x224x224xbf16>
    %75 = vector.shape_cast %74 : vector<1x1x224x224xbf16> to vector<224x224xbf16>
    %cst_61 = arith.constant dense<0.000000e+00> : vector<28x224xf32>
    %76 = tpu.matmul %69, %75, %cst_61 {dimension_numbers = #tpu.dot_dimension_numbers<[1], [0], [0], [1], [0, 0, 1, 1], [], []>} : vector<28x224xbf16>, vector<224x224xbf16>, vector<28x224xf32> -> vector<28x224xf32>
    %77 = arith.addf %67, %76 : vector<28x224xf32>
    %78 = arith.maximumf %73, %77 : vector<28x224xf32>
    %79 = vector.shape_cast %78 : vector<28x224xf32> to vector<2x7x2x224xf32>
    %cst_62 = arith.constant dense<0xFF800000> : vector<2x7x224xf32>
    %80 = vector.multi_reduction <maximumf>, %79, %cst_62 [2] : vector<2x7x2x224xf32> to vector<2x7x224xf32>
    %c0_63 = arith.constant 0 : index
    %c0_64 = arith.constant 0 : index
    %81 = vector.load %arg5[%c0_63, %c0_64] : memref<1x224xf32, #tpu.memory_space<vmem>>, vector<1x224xf32>
    %82 = vector.shape_cast %81 : vector<1x224xf32> to vector<1x1x224xf32>
    %83 = vector.broadcast %82 : vector<1x1x224xf32> to vector<2x7x224xf32>
    %84 = arith.addf %80, %83 : vector<2x7x224xf32>
    %cst_65 = arith.constant 0.000000e+00 : f32
    %85 = vector.broadcast %cst_65 : f32 to vector<2x7x224xf32>
    %86 = arith.maximumf %84, %85 : vector<2x7x224xf32>
    %87 = arith.truncf %86 : vector<2x7x224xf32> to vector<2x7x224xbf16>
    %cst_66 = arith.constant 0.000000e+00 : f32
    %88 = vector.broadcast %cst_66 : f32 to vector<2x128xf32>
    %89 = vector.extract_strided_slice %87 {offsets = [0, 0, 0], sizes = [2, 1, 224], strides = [1, 1, 1]} : vector<2x7x224xbf16> to vector<2x1x224xbf16>
    %90 = vector.shape_cast %89 : vector<2x1x224xbf16> to vector<2x224xbf16>
    %c0_67 = arith.constant 0 : index
    %c0_68 = arith.constant 0 : index
    %c0_69 = arith.constant 0 : index
    %91 = vector.load %arg6[%c0_67, %c0_68, %c0_69] : memref<7x224x128xbf16, #tpu.memory_space<vmem>>, vector<1x224x128xbf16>
    %92 = vector.shape_cast %91 : vector<1x224x128xbf16> to vector<224x128xbf16>
    %cst_70 = arith.constant dense<0.000000e+00> : vector<2x128xf32>
    %93 = tpu.matmul %90, %92, %cst_70 {dimension_numbers = #tpu.dot_dimension_numbers<[1], [0], [0], [1], [0, 0, 1, 1], [], []>} : vector<2x224xbf16>, vector<224x128xbf16>, vector<2x128xf32> -> vector<2x128xf32>
    %94 = arith.addf %88, %93 : vector<2x128xf32>
    %95 = vector.extract_strided_slice %87 {offsets = [0, 1, 0], sizes = [2, 1, 224], strides = [1, 1, 1]} : vector<2x7x224xbf16> to vector<2x1x224xbf16>
    %96 = vector.shape_cast %95 : vector<2x1x224xbf16> to vector<2x224xbf16>
    %c1_71 = arith.constant 1 : index
    %c0_72 = arith.constant 0 : index
    %c0_73 = arith.constant 0 : index
    %97 = vector.load %arg6[%c1_71, %c0_72, %c0_73] : memref<7x224x128xbf16, #tpu.memory_space<vmem>>, vector<1x224x128xbf16>
    %98 = vector.shape_cast %97 : vector<1x224x128xbf16> to vector<224x128xbf16>
    %cst_74 = arith.constant dense<0.000000e+00> : vector<2x128xf32>
    %99 = tpu.matmul %96, %98, %cst_74 {dimension_numbers = #tpu.dot_dimension_numbers<[1], [0], [0], [1], [0, 0, 1, 1], [], []>} : vector<2x224xbf16>, vector<224x128xbf16>, vector<2x128xf32> -> vector<2x128xf32>
    %100 = arith.addf %94, %99 : vector<2x128xf32>
    %101 = vector.extract_strided_slice %87 {offsets = [0, 2, 0], sizes = [2, 1, 224], strides = [1, 1, 1]} : vector<2x7x224xbf16> to vector<2x1x224xbf16>
    %102 = vector.shape_cast %101 : vector<2x1x224xbf16> to vector<2x224xbf16>
    %c2_75 = arith.constant 2 : index
    %c0_76 = arith.constant 0 : index
    %c0_77 = arith.constant 0 : index
    %103 = vector.load %arg6[%c2_75, %c0_76, %c0_77] : memref<7x224x128xbf16, #tpu.memory_space<vmem>>, vector<1x224x128xbf16>
    %104 = vector.shape_cast %103 : vector<1x224x128xbf16> to vector<224x128xbf16>
    %cst_78 = arith.constant dense<0.000000e+00> : vector<2x128xf32>
    %105 = tpu.matmul %102, %104, %cst_78 {dimension_numbers = #tpu.dot_dimension_numbers<[1], [0], [0], [1], [0, 0, 1, 1], [], []>} : vector<2x224xbf16>, vector<224x128xbf16>, vector<2x128xf32> -> vector<2x128xf32>
    %106 = arith.addf %100, %105 : vector<2x128xf32>
    %107 = vector.extract_strided_slice %87 {offsets = [0, 3, 0], sizes = [2, 1, 224], strides = [1, 1, 1]} : vector<2x7x224xbf16> to vector<2x1x224xbf16>
    %108 = vector.shape_cast %107 : vector<2x1x224xbf16> to vector<2x224xbf16>
    %c3_79 = arith.constant 3 : index
    %c0_80 = arith.constant 0 : index
    %c0_81 = arith.constant 0 : index
    %109 = vector.load %arg6[%c3_79, %c0_80, %c0_81] : memref<7x224x128xbf16, #tpu.memory_space<vmem>>, vector<1x224x128xbf16>
    %110 = vector.shape_cast %109 : vector<1x224x128xbf16> to vector<224x128xbf16>
    %cst_82 = arith.constant dense<0.000000e+00> : vector<2x128xf32>
    %111 = tpu.matmul %108, %110, %cst_82 {dimension_numbers = #tpu.dot_dimension_numbers<[1], [0], [0], [1], [0, 0, 1, 1], [], []>} : vector<2x224xbf16>, vector<224x128xbf16>, vector<2x128xf32> -> vector<2x128xf32>
    %112 = arith.addf %106, %111 : vector<2x128xf32>
    %113 = vector.extract_strided_slice %87 {offsets = [0, 4, 0], sizes = [2, 1, 224], strides = [1, 1, 1]} : vector<2x7x224xbf16> to vector<2x1x224xbf16>
    %114 = vector.shape_cast %113 : vector<2x1x224xbf16> to vector<2x224xbf16>
    %c4_83 = arith.constant 4 : index
    %c0_84 = arith.constant 0 : index
    %c0_85 = arith.constant 0 : index
    %115 = vector.load %arg6[%c4_83, %c0_84, %c0_85] : memref<7x224x128xbf16, #tpu.memory_space<vmem>>, vector<1x224x128xbf16>
    %116 = vector.shape_cast %115 : vector<1x224x128xbf16> to vector<224x128xbf16>
    %cst_86 = arith.constant dense<0.000000e+00> : vector<2x128xf32>
    %117 = tpu.matmul %114, %116, %cst_86 {dimension_numbers = #tpu.dot_dimension_numbers<[1], [0], [0], [1], [0, 0, 1, 1], [], []>} : vector<2x224xbf16>, vector<224x128xbf16>, vector<2x128xf32> -> vector<2x128xf32>
    %118 = arith.addf %112, %117 : vector<2x128xf32>
    %119 = vector.extract_strided_slice %87 {offsets = [0, 5, 0], sizes = [2, 1, 224], strides = [1, 1, 1]} : vector<2x7x224xbf16> to vector<2x1x224xbf16>
    %120 = vector.shape_cast %119 : vector<2x1x224xbf16> to vector<2x224xbf16>
    %c5 = arith.constant 5 : index
    %c0_87 = arith.constant 0 : index
    %c0_88 = arith.constant 0 : index
    %121 = vector.load %arg6[%c5, %c0_87, %c0_88] : memref<7x224x128xbf16, #tpu.memory_space<vmem>>, vector<1x224x128xbf16>
    %122 = vector.shape_cast %121 : vector<1x224x128xbf16> to vector<224x128xbf16>
    %cst_89 = arith.constant dense<0.000000e+00> : vector<2x128xf32>
    %123 = tpu.matmul %120, %122, %cst_89 {dimension_numbers = #tpu.dot_dimension_numbers<[1], [0], [0], [1], [0, 0, 1, 1], [], []>} : vector<2x224xbf16>, vector<224x128xbf16>, vector<2x128xf32> -> vector<2x128xf32>
    %124 = arith.addf %118, %123 : vector<2x128xf32>
    %125 = vector.extract_strided_slice %87 {offsets = [0, 6, 0], sizes = [2, 1, 224], strides = [1, 1, 1]} : vector<2x7x224xbf16> to vector<2x1x224xbf16>
    %126 = vector.shape_cast %125 : vector<2x1x224xbf16> to vector<2x224xbf16>
    %c6 = arith.constant 6 : index
    %c0_90 = arith.constant 0 : index
    %c0_91 = arith.constant 0 : index
    %127 = vector.load %arg6[%c6, %c0_90, %c0_91] : memref<7x224x128xbf16, #tpu.memory_space<vmem>>, vector<1x224x128xbf16>
    %128 = vector.shape_cast %127 : vector<1x224x128xbf16> to vector<224x128xbf16>
    %cst_92 = arith.constant dense<0.000000e+00> : vector<2x128xf32>
    %129 = tpu.matmul %126, %128, %cst_92 {dimension_numbers = #tpu.dot_dimension_numbers<[1], [0], [0], [1], [0, 0, 1, 1], [], []>} : vector<2x224xbf16>, vector<224x128xbf16>, vector<2x128xf32> -> vector<2x128xf32>
    %130 = arith.addf %124, %129 : vector<2x128xf32>
    %c0_93 = arith.constant 0 : index
    %c0_94 = arith.constant 0 : index
    %131 = vector.load %arg7[%c0_93, %c0_94] : memref<1x128xf32, #tpu.memory_space<vmem>>, vector<1x128xf32>
    %132 = vector.broadcast %131 : vector<1x128xf32> to vector<2x128xf32>
    %133 = arith.addf %130, %132 : vector<2x128xf32>
    %134 = vector.shape_cast %133 : vector<2x128xf32> to vector<2x1x128xf32>
    %c0_95 = arith.constant 0 : index
    %c0_96 = arith.constant 0 : index
    %c0_97 = arith.constant 0 : index
    %135 = vector.load %arg8[%c0_95, %c0_96, %c0_97] : memref<2x1x128xf32, #tpu.memory_space<vmem>>, vector<2x1x128xf32>
    tpu.vector_store %arg8[%c0_95, %c0_96, %c0_97], %134 {strides = array<i32>} : memref<2x1x128xf32, #tpu.memory_space<vmem>>, vector<2x1x128xf32>,
    return
  }
  func.func @transform_0(%arg0: i32) -> (i32, i32, i32) {
    %c0_i32 = arith.constant 0 : i32
    %c0_i32_0 = arith.constant 0 : i32
    %c0_i32_1 = arith.constant 0 : i32
    return %arg0, %c0_i32, %c0_i32_0 : i32, i32, i32
  }
  func.func @transform_1(%arg0: i32) -> (i32, i32, i32) {
    %c0_i32 = arith.constant 0 : i32
    %c0_i32_0 = arith.constant 0 : i32
    %c0_i32_1 = arith.constant 0 : i32
    %c0_i32_2 = arith.constant 0 : i32
    return %c0_i32, %c0_i32_0, %c0_i32_1 : i32, i32, i32
  }
  func.func @transform_2(%arg0: i32) -> (i32, i32) {
    %c0_i32 = arith.constant 0 : i32
    %c0_i32_0 = arith.constant 0 : i32
    %c0_i32_1 = arith.constant 0 : i32
    return %c0_i32, %c0_i32_0 : i32, i32
  }
  func.func @transform_3(%arg0: i32) -> (i32, i32, i32, i32) {
    %c0_i32 = arith.constant 0 : i32
    %c0_i32_0 = arith.constant 0 : i32
    %c0_i32_1 = arith.constant 0 : i32
    %c0_i32_2 = arith.constant 0 : i32
    %c0_i32_3 = arith.constant 0 : i32
    return %c0_i32, %c0_i32_0, %c0_i32_1, %c0_i32_2 : i32, i32, i32, i32
  }
  func.func @transform_4(%arg0: i32) -> (i32, i32) {
    %c0_i32 = arith.constant 0 : i32
    %c0_i32_0 = arith.constant 0 : i32
    %c0_i32_1 = arith.constant 0 : i32
    return %c0_i32, %c0_i32_0 : i32, i32
  }
  func.func @transform_5(%arg0: i32) -> (i32, i32, i32) {
    %c0_i32 = arith.constant 0 : i32
    %c0_i32_0 = arith.constant 0 : i32
    %c0_i32_1 = arith.constant 0 : i32
    %c0_i32_2 = arith.constant 0 : i32
    return %c0_i32, %c0_i32_0, %c0_i32_1 : i32, i32, i32
  }
  func.func @transform_6(%arg0: i32) -> (i32, i32) {
    %c0_i32 = arith.constant 0 : i32
    %c0_i32_0 = arith.constant 0 : i32
    %c0_i32_1 = arith.constant 0 : i32
    return %c0_i32, %c0_i32_0 : i32, i32
  }
  func.func @transform_7(%arg0: i32) -> (i32, i32, i32) {
    %c0_i32 = arith.constant 0 : i32
    %c0_i32_0 = arith.constant 0 : i32
    %c0_i32_1 = arith.constant 0 : i32
    return %arg0, %c0_i32, %c0_i32_0 : i32, i32, i32
  }
}

</mosaic_0001>

<llo_original>
// kernel: mnist_forward.1
$region0: #{mnist_forward.1}
  #allocation0 [shape = 'u32[]', space=smem, size = 0x4, offset = 0x4, fixed_abs, tag = 'smem constant byte address 0x4 - core index']
  #allocation1 [shape = 'u32[144,128]{1,0:T(1,128)}', space=vmem, size = 0x12000, scoped, tag = 'internal scratch']
  %s0 = inlined_call_operand.vmem [shape: bf16[2,32,32], index: 0, kind: input, shape index: {}]
  %s1 = inlined_call_operand.hbm [shape: bf16[2,160,224], index: 1, kind: input, shape index: {}]
  %s2 = inlined_call_operand.hbm [shape: f32[1,224], index: 2, kind: input, shape index: {}]
  %s3 = inlined_call_operand.hbm [shape: bf16[2,5,224,224], index: 3, kind: input, shape index: {}]
  %s4 = inlined_call_operand.hbm [shape: f32[1,224], index: 4, kind: input, shape index: {}]
  %s5 = inlined_call_operand.hbm [shape: bf16[7,224,128], index: 5, kind: input, shape index: {}]
  %s6 = inlined_call_operand.hbm [shape: f32[1,128], index: 6, kind: input, shape index: {}]
  %s7 = inlined_call_operand.hbm [shape: f32[2,1,128], index: 7, kind: output, shape index: {}]
  %s8 = sld [smem:[#allocation0]]
  $region62: #{mnist_forward.1} parent=0
    _
  %s10 = ssub.s32 1, %s8
  %s11 = scalar_select 0, %s10, %s8
  $region1: #{mnist_forward.1} parent=0
    #allocation2 [shape = 'u8[163840]{0}', space=vmem, size = 0x28000, scoped, tag = 'input window, operand 1, single buffered']
    #allocation3 [shape = 's32[1]{0}', space=sflag, size = 0x4, scoped, tag = 'scoped memory for mnist_forward.1']
    #allocation4 [shape = 's32[1]{0}', space=sflag, size = 0x4, scoped, tag = 'scoped memory for mnist_forward.1']
    #allocation5 [shape = 'u8[1024]{0}', space=vmem, size = 0x400, scoped, tag = 'input window, operand 2, single buffered']
    #allocation6 [shape = 's32[1]{0}', space=sflag, size = 0x4, scoped, tag = 'scoped memory for mnist_forward.1']
    #allocation7 [shape = 'u8[1146880]{0}', space=vmem, size = 0x118000, scoped, tag = 'input window, operand 3, single buffered']
    #allocation8 [shape = 'u8[1024]{0}', space=vmem, size = 0x400, scoped, tag = 'input window, operand 4, single buffered']
    #allocation9 [shape = 's32[1]{0}', space=sflag, size = 0x4, scoped, tag = 'scoped memory for mnist_forward.1']
    #allocation10 [shape = 'u8[401408]{0}', space=vmem, size = 0x62000, scoped, tag = 'input window, operand 5, single buffered']
    #allocation11 [shape = 'u8[512]{0}', space=vmem, size = 0x400, scoped, tag = 'input window, operand 6, single buffered']
    #allocation12 [shape = 's32[1]{0}', space=sflag, size = 0x4, scoped, tag = 'scoped memory for mnist_forward.1']
    #allocation13 [shape = 'u8[1024]{0}', space=vmem, size = 0x400, scoped, tag = 'output window, operand 0, single buffered']
    %12 = vsyncpa [#allocation3], 0
    %13 = vsyncpa [#allocation6], 0
    %14 = vsyncpa [#allocation9], 0
    %15 = vsyncpa [#allocation12], 0
    %16 = vsyncpa [#allocation4], 0
    // Predicated region
    $region2: #{mnist_forward.1} parent=1 // pred_check
      _
    $region3: #{mnist_forward.1} parent=1 // pred_check_branch
      %18 = sbr.rel (0) target = $region5
    $region4: #{mnist_forward.1} parent=1 // pred_region
      _
    $region5: #{mnist_forward.1} parent=1 // pred_fallthru
      _
    // Predicated region
    $region6: #{mnist_forward.1} parent=1 // pred_check
      _
    $region7: #{mnist_forward.1} parent=1 // pred_check_branch
      %20 = sbr.rel (0) target = $region9
    $region8: #{mnist_forward.1} parent=1 // pred_region
      %s22 = ssub.s32 5120, 5120
      %23 = vsyncadd [#allocation3], %s22
      %s24 = sshll.u32 [#allocation2], 4
      %s25 = int_to_ptr.vmem [resolvable:$true] %s24
      %30 = dma.hbm_to_vmem [thread:$0]  %s1, 5120, %s25, [#allocation3], 128, 128, 8
    $region9: #{mnist_forward.1} parent=1 // pred_fallthru
      _
    // Predicated region
    $region10: #{mnist_forward.1} parent=1 // pred_check
      _
    $region11: #{mnist_forward.1} parent=1 // pred_check_branch
      %32 = sbr.rel (0) target = $region13
    $region12: #{mnist_forward.1} parent=1 // pred_region
      %s34 = ssub.s32 32, 32
      %35 = vsyncadd [#allocation6], %s34
      %s37 = sshll.u32 [#allocation5], 4
      %s38 = int_to_ptr.vmem [resolvable:$true] %s37
      %40 = dma.hbm_to_vmem [thread:$0]  %s2, 32, %s38, [#allocation6]
    $region13: #{mnist_forward.1} parent=1 // pred_fallthru
      _
    // Predicated region
    $region14: #{mnist_forward.1} parent=1 // pred_check
      _
    $region15: #{mnist_forward.1} parent=1 // pred_check_branch
      %42 = sbr.rel (0) target = $region17
    $region16: #{mnist_forward.1} parent=1 // pred_region
      %s44 = ssub.s32 35840, 35840
      %45 = vsyncadd [#allocation6], %s44
      %s46 = sshll.u32 [#allocation7], 4
      %s47 = int_to_ptr.vmem [resolvable:$true] %s46
      %52 = dma.hbm_to_vmem [thread:$0]  %s3, 35840, %s47, [#allocation6], 128, 128, 8
    $region17: #{mnist_forward.1} parent=1 // pred_fallthru
      _
    // Predicated region
    $region18: #{mnist_forward.1} parent=1 // pred_check
      _
    $region19: #{mnist_forward.1} parent=1 // pred_check_branch
      %54 = sbr.rel (0) target = $region21
    $region20: #{mnist_forward.1} parent=1 // pred_region
      %s56 = ssub.s32 32, 32
      %57 = vsyncadd [#allocation9], %s56
      %s59 = sshll.u32 [#allocation8], 4
      %s60 = int_to_ptr.vmem [resolvable:$true] %s59
      %62 = dma.hbm_to_vmem [thread:$0]  %s4, 32, %s60, [#allocation9]
    $region21: #{mnist_forward.1} parent=1 // pred_fallthru
      _
    // Predicated region
    $region22: #{mnist_forward.1} parent=1 // pred_check
      _
    $region23: #{mnist_forward.1} parent=1 // pred_check_branch
      %64 = sbr.rel (0) target = $region25
    $region24: #{mnist_forward.1} parent=1 // pred_region
      %s66 = ssub.s32 12544, 12544
      %67 = vsyncadd [#allocation9], %s66
      %s68 = sshll.u32 [#allocation10], 4
      %s69 = int_to_ptr.vmem [resolvable:$true] %s68
      %74 = dma.hbm_to_vmem [thread:$0]  %s5, 12544, %s69, [#allocation9], 64, 64, 4
    $region25: #{mnist_forward.1} parent=1 // pred_fallthru
      _
    // Predicated region
    $region26: #{mnist_forward.1} parent=1 // pred_check
      _
    $region27: #{mnist_forward.1} parent=1 // pred_check_branch
      %76 = sbr.rel (0) target = $region29
    $region28: #{mnist_forward.1} parent=1 // pred_region
      %s78 = ssub.s32 16, 16
      %79 = vsyncadd [#allocation12], %s78
      %s81 = sshll.u32 [#allocation11], 4
      %s82 = int_to_ptr.vmem [resolvable:$true] %s81
      %84 = dma.hbm_to_vmem [thread:$0]  %s6, 16, %s82, [#allocation12]
    $region29: #{mnist_forward.1} parent=1 // pred_fallthru
      _
    // Predicated region
    $region30: #{mnist_forward.1} parent=1 // pred_check
      _
    $region31: #{mnist_forward.1} parent=1 // pred_check_branch
      %86 = sbr.rel (0) target = $region33
    $region32: #{mnist_forward.1} parent=1 // pred_region
      %87 = dma.done [#allocation3], 5120
    $region33: #{mnist_forward.1} parent=1 // pred_fallthru
      _
    // Predicated region
    $region34: #{mnist_forward.1} parent=1 // pred_check
      _
    $region35: #{mnist_forward.1} parent=1 // pred_check_branch
      %89 = sbr.rel (0) target = $region37
    $region36: #{mnist_forward.1} parent=1 // pred_region
      %90 = dma.done [#allocation6], 32
    $region37: #{mnist_forward.1} parent=1 // pred_fallthru
      _
    // Predicated region
    $region38: #{mnist_forward.1} parent=1 // pred_check
      _
    $region39: #{mnist_forward.1} parent=1 // pred_check_branch
      %92 = sbr.rel (0) target = $region41
    $region40: #{mnist_forward.1} parent=1 // pred_region
      %93 = dma.done [#allocation6], 35840
    $region41: #{mnist_forward.1} parent=1 // pred_fallthru
      _
    // Predicated region
    $region42: #{mnist_forward.1} parent=1 // pred_check
      _
    $region43: #{mnist_forward.1} parent=1 // pred_check_branch
      %95 = sbr.rel (0) target = $region45
    $region44: #{mnist_forward.1} parent=1 // pred_region
      %96 = dma.done [#allocation9], 32
    $region45: #{mnist_forward.1} parent=1 // pred_fallthru
      _
    // Predicated region
    $region46: #{mnist_forward.1} parent=1 // pred_check
      _
    $region47: #{mnist_forward.1} parent=1 // pred_check_branch
      %98 = sbr.rel (0) target = $region49
    $region48: #{mnist_forward.1} parent=1 // pred_region
      %99 = dma.done [#allocation9], 12544
    $region49: #{mnist_forward.1} parent=1 // pred_fallthru
      _
    // Predicated region
    $region50: #{mnist_forward.1} parent=1 // pred_check
      _
    $region51: #{mnist_forward.1} parent=1 // pred_check_branch
      %101 = sbr.rel (0) target = $region53
    $region52: #{mnist_forward.1} parent=1 // pred_region
      %102 = dma.done [#allocation12], 16
    $region53: #{mnist_forward.1} parent=1 // pred_fallthru
      _
    %v104 = vld [vmem:[%s0] sm:$0xf]
    %v105 = vld [vmem:[%s0 + $0x4] sm:$0xf]
    %v106 = vld [vmem:[%s0 + $0x8] sm:$0xf]
    %v107 = vld [vmem:[%s0 + $0xc] sm:$0xf]
    %v108 = vld [vmem:[%s0 + $0x10] sm:$0xf]
    %v109 = vld [vmem:[%s0 + $0x14] sm:$0xf]
    %v110 = vld [vmem:[%s0 + $0x18] sm:$0xf]
    %v111 = vld [vmem:[%s0 + $0x1c] sm:$0xf]
    %v120 = vunpack.c.l.b16 %v104
    %v121 = vunpack.c.l.b16 %v105
    %v122 = vunpack.c.l.b16 %v106
    %v123 = vunpack.c.l.b16 %v107
    %v124 = vunpack.c.l.b16 %v108
    %v125 = vunpack.c.l.b16 %v109
    %v126 = vunpack.c.l.b16 %v110
    %v127 = vunpack.c.l.b16 %v111
    %v128 = vpack.c.b16 %v121, %v120
    %v129 = vpack.c.b16 %v123, %v122
    %v130 = vpack.c.b16 %v125, %v124
    %v131 = vpack.c.b16 %v127, %v126
    %vm132 = vsmask.f32 7424
    %v134 = vshrl.u32 %v128, 16
    %v136 = vshll.u32 %v128, 16
    %v138 = vrot.slane %v136, 1
    %v139 = vor.u32 %v134, %v138
    %v141 = vshll.u32 %v129, 16
    %v143 = vrot.slane %v141, 1
    %v144 = vsel %vm132, %v139, %v143
    %v145 = vshrl.u32 %v129, 16
    %v147 = vor.u32 %v145, %v143
    %v149 = vshrl.u32 %v130, 16
    %v151 = vshll.u32 %v130, 16
    %v153 = vrot.slane %v151, 1
    %v154 = vor.u32 %v149, %v153
    %v156 = vshll.u32 %v131, 16
    %v158 = vrot.slane %v156, 1
    %v159 = vsel %vm132, %v154, %v158
    %v160 = vshrl.u32 %v131, 16
    %v162 = vor.u32 %v160, %v158
    %163 = vrot.lane.b32.xlu0 %v144, 32
    %v164 = vpop.permute.xlu0 %163
    %165 = vrot.lane.b32.xlu0 %v147, 32
    %v166 = vpop.permute.xlu0 %165
    %167 = vrot.lane.b32.xlu0 %v159, 32
    %v168 = vpop.permute.xlu0 %167
    %169 = vrot.lane.b32.xlu0 %v162, 32
    %v170 = vpop.permute.xlu0 %169
    %vm171 = vcmask 1046528
    %v172 = vrot.slane %v128, 1
    %v173 = vrot.slane %v129, 1
    %v174 = vsel %vm171, %v172, %v173
    %v175 = vrot.slane %v130, 1
    %v176 = vrot.slane %v131, 1
    %v177 = vsel %vm171, %v175, %v176
    %178 = vrot.lane.b32.xlu0 %v174, 64
    %v179 = vpop.permute.xlu0 %178
    %180 = vrot.lane.b32.xlu0 %v173, 64
    %v181 = vpop.permute.xlu0 %180
    %182 = vrot.lane.b32.xlu0 %v177, 64
    %v183 = vpop.permute.xlu0 %182
    %184 = vrot.lane.b32.xlu0 %v176, 64
    %v185 = vpop.permute.xlu0 %184
    %vm186 = vsmask.f32 6400
    %v187 = vrot.slane %v134, 1
    %v188 = vrot.slane %v136, 2
    %v189 = vor.u32 %v187, %v188
    %v190 = vrot.slane %v145, 1
    %v191 = vrot.slane %v141, 2
    %v192 = vor.u32 %v190, %v191
    %v193 = vsel %vm186, %v189, %v192
    %v194 = vrot.slane %v149, 1
    %v195 = vrot.slane %v151, 2
    %v196 = vor.u32 %v194, %v195
    %v197 = vrot.slane %v160, 1
    %v198 = vrot.slane %v156, 2
    %v199 = vor.u32 %v197, %v198
    %v200 = vsel %vm186, %v196, %v199
    %201 = vrot.lane.b32.xlu0 %v193, 96
    %v202 = vpop.permute.xlu0 %201
    %203 = vrot.lane.b32.xlu0 %v192, 96
    %v204 = vpop.permute.xlu0 %203
    %205 = vrot.lane.b32.xlu0 %v200, 96
    %v206 = vpop.permute.xlu0 %205
    %207 = vrot.lane.b32.xlu0 %v199, 96
    %v208 = vpop.permute.xlu0 %207
    %vm209 = vcmask 1045504
    %v210 = vrot.slane %v128, 2
    %v211 = vrot.slane %v129, 2
    %v212 = vsel %vm209, %v210, %v211
    %v213 = vrot.slane %v130, 2
    %v214 = vrot.slane %v131, 2
    %v215 = vsel %vm209, %v213, %v214
    %vm216 = vcmask 261120
    %v218 = vsel %vm216, %v128, %v164
    %v220 = vsel %vm216, %v129, %v166
    %v222 = vsel %vm216, %v130, %v168
    %v224 = vsel %vm216, %v131, %v170
    %vm225 = vcmask 523264
    %v227 = vsel %vm225, %v218, %v179
    %v229 = vsel %vm225, %v220, %v181
    %v231 = vsel %vm225, %v222, %v183
    %v233 = vsel %vm225, %v224, %v185
    %vm234 = vcmask 785408
    %v236 = vsel %vm234, %v227, %v202
    %v238 = vsel %vm234, %v229, %v204
    %v240 = vsel %vm234, %v231, %v206
    %v242 = vsel %vm234, %v233, %v208
    %v247 = vcombine.low %v236, %v212
    %v248 = vcombine.high %v236, %v212
    %v250 = vunpack.c.l.s4 1983009808
    %v251 = vunpack.c.0.s8 %v250
    %v252 = vlaneseq
    %v253 = vshrl.u32 %v252, 7
    %v254 = vsub.s32 %v251, %v253
    %v255 = vrot.slane %v247, %v254
    %v257 = vunpack.c.l.s4 1983009808
    %v258 = vunpack.c.0.s8 %v257
    %v259 = vlaneseq
    %v260 = vshrl.u32 %v259, 7
    %v261 = vsub.s32 %v258, %v260
    %v262 = vrot.slane %v248, %v261
    %v263 = vcombine.high %v255, %v255
    %v264 = vcombine.high %v262, %v262
    %v265 = vcombine.low %v238, %v211
    %v266 = vcombine.high %v238, %v211
    %v268 = vunpack.c.l.s4 1983009808
    %v269 = vunpack.c.0.s8 %v268
    %v270 = vlaneseq
    %v271 = vshrl.u32 %v270, 7
    %v272 = vsub.s32 %v269, %v271
    %v273 = vrot.slane %v265, %v272
    %v275 = vunpack.c.l.s4 1983009808
    %v276 = vunpack.c.0.s8 %v275
    %v277 = vlaneseq
    %v278 = vshrl.u32 %v277, 7
    %v279 = vsub.s32 %v276, %v278
    %v280 = vrot.slane %v266, %v279
    %v281 = vcombine.high %v273, %v273
    %v282 = vcombine.low %v240, %v215
    %v283 = vcombine.high %v240, %v215
    %v285 = vunpack.c.l.s4 1983009808
    %v286 = vunpack.c.0.s8 %v285
    %v287 = vlaneseq
    %v288 = vshrl.u32 %v287, 7
    %v289 = vsub.s32 %v286, %v288
    %v290 = vrot.slane %v282, %v289
    %v292 = vunpack.c.l.s4 1983009808
    %v293 = vunpack.c.0.s8 %v292
    %v294 = vlaneseq
    %v295 = vshrl.u32 %v294, 7
    %v296 = vsub.s32 %v293, %v295
    %v297 = vrot.slane %v283, %v296
    %v298 = vcombine.high %v290, %v290
    %v299 = vcombine.high %v297, %v297
    %v300 = vcombine.low %v242, %v214
    %v301 = vcombine.high %v242, %v214
    %v303 = vunpack.c.l.s4 1983009808
    %v304 = vunpack.c.0.s8 %v303
    %v305 = vlaneseq
    %v306 = vshrl.u32 %v305, 7
    %v307 = vsub.s32 %v304, %v306
    %v308 = vrot.slane %v300, %v307
    %v310 = vunpack.c.l.s4 1983009808
    %v311 = vunpack.c.0.s8 %v310
    %v312 = vlaneseq
    %v313 = vshrl.u32 %v312, 7
    %v314 = vsub.s32 %v311, %v313
    %v315 = vrot.slane %v301, %v314
    %v316 = vcombine.high %v308, %v308
    %v317 = vld [vmem:[#allocation2] sm:$0xff]
    %v318 = vld [vmem:[#allocation2 + $0x8] sm:$0xff]
    %v319 = vld [vmem:[#allocation2 + $0x10] sm:$0xff]
    %v320 = vld [vmem:[#allocation2 + $0x18] sm:$0xff]
    %v321 = vld [vmem:[#allocation2 + $0x20] sm:$0xff]
    %v322 = vld [vmem:[#allocation2 + $0x28] sm:$0xff]
    %v323 = vld [vmem:[#allocation2 + $0x30] sm:$0xff]
    %v324 = vld [vmem:[#allocation2 + $0x38] sm:$0xff]
    %v325 = vld [vmem:[#allocation2 + $0x40] sm:$0xff]
    %v326 = vld [vmem:[#allocation2 + $0x48] sm:$0xff]
    %v327 = vld [vmem:[#allocation2 + $0x50] sm:$0xff]
    %v328 = vld [vmem:[#allocation2 + $0x58] sm:$0xff]
    %v329 = vld [vmem:[#allocation2 + $0x60] sm:$0xff]
    %v330 = vld [vmem:[#allocation2 + $0x68] sm:$0xff]
    %v331 = vld [vmem:[#allocation2 + $0x70] sm:$0xff]
    %v332 = vld [vmem:[#allocation2 + $0x78] sm:$0xff]
    %v333 = vld [vmem:[#allocation2 + $0x80] sm:$0xff]
    %v334 = vld [vmem:[#allocation2 + $0x88] sm:$0xff]
    %v335 = vld [vmem:[#allocation2 + $0x90] sm:$0xff]
    %v336 = vld [vmem:[#allocation2 + $0x98] sm:$0xff]
    %v337 = vcombine.low %v255, %v263
    %v338 = vcombine.low %v262, %v264
    %v340 = vunpack.c.l.s4 1983009808
    %v341 = vunpack.c.0.s8 %v340
    %v342 = vlaneseq
    %v343 = vshrl.u32 %v342, 7
    %v344 = vsub.s32 %v341, %v343
    %v345 = vrot.slane %v337, %v344
    %v347 = vunpack.c.l.s4 1983009808
    %v348 = vunpack.c.0.s8 %v347
    %v349 = vlaneseq
    %v350 = vshrl.u32 %v349, 7
    %v351 = vsub.s32 %v348, %v350
    %v352 = vrot.slane %v338, %v351
    %v353 = vcombine.low %v345, %v352
    %v354 = vcombine.high %v345, %v352
    %v355 = vcombine.low %v273, %v281
    %v356 = vcombine.low %v280, %v290
    %v358 = vunpack.c.l.s4 1983009808
    %v359 = vunpack.c.0.s8 %v358
    %v360 = vlaneseq
    %v361 = vshrl.u32 %v360, 7
    %v362 = vsub.s32 %v359, %v361
    %v363 = vrot.slane %v355, %v362
    %v365 = vunpack.c.l.s4 1983009808
    %v366 = vunpack.c.0.s8 %v365
    %v367 = vlaneseq
    %v368 = vshrl.u32 %v367, 7
    %v369 = vsub.s32 %v366, %v368
    %v370 = vrot.slane %v356, %v369
    %v371 = vcombine.low %v363, %v370
    %v372 = vcombine.high %v363, %v370
    %v373 = vcombine.low %v298, %v297
    %v374 = vcombine.low %v299, %v308
    %v376 = vunpack.c.l.s4 1983009808
    %v377 = vunpack.c.0.s8 %v376
    %v378 = vlaneseq
    %v379 = vshrl.u32 %v378, 7
    %v380 = vsub.s32 %v377, %v379
    %v381 = vrot.slane %v373, %v380
    %v383 = vunpack.c.l.s4 1983009808
    %v384 = vunpack.c.0.s8 %v383
    %v385 = vlaneseq
    %v386 = vshrl.u32 %v385, 7
    %v387 = vsub.s32 %v384, %v386
    %v388 = vrot.slane %v374, %v387
    %v389 = vcombine.low %v381, %v388
    %v390 = vcombine.high %v381, %v388
    %v391 = vcombine.low %v316, %v315
    %v393 = vunpack.c.l.s4 1983009808
    %v394 = vunpack.c.0.s8 %v393
    %v395 = vlaneseq
    %v396 = vshrl.u32 %v395, 7
    %v397 = vsub.s32 %v394, %v396
    %v398 = vrot.slane %v391, %v397
    %v399 = vcombine.high %v398, %v398
    %v424 = vunpack.c.l.b16 %v317
    %v425 = vunpack.c.h.b16 %v317
    %v426 = vunpack.c.l.b16 %v318
    %v427 = vunpack.c.h.b16 %v318
    %v428 = vunpack.c.l.b16 %v319
    %v429 = vunpack.c.h.b16 %v319
    %v430 = vunpack.c.l.b16 %v320
    %v431 = vunpack.c.h.b16 %v320
    %v432 = vunpack.c.l.b16 %v321
    %v433 = vunpack.c.h.b16 %v321
    %v434 = vunpack.c.l.b16 %v322
    %v435 = vunpack.c.h.b16 %v322
    %v436 = vunpack.c.l.b16 %v323
    %v437 = vunpack.c.h.b16 %v323
    %v438 = vunpack.c.l.b16 %v324
    %v439 = vunpack.c.h.b16 %v324
    %v440 = vunpack.c.l.b16 %v325
    %v441 = vunpack.c.h.b16 %v325
    %v442 = vunpack.c.l.b16 %v326
    %v443 = vunpack.c.h.b16 %v326
    %v444 = vunpack.c.l.b16 %v327
    %v445 = vunpack.c.h.b16 %v327
    %v446 = vunpack.c.l.b16 %v328
    %v447 = vunpack.c.h.b16 %v328
    %v448 = vunpack.c.l.b16 %v329
    %v449 = vunpack.c.h.b16 %v329
    %v450 = vunpack.c.l.b16 %v330
    %v451 = vunpack.c.h.b16 %v330
    %v452 = vunpack.c.l.b16 %v331
    %v453 = vunpack.c.h.b16 %v331
    %v454 = vunpack.c.l.b16 %v332
    %v455 = vunpack.c.h.b16 %v332
    %v456 = vunpack.c.l.b16 %v333
    %v457 = vunpack.c.h.b16 %v333
    %v458 = vunpack.c.l.b16 %v334
    %v459 = vunpack.c.h.b16 %v334
    %v460 = vunpack.c.l.b16 %v335
    %v461 = vunpack.c.h.b16 %v335
    %v462 = vunpack.c.l.b16 %v336
    %v463 = vunpack.c.h.b16 %v336
    %v464 = vpack.c.b16 %v426, %v424
    %v465 = vpack.c.b16 %v427, %v425
    %v466 = vpack.c.b16 %v430, %v428
    %v467 = vpack.c.b16 %v431, %v429
    %v468 = vpack.c.b16 %v434, %v432
    %v469 = vpack.c.b16 %v435, %v433
    %v470 = vpack.c.b16 %v438, %v436
    %v471 = vpack.c.b16 %v439, %v437
    %v472 = vpack.c.b16 %v442, %v440
    %v473 = vpack.c.b16 %v443, %v441
    %v474 = vpack.c.b16 %v446, %v444
    %v475 = vpack.c.b16 %v447, %v445
    %v476 = vpack.c.b16 %v450, %v448
    %v477 = vpack.c.b16 %v451, %v449
    %v478 = vpack.c.b16 %v454, %v452
    %v479 = vpack.c.b16 %v455, %v453
    %v480 = vpack.c.b16 %v458, %v456
    %v481 = vpack.c.b16 %v459, %v457
    %v482 = vpack.c.b16 %v462, %v460
    %v483 = vpack.c.b16 %v463, %v461
    %v505 = vsel %vm216, %v354, 0
    %v508 = vsel %vm216, %v372, 0
    %v511 = vsel %vm216, %v390, 0
    %v514 = vsel %vm216, %v399, 0
    %516 = vmatprep.subr.bf16.mxu0 %v465
    %517 = vmatpush1.bf16.msra.mxu0 %v464
    %518 = vmatprep.subr.bf16.mxu0 %v467
    %519 = vmatpush1.bf16.msra.mxu0 %v466
    %520 = vmatprep.subr.bf16.mxu0 %v469
    %521 = vmatpush1.bf16.msra.mxu0 %v468
    %522 = vmatprep.subr.bf16.mxu0 %v471
    %523 = vmatpush1.bf16.msra.mxu0 %v470
    %524 = vmatprep.subr.bf16.mxu0 %v473
    %525 = vmatpush1.bf16.msra.mxu0 %v472
    %526 = vmatprep.subr.bf16.mxu0 %v475
    %527 = vmatpush1.bf16.msra.mxu0 %v474
    %528 = vmatprep.subr.bf16.mxu0 %v477
    %529 = vmatpush1.bf16.msra.mxu0 %v476
    %530 = vmatprep.subr.bf16.mxu0 %v479
    %531 = vmatpush1.bf16.msra.mxu0 %v478
    %532 = vmatprep.subr.bf16.mxu0 %v481
    %533 = vmatpush1.bf16.msra.mxu0 %v480
    %534 = vmatprep.subr.bf16.mxu0 %v483
    %535 = vmatpush1.bf16.msra.mxu0 %v482
    %536 = vmatprep.subr.bf16.mxu0 0
    %537 = vmatpush1.bf16.msra.mxu0 0
    %538 = vmatprep.subr.bf16.mxu0 0
    %539 = vmatpush1.bf16.msra.mxu0 0
    %540 = vmatprep.subr.bf16.mxu0 0
    %541 = vmatpush1.bf16.msra.mxu0 0
    %542 = vmatprep.subr.bf16.mxu0 0
    %543 = vmatpush1.bf16.msra.mxu0 0
    %544 = vmatprep.subr.bf16.mxu0 0
    %545 = vmatpush1.bf16.msra.mxu0 0
    %546 = vmatprep.subr.bf16.mxu0 0
    %547 = vmatpush1.bf16.msra.mxu0 0
    %548 = vmatprep.mubr.bf16.mxu0 %v505
    %549 = vmatmul.mubr.bf16.gmra.mrb[0].mxu0 %v353
    %v550 = vpop.f32.mrb[0].mxu0
    %v551 = vadd.f32 0.0, %v550
    %v552 = vpop.f32.mrb[0].mxu0
    %v553 = vadd.f32 0.0, %v552
    %v554 = vpop.f32.mrb[0].mxu0
    %v555 = vadd.f32 0.0, %v554
    %v556 = vpop.f32.mrb[0].mxu0
    %v557 = vadd.f32 0.0, %v556
    %558 = vmatprep.mubr.bf16.mxu0 %v508
    %559 = vmatmul.mubr.bf16.gmra.mrb[0].mxu0 %v371
    %v560 = vpop.f32.mrb[0].mxu0
    %v561 = vadd.f32 0.0, %v560
    %v562 = vpop.f32.mrb[0].mxu0
    %v563 = vadd.f32 0.0, %v562
    %v564 = vpop.f32.mrb[0].mxu0
    %v565 = vadd.f32 0.0, %v564
    %v566 = vpop.f32.mrb[0].mxu0
    %v567 = vadd.f32 0.0, %v566
    %568 = vmatprep.mubr.bf16.mxu0 %v511
    %569 = vmatmul.mubr.bf16.gmra.mrb[0].mxu0 %v389
    %v570 = vpop.f32.mrb[0].mxu0
    %v571 = vadd.f32 0.0, %v570
    %v572 = vpop.f32.mrb[0].mxu0
    %v573 = vadd.f32 0.0, %v572
    %v574 = vpop.f32.mrb[0].mxu0
    %v575 = vadd.f32 0.0, %v574
    %v576 = vpop.f32.mrb[0].mxu0
    %v577 = vadd.f32 0.0, %v576
    %578 = vmatprep.mubr.bf16.mxu0 %v514
    %579 = vmatmul.mubr.bf16.gmra.mrb[0].mxu0 %v398
    %v580 = vpop.f32.mrb[0].mxu0
    %v581 = vadd.f32 0.0, %v580
    %v582 = vpop.f32.mrb[0].mxu0
    %v583 = vadd.f32 0.0, %v582
    %v584 = vpop.f32.mrb[0].mxu0
    %v585 = vpop.f32.mrb[0].mxu0
    %586 = vdwg.mxu0
    %s587 = scalar_lea.vmem [#allocation2], 160
    %v588 = vld [vmem:[%s587] sm:$0xff]
    %v589 = vld [vmem:[%s587 + $0x8] sm:$0xff]
    %v590 = vld [vmem:[%s587 + $0x10] sm:$0xff]
    %v591 = vld [vmem:[%s587 + $0x18] sm:$0xff]
    %v592 = vld [vmem:[%s587 + $0x20] sm:$0xff]
    %v593 = vld [vmem:[%s587 + $0x28] sm:$0xff]
    %v594 = vld [vmem:[%s587 + $0x30] sm:$0xff]
    %v595 = vld [vmem:[%s587 + $0x38] sm:$0xff]
    %v596 = vld [vmem:[%s587 + $0x40] sm:$0xff]
    %v597 = vld [vmem:[%s587 + $0x48] sm:$0xff]
    %v598 = vld [vmem:[%s587 + $0x50] sm:$0xff]
    %v599 = vld [vmem:[%s587 + $0x58] sm:$0xff]
    %v600 = vld [vmem:[%s587 + $0x60] sm:$0xff]
    %v601 = vld [vmem:[%s587 + $0x68] sm:$0xff]
    %v602 = vld [vmem:[%s587 + $0x70] sm:$0xff]
    %v603 = vld [vmem:[%s587 + $0x78] sm:$0xff]
    %v604 = vld [vmem:[%s587 + $0x80] sm:$0xff]
    %v605 = vld [vmem:[%s587 + $0x88] sm:$0xff]
    %v606 = vld [vmem:[%s587 + $0x90] sm:$0xff]
    %v607 = vld [vmem:[%s587 + $0x98] sm:$0xff]
    %v628 = vunpack.c.l.b16 %v588
    %v629 = vunpack.c.h.b16 %v588
    %v630 = vunpack.c.l.b16 %v589
    %v631 = vunpack.c.h.b16 %v589
    %v632 = vunpack.c.l.b16 %v590
    %v633 = vunpack.c.h.b16 %v590
    %v634 = vunpack.c.l.b16 %v591
    %v635 = vunpack.c.h.b16 %v591
    %v636 = vunpack.c.l.b16 %v592
    %v637 = vunpack.c.h.b16 %v592
    %v638 = vunpack.c.l.b16 %v593
    %v639 = vunpack.c.h.b16 %v593
    %v640 = vunpack.c.l.b16 %v594
    %v641 = vunpack.c.h.b16 %v594
    %v642 = vunpack.c.l.b16 %v595
    %v643 = vunpack.c.h.b16 %v595
    %v644 = vunpack.c.l.b16 %v596
    %v645 = vunpack.c.h.b16 %v596
    %v646 = vunpack.c.l.b16 %v597
    %v647 = vunpack.c.h.b16 %v597
    %v648 = vunpack.c.l.b16 %v598
    %v649 = vunpack.c.h.b16 %v598
    %v650 = vunpack.c.l.b16 %v599
    %v651 = vunpack.c.h.b16 %v599
    %v652 = vunpack.c.l.b16 %v600
    %v653 = vunpack.c.h.b16 %v600
    %v654 = vunpack.c.l.b16 %v601
    %v655 = vunpack.c.h.b16 %v601
    %v656 = vunpack.c.l.b16 %v602
    %v657 = vunpack.c.h.b16 %v602
    %v658 = vunpack.c.l.b16 %v603
    %v659 = vunpack.c.h.b16 %v603
    %v660 = vunpack.c.l.b16 %v604
    %v661 = vunpack.c.h.b16 %v604
    %v662 = vunpack.c.l.b16 %v605
    %v663 = vunpack.c.h.b16 %v605
    %v664 = vunpack.c.l.b16 %v606
    %v665 = vunpack.c.h.b16 %v606
    %v666 = vunpack.c.l.b16 %v607
    %v667 = vunpack.c.h.b16 %v607
    %v668 = vpack.c.b16 %v630, %v628
    %v669 = vpack.c.b16 %v631, %v629
    %v670 = vpack.c.b16 %v634, %v632
    %v671 = vpack.c.b16 %v635, %v633
    %v672 = vpack.c.b16 %v638, %v636
    %v673 = vpack.c.b16 %v639, %v637
    %v674 = vpack.c.b16 %v642, %v640
    %v675 = vpack.c.b16 %v643, %v641
    %v676 = vpack.c.b16 %v646, %v644
    %v677 = vpack.c.b16 %v647, %v645
    %v678 = vpack.c.b16 %v650, %v648
    %v679 = vpack.c.b16 %v651, %v649
    %v680 = vpack.c.b16 %v654, %v652
    %v681 = vpack.c.b16 %v655, %v653
    %v682 = vpack.c.b16 %v658, %v656
    %v683 = vpack.c.b16 %v659, %v657
    %v684 = vpack.c.b16 %v662, %v660
    %v685 = vpack.c.b16 %v663, %v661
    %v686 = vpack.c.b16 %v666, %v664
    %v687 = vpack.c.b16 %v667, %v665
    %708 = vmatprep.subr.bf16.mxu0 %v669
    %709 = vmatpush1.bf16.msra.mxu0 %v668
    %710 = vmatprep.subr.bf16.mxu0 %v671
    %711 = vmatpush1.bf16.msra.mxu0 %v670
    %712 = vmatprep.subr.bf16.mxu0 %v673
    %713 = vmatpush1.bf16.msra.mxu0 %v672
    %714 = vmatprep.subr.bf16.mxu0 %v675
    %715 = vmatpush1.bf16.msra.mxu0 %v674
    %716 = vmatprep.subr.bf16.mxu0 %v677
    %717 = vmatpush1.bf16.msra.mxu0 %v676
    %718 = vmatprep.subr.bf16.mxu0 %v679
    %719 = vmatpush1.bf16.msra.mxu0 %v678
    %720 = vmatprep.subr.bf16.mxu0 %v681
    %721 = vmatpush1.bf16.msra.mxu0 %v680
    %722 = vmatprep.subr.bf16.mxu0 %v683
    %723 = vmatpush1.bf16.msra.mxu0 %v682
    %724 = vmatprep.subr.bf16.mxu0 %v685
    %725 = vmatpush1.bf16.msra.mxu0 %v684
    %726 = vmatprep.subr.bf16.mxu0 %v687
    %727 = vmatpush1.bf16.msra.mxu0 %v686
    %728 = vmatprep.subr.bf16.mxu0 0
    %729 = vmatpush1.bf16.msra.mxu0 0
    %730 = vmatprep.subr.bf16.mxu0 0
    %731 = vmatpush1.bf16.msra.mxu0 0
    %732 = vmatprep.subr.bf16.mxu0 0
    %733 = vmatpush1.bf16.msra.mxu0 0
    %734 = vmatprep.subr.bf16.mxu0 0
    %735 = vmatpush1.bf16.msra.mxu0 0
    %736 = vmatprep.subr.bf16.mxu0 0
    %737 = vmatpush1.bf16.msra.mxu0 0
    %738 = vmatprep.subr.bf16.mxu0 0
    %739 = vmatpush1.bf16.msra.mxu0 0
    %740 = vmatprep.mubr.bf16.mxu0 %v505
    %741 = vmatmul.mubr.bf16.gmra.mrb[0].mxu0 %v353
    %v742 = vpop.f32.mrb[0].mxu0
    %v743 = vadd.f32 0.0, %v742
    %v744 = vpop.f32.mrb[0].mxu0
    %v745 = vadd.f32 0.0, %v744
    %v746 = vpop.f32.mrb[0].mxu0
    %v747 = vadd.f32 0.0, %v746
    %v748 = vpop.f32.mrb[0].mxu0
    %v749 = vadd.f32 0.0, %v748
    %750 = vmatprep.mubr.bf16.mxu0 %v508
    %751 = vmatmul.mubr.bf16.gmra.mrb[0].mxu0 %v371
    %v752 = vpop.f32.mrb[0].mxu0
    %v753 = vadd.f32 0.0, %v752
    %v754 = vpop.f32.mrb[0].mxu0
    %v755 = vadd.f32 0.0, %v754
    %v756 = vpop.f32.mrb[0].mxu0
    %v757 = vadd.f32 0.0, %v756
    %v758 = vpop.f32.mrb[0].mxu0
    %v759 = vadd.f32 0.0, %v758
    %760 = vmatprep.mubr.bf16.mxu0 %v511
    %761 = vmatmul.mubr.bf16.gmra.mrb[0].mxu0 %v389
    %v762 = vpop.f32.mrb[0].mxu0
    %v763 = vadd.f32 0.0, %v762
    %v764 = vpop.f32.mrb[0].mxu0
    %v765 = vadd.f32 0.0, %v764
    %v766 = vpop.f32.mrb[0].mxu0
    %v767 = vadd.f32 0.0, %v766
    %v768 = vpop.f32.mrb[0].mxu0
    %v769 = vadd.f32 0.0, %v768
    %770 = vmatprep.mubr.bf16.mxu0 %v514
    %771 = vmatmul.mubr.bf16.gmra.mrb[0].mxu0 %v398
    %v772 = vpop.f32.mrb[0].mxu0
    %v773 = vadd.f32 0.0, %v772
    %v774 = vpop.f32.mrb[0].mxu0
    %v775 = vadd.f32 0.0, %v774
    %v776 = vpop.f32.mrb[0].mxu0
    %v777 = vpop.f32.mrb[0].mxu0
    %778 = vdwg.mxu0
    %v779 = vmax.f32 %v551, %v743
    %v780 = vmax.f32 %v553, %v745
    %v781 = vmax.f32 %v555, %v747
    %v782 = vmax.f32 %v557, %v749
    %v783 = vmax.f32 %v561, %v753
    %v784 = vmax.f32 %v563, %v755
    %v785 = vmax.f32 %v565, %v757
    %v786 = vmax.f32 %v567, %v759
    %v787 = vmax.f32 %v571, %v763
    %v788 = vmax.f32 %v573, %v765
    %v789 = vmax.f32 %v575, %v767
    %v790 = vmax.f32 %v577, %v769
    %v791 = vmax.f32 %v581, %v773
    %v792 = vmax.f32 %v583, %v775
    %v807 = vcombine.low %v779, %v780
    %v808 = vcombine.high %v779, %v780
    %v810 = vunpack.c.l.s4 1983009808
    %v811 = vunpack.c.0.s8 %v810
    %v812 = vlaneseq
    %v813 = vshrl.u32 %v812, 7
    %v814 = vsub.s32 %v811, %v813
    %v815 = vrot.slane %v807, %v814
    %v817 = vunpack.c.l.s4 1983009808
    %v818 = vunpack.c.0.s8 %v817
    %v819 = vlaneseq
    %v820 = vshrl.u32 %v819, 7
    %v821 = vsub.s32 %v818, %v820
    %v822 = vrot.slane %v808, %v821
    %v823 = vcombine.high %v815, %v815
    %v824 = vcombine.high %v822, %v822
    %v825 = vcombine.low %v781, %v782
    %v826 = vcombine.high %v781, %v782
    %v828 = vunpack.c.l.s4 1983009808
    %v829 = vunpack.c.0.s8 %v828
    %v830 = vlaneseq
    %v831 = vshrl.u32 %v830, 7
    %v832 = vsub.s32 %v829, %v831
    %v833 = vrot.slane %v825, %v832
    %v835 = vunpack.c.l.s4 1983009808
    %v836 = vunpack.c.0.s8 %v835
    %v837 = vlaneseq
    %v838 = vshrl.u32 %v837, 7
    %v839 = vsub.s32 %v836, %v838
    %v840 = vrot.slane %v826, %v839
    %v841 = vcombine.high %v833, %v833
    %v842 = vcombine.high %v840, %v840
    %v843 = vcombine.low %v783, %v784
    %v844 = vcombine.high %v783, %v784
    %v846 = vunpack.c.l.s4 1983009808
    %v847 = vunpack.c.0.s8 %v846
    %v848 = vlaneseq
    %v849 = vshrl.u32 %v848, 7
    %v850 = vsub.s32 %v847, %v849
    %v851 = vrot.slane %v843, %v850
    %v853 = vunpack.c.l.s4 1983009808
    %v854 = vunpack.c.0.s8 %v853
    %v855 = vlaneseq
    %v856 = vshrl.u32 %v855, 7
    %v857 = vsub.s32 %v854, %v856
    %v858 = vrot.slane %v844, %v857
    %v859 = vcombine.high %v851, %v851
    %v860 = vcombine.high %v858, %v858
    %v861 = vcombine.low %v785, %v786
    %v862 = vcombine.high %v785, %v786
    %v864 = vunpack.c.l.s4 1983009808
    %v865 = vunpack.c.0.s8 %v864
    %v866 = vlaneseq
    %v867 = vshrl.u32 %v866, 7
    %v868 = vsub.s32 %v865, %v867
    %v869 = vrot.slane %v861, %v868
    %v871 = vunpack.c.l.s4 1983009808
    %v872 = vunpack.c.0.s8 %v871
    %v873 = vlaneseq
    %v874 = vshrl.u32 %v873, 7
    %v875 = vsub.s32 %v872, %v874
    %v876 = vrot.slane %v862, %v875
    %v877 = vcombine.high %v869, %v869
    %v878 = vcombine.high %v876, %v876
    %v879 = vcombine.low %v787, %v788
    %v880 = vcombine.high %v787, %v788
    %v882 = vunpack.c.l.s4 1983009808
    %v883 = vunpack.c.0.s8 %v882
    %v884 = vlaneseq
    %v885 = vshrl.u32 %v884, 7
    %v886 = vsub.s32 %v883, %v885
    %v887 = vrot.slane %v879, %v886
    %v889 = vunpack.c.l.s4 1983009808
    %v890 = vunpack.c.0.s8 %v889
    %v891 = vlaneseq
    %v892 = vshrl.u32 %v891, 7
    %v893 = vsub.s32 %v890, %v892
    %v894 = vrot.slane %v880, %v893
    %v895 = vcombine.high %v887, %v887
    %v896 = vcombine.high %v894, %v894
    %v897 = vcombine.low %v789, %v790
    %v898 = vcombine.high %v789, %v790
    %v900 = vunpack.c.l.s4 1983009808
    %v901 = vunpack.c.0.s8 %v900
    %v902 = vlaneseq
    %v903 = vshrl.u32 %v902, 7
    %v904 = vsub.s32 %v901, %v903
    %v905 = vrot.slane %v897, %v904
    %v907 = vunpack.c.l.s4 1983009808
    %v908 = vunpack.c.0.s8 %v907
    %v909 = vlaneseq
    %v910 = vshrl.u32 %v909, 7
    %v911 = vsub.s32 %v908, %v910
    %v912 = vrot.slane %v898, %v911
    %v913 = vcombine.high %v905, %v905
    %v914 = vcombine.high %v912, %v912
    %v915 = vcombine.low %v791, %v792
    %v916 = vcombine.high %v791, %v792
    %v918 = vunpack.c.l.s4 1983009808
    %v919 = vunpack.c.0.s8 %v918
    %v920 = vlaneseq
    %v921 = vshrl.u32 %v920, 7
    %v922 = vsub.s32 %v919, %v921
    %v923 = vrot.slane %v915, %v922
    %v925 = vunpack.c.l.s4 1983009808
    %v926 = vunpack.c.0.s8 %v925
    %v927 = vlaneseq
    %v928 = vshrl.u32 %v927, 7
    %v929 = vsub.s32 %v926, %v928
    %v930 = vrot.slane %v916, %v929
    %v931 = vcombine.high %v923, %v923
    %v932 = vcombine.high %v930, %v930
    %v934 = vunpack.c.l.s4 1983009808
    %v935 = vunpack.c.0.s8 %v934
    %v936 = vlaneseq
    %v937 = vshrl.u32 %v936, 7
    %v938 = vsub.s32 %v935, %v937
    %v939 = vrot.slane %v815, %v938
    %v940 = vcombine.high %v939, %v939
    %v942 = vunpack.c.l.s4 1983009808
    %v943 = vunpack.c.0.s8 %v942
    %v944 = vlaneseq
    %v945 = vshrl.u32 %v944, 7
    %v946 = vsub.s32 %v943, %v945
    %v947 = vrot.slane %v823, %v946
    %v948 = vcombine.high %v947, %v947
    %v950 = vunpack.c.l.s4 1983009808
    %v951 = vunpack.c.0.s8 %v950
    %v952 = vlaneseq
    %v953 = vshrl.u32 %v952, 7
    %v954 = vsub.s32 %v951, %v953
    %v955 = vrot.slane %v822, %v954
    %v956 = vcombine.high %v955, %v955
    %v958 = vunpack.c.l.s4 1983009808
    %v959 = vunpack.c.0.s8 %v958
    %v960 = vlaneseq
    %v961 = vshrl.u32 %v960, 7
    %v962 = vsub.s32 %v959, %v961
    %v963 = vrot.slane %v824, %v962
    %v964 = vcombine.high %v963, %v963
    %v966 = vunpack.c.l.s4 1983009808
    %v967 = vunpack.c.0.s8 %v966
    %v968 = vlaneseq
    %v969 = vshrl.u32 %v968, 7
    %v970 = vsub.s32 %v967, %v969
    %v971 = vrot.slane %v833, %v970
    %v972 = vcombine.high %v971, %v971
    %v974 = vunpack.c.l.s4 1983009808
    %v975 = vunpack.c.0.s8 %v974
    %v976 = vlaneseq
    %v977 = vshrl.u32 %v976, 7
    %v978 = vsub.s32 %v975, %v977
    %v979 = vrot.slane %v841, %v978
    %v980 = vcombine.high %v979, %v979
    %v982 = vunpack.c.l.s4 1983009808
    %v983 = vunpack.c.0.s8 %v982
    %v984 = vlaneseq
    %v985 = vshrl.u32 %v984, 7
    %v986 = vsub.s32 %v983, %v985
    %v987 = vrot.slane %v840, %v986
    %v988 = vcombine.high %v987, %v987
    %v990 = vunpack.c.l.s4 1983009808
    %v991 = vunpack.c.0.s8 %v990
    %v992 = vlaneseq
    %v993 = vshrl.u32 %v992, 7
    %v994 = vsub.s32 %v991, %v993
    %v995 = vrot.slane %v842, %v994
    %v996 = vcombine.high %v995, %v995
    %v998 = vunpack.c.l.s4 1983009808
    %v999 = vunpack.c.0.s8 %v998
    %v1000 = vlaneseq
    %v1001 = vshrl.u32 %v1000, 7
    %v1002 = vsub.s32 %v999, %v1001
    %v1003 = vrot.slane %v851, %v1002
    %v1004 = vcombine.high %v1003, %v1003
    %v1006 = vunpack.c.l.s4 1983009808
    %v1007 = vunpack.c.0.s8 %v1006
    %v1008 = vlaneseq
    %v1009 = vshrl.u32 %v1008, 7
    %v1010 = vsub.s32 %v1007, %v1009
    %v1011 = vrot.slane %v859, %v1010
    %v1012 = vcombine.high %v1011, %v1011
    %v1014 = vunpack.c.l.s4 1983009808
    %v1015 = vunpack.c.0.s8 %v1014
    %v1016 = vlaneseq
    %v1017 = vshrl.u32 %v1016, 7
    %v1018 = vsub.s32 %v1015, %v1017
    %v1019 = vrot.slane %v858, %v1018
    %v1020 = vcombine.high %v1019, %v1019
    %v1022 = vunpack.c.l.s4 1983009808
    %v1023 = vunpack.c.0.s8 %v1022
    %v1024 = vlaneseq
    %v1025 = vshrl.u32 %v1024, 7
    %v1026 = vsub.s32 %v1023, %v1025
    %v1027 = vrot.slane %v860, %v1026
    %v1028 = vcombine.high %v1027, %v1027
    %v1030 = vunpack.c.l.s4 1983009808
    %v1031 = vunpack.c.0.s8 %v1030
    %v1032 = vlaneseq
    %v1033 = vshrl.u32 %v1032, 7
    %v1034 = vsub.s32 %v1031, %v1033
    %v1035 = vrot.slane %v869, %v1034
    %v1036 = vcombine.high %v1035, %v1035
    %v1038 = vunpack.c.l.s4 1983009808
    %v1039 = vunpack.c.0.s8 %v1038
    %v1040 = vlaneseq
    %v1041 = vshrl.u32 %v1040, 7
    %v1042 = vsub.s32 %v1039, %v1041
    %v1043 = vrot.slane %v877, %v1042
    %v1044 = vcombine.high %v1043, %v1043
    %v1046 = vunpack.c.l.s4 1983009808
    %v1047 = vunpack.c.0.s8 %v1046
    %v1048 = vlaneseq
    %v1049 = vshrl.u32 %v1048, 7
    %v1050 = vsub.s32 %v1047, %v1049
    %v1051 = vrot.slane %v876, %v1050
    %v1052 = vcombine.high %v1051, %v1051
    %v1054 = vunpack.c.l.s4 1983009808
    %v1055 = vunpack.c.0.s8 %v1054
    %v1056 = vlaneseq
    %v1057 = vshrl.u32 %v1056, 7
    %v1058 = vsub.s32 %v1055, %v1057
    %v1059 = vrot.slane %v878, %v1058
    %v1060 = vcombine.high %v1059, %v1059
    %v1062 = vunpack.c.l.s4 1983009808
    %v1063 = vunpack.c.0.s8 %v1062
    %v1064 = vlaneseq
    %v1065 = vshrl.u32 %v1064, 7
    %v1066 = vsub.s32 %v1063, %v1065
    %v1067 = vrot.slane %v887, %v1066
    %v1068 = vcombine.high %v1067, %v1067
    %v1070 = vunpack.c.l.s4 1983009808
    %v1071 = vunpack.c.0.s8 %v1070
    %v1072 = vlaneseq
    %v1073 = vshrl.u32 %v1072, 7
    %v1074 = vsub.s32 %v1071, %v1073
    %v1075 = vrot.slane %v895, %v1074
    %v1076 = vcombine.high %v1075, %v1075
    %v1078 = vunpack.c.l.s4 1983009808
    %v1079 = vunpack.c.0.s8 %v1078
    %v1080 = vlaneseq
    %v1081 = vshrl.u32 %v1080, 7
    %v1082 = vsub.s32 %v1079, %v1081
    %v1083 = vrot.slane %v894, %v1082
    %v1084 = vcombine.high %v1083, %v1083
    %v1086 = vunpack.c.l.s4 1983009808
    %v1087 = vunpack.c.0.s8 %v1086
    %v1088 = vlaneseq
    %v1089 = vshrl.u32 %v1088, 7
    %v1090 = vsub.s32 %v1087, %v1089
    %v1091 = vrot.slane %v896, %v1090
    %v1092 = vcombine.high %v1091, %v1091
    %v1094 = vunpack.c.l.s4 1983009808
    %v1095 = vunpack.c.0.s8 %v1094
    %v1096 = vlaneseq
    %v1097 = vshrl.u32 %v1096, 7
    %v1098 = vsub.s32 %v1095, %v1097
    %v1099 = vrot.slane %v905, %v1098
    %v1100 = vcombine.high %v1099, %v1099
    %v1102 = vunpack.c.l.s4 1983009808
    %v1103 = vunpack.c.0.s8 %v1102
    %v1104 = vlaneseq
    %v1105 = vshrl.u32 %v1104, 7
    %v1106 = vsub.s32 %v1103, %v1105
    %v1107 = vrot.slane %v913, %v1106
    %v1108 = vcombine.high %v1107, %v1107
    %v1110 = vunpack.c.l.s4 1983009808
    %v1111 = vunpack.c.0.s8 %v1110
    %v1112 = vlaneseq
    %v1113 = vshrl.u32 %v1112, 7
    %v1114 = vsub.s32 %v1111, %v1113
    %v1115 = vrot.slane %v912, %v1114
    %v1116 = vcombine.high %v1115, %v1115
    %v1118 = vunpack.c.l.s4 1983009808
    %v1119 = vunpack.c.0.s8 %v1118
    %v1120 = vlaneseq
    %v1121 = vshrl.u32 %v1120, 7
    %v1122 = vsub.s32 %v1119, %v1121
    %v1123 = vrot.slane %v914, %v1122
    %v1124 = vcombine.high %v1123, %v1123
    %v1126 = vunpack.c.l.s4 1983009808
    %v1127 = vunpack.c.0.s8 %v1126
    %v1128 = vlaneseq
    %v1129 = vshrl.u32 %v1128, 7
    %v1130 = vsub.s32 %v1127, %v1129
    %v1131 = vrot.slane %v923, %v1130
    %v1132 = vcombine.high %v1131, %v1131
    %v1134 = vunpack.c.l.s4 1983009808
    %v1135 = vunpack.c.0.s8 %v1134
    %v1136 = vlaneseq
    %v1137 = vshrl.u32 %v1136, 7
    %v1138 = vsub.s32 %v1135, %v1137
    %v1139 = vrot.slane %v931, %v1138
    %v1140 = vcombine.high %v1139, %v1139
    %v1142 = vunpack.c.l.s4 1983009808
    %v1143 = vunpack.c.0.s8 %v1142
    %v1144 = vlaneseq
    %v1145 = vshrl.u32 %v1144, 7
    %v1146 = vsub.s32 %v1143, %v1145
    %v1147 = vrot.slane %v930, %v1146
    %v1148 = vcombine.high %v1147, %v1147
    %v1150 = vunpack.c.l.s4 1983009808
    %v1151 = vunpack.c.0.s8 %v1150
    %v1152 = vlaneseq
    %v1153 = vshrl.u32 %v1152, 7
    %v1154 = vsub.s32 %v1151, %v1153
    %v1155 = vrot.slane %v932, %v1154
    %v1156 = vcombine.high %v1155, %v1155
    %vm1213 = vcmask 1041408
    %v1214 = vsel %vm1213, %v939, -inf
    %v1215 = vrot.slane %v1214, 4
    %v1216 = vmax.f32 %v1214, %v1215
    %v1217 = vrot.slane %v1216, 2
    %v1218 = vmax.f32 %v1216, %v1217
    %v1219 = vrot.slane %v1218, 1
    %v1220 = vmax.f32 %v1218, %v1219
    %vm1221 = vcmask 779264
    %v1222 = vsel %vm1221, %v940, -inf
    %v1223 = vrot.slane %v1222, 4
    %v1224 = vmax.f32 %v1222, %v1223
    %v1225 = vrot.slane %v1224, 2
    %v1226 = vmax.f32 %v1224, %v1225
    %v1227 = vrot.slane %v1226, 1
    %v1228 = vmax.f32 %v1226, %v1227
    %v1229 = vsel %vm1213, %v947, -inf
    %v1230 = vrot.slane %v1229, 4
    %v1231 = vmax.f32 %v1229, %v1230
    %v1232 = vrot.slane %v1231, 2
    %v1233 = vmax.f32 %v1231, %v1232
    %v1234 = vrot.slane %v1233, 1
    %v1235 = vmax.f32 %v1233, %v1234
    %v1236 = vsel %vm1221, %v948, -inf
    %v1237 = vrot.slane %v1236, 4
    %v1238 = vmax.f32 %v1236, %v1237
    %v1239 = vrot.slane %v1238, 2
    %v1240 = vmax.f32 %v1238, %v1239
    %v1241 = vrot.slane %v1240, 1
    %v1242 = vmax.f32 %v1240, %v1241
    %v1243 = vsel %vm1213, %v955, -inf
    %v1244 = vrot.slane %v1243, 4
    %v1245 = vmax.f32 %v1243, %v1244
    %v1246 = vrot.slane %v1245, 2
    %v1247 = vmax.f32 %v1245, %v1246
    %v1248 = vrot.slane %v1247, 1
    %v1249 = vmax.f32 %v1247, %v1248
    %v1250 = vsel %vm1221, %v956, -inf
    %v1251 = vrot.slane %v1250, 4
    %v1252 = vmax.f32 %v1250, %v1251
    %v1253 = vrot.slane %v1252, 2
    %v1254 = vmax.f32 %v1252, %v1253
    %v1255 = vrot.slane %v1254, 1
    %v1256 = vmax.f32 %v1254, %v1255
    %v1257 = vsel %vm1213, %v963, -inf
    %v1258 = vrot.slane %v1257, 4
    %v1259 = vmax.f32 %v1257, %v1258
    %v1260 = vrot.slane %v1259, 2
    %v1261 = vmax.f32 %v1259, %v1260
    %v1262 = vrot.slane %v1261, 1
    %v1263 = vmax.f32 %v1261, %v1262
    %v1264 = vsel %vm1221, %v964, -inf
    %v1265 = vrot.slane %v1264, 4
    %v1266 = vmax.f32 %v1264, %v1265
    %v1267 = vrot.slane %v1266, 2
    %v1268 = vmax.f32 %v1266, %v1267
    %v1269 = vrot.slane %v1268, 1
    %v1270 = vmax.f32 %v1268, %v1269
    %v1271 = vsel %vm1213, %v971, -inf
    %v1272 = vrot.slane %v1271, 4
    %v1273 = vmax.f32 %v1271, %v1272
    %v1274 = vrot.slane %v1273, 2
    %v1275 = vmax.f32 %v1273, %v1274
    %v1276 = vrot.slane %v1275, 1
    %v1277 = vmax.f32 %v1275, %v1276
    %v1278 = vsel %vm1221, %v972, -inf
    %v1279 = vrot.slane %v1278, 4
    %v1280 = vmax.f32 %v1278, %v1279
    %v1281 = vrot.slane %v1280, 2
    %v1282 = vmax.f32 %v1280, %v1281
    %v1283 = vrot.slane %v1282, 1
    %v1284 = vmax.f32 %v1282, %v1283
    %v1285 = vsel %vm1213, %v979, -inf
    %v1286 = vrot.slane %v1285, 4
    %v1287 = vmax.f32 %v1285, %v1286
    %v1288 = vrot.slane %v1287, 2
    %v1289 = vmax.f32 %v1287, %v1288
    %v1290 = vrot.slane %v1289, 1
    %v1291 = vmax.f32 %v1289, %v1290
    %v1292 = vsel %vm1221, %v980, -inf
    %v1293 = vrot.slane %v1292, 4
    %v1294 = vmax.f32 %v1292, %v1293
    %v1295 = vrot.slane %v1294, 2
    %v1296 = vmax.f32 %v1294, %v1295
    %v1297 = vrot.slane %v1296, 1
    %v1298 = vmax.f32 %v1296, %v1297
    %v1299 = vsel %vm1213, %v987, -inf
    %v1300 = vrot.slane %v1299, 4
    %v1301 = vmax.f32 %v1299, %v1300
    %v1302 = vrot.slane %v1301, 2
    %v1303 = vmax.f32 %v1301, %v1302
    %v1304 = vrot.slane %v1303, 1
    %v1305 = vmax.f32 %v1303, %v1304
    %v1306 = vsel %vm1221, %v988, -inf
    %v1307 = vrot.slane %v1306, 4
    %v1308 = vmax.f32 %v1306, %v1307
    %v1309 = vrot.slane %v1308, 2
    %v1310 = vmax.f32 %v1308, %v1309
    %v1311 = vrot.slane %v1310, 1
    %v1312 = vmax.f32 %v1310, %v1311
    %v1313 = vsel %vm1213, %v995, -inf
    %v1314 = vrot.slane %v1313, 4
    %v1315 = vmax.f32 %v1313, %v1314
    %v1316 = vrot.slane %v1315, 2
    %v1317 = vmax.f32 %v1315, %v1316
    %v1318 = vrot.slane %v1317, 1
    %v1319 = vmax.f32 %v1317, %v1318
    %v1320 = vsel %vm1221, %v996, -inf
    %v1321 = vrot.slane %v1320, 4
    %v1322 = vmax.f32 %v1320, %v1321
    %v1323 = vrot.slane %v1322, 2
    %v1324 = vmax.f32 %v1322, %v1323
    %v1325 = vrot.slane %v1324, 1
    %v1326 = vmax.f32 %v1324, %v1325
    %v1327 = vsel %vm1213, %v1003, -inf
    %v1328 = vrot.slane %v1327, 4
    %v1329 = vmax.f32 %v1327, %v1328
    %v1330 = vrot.slane %v1329, 2
    %v1331 = vmax.f32 %v1329, %v1330
    %v1332 = vrot.slane %v1331, 1
    %v1333 = vmax.f32 %v1331, %v1332
    %v1334 = vsel %vm1221, %v1004, -inf
    %v1335 = vrot.slane %v1334, 4
    %v1336 = vmax.f32 %v1334, %v1335
    %v1337 = vrot.slane %v1336, 2
    %v1338 = vmax.f32 %v1336, %v1337
    %v1339 = vrot.slane %v1338, 1
    %v1340 = vmax.f32 %v1338, %v1339
    %v1341 = vsel %vm1213, %v1011, -inf
    %v1342 = vrot.slane %v1341, 4
    %v1343 = vmax.f32 %v1341, %v1342
    %v1344 = vrot.slane %v1343, 2
    %v1345 = vmax.f32 %v1343, %v1344
    %v1346 = vrot.slane %v1345, 1
    %v1347 = vmax.f32 %v1345, %v1346
    %v1348 = vsel %vm1221, %v1012, -inf
    %v1349 = vrot.slane %v1348, 4
    %v1350 = vmax.f32 %v1348, %v1349
    %v1351 = vrot.slane %v1350, 2
    %v1352 = vmax.f32 %v1350, %v1351
    %v1353 = vrot.slane %v1352, 1
    %v1354 = vmax.f32 %v1352, %v1353
    %v1355 = vsel %vm1213, %v1019, -inf
    %v1356 = vrot.slane %v1355, 4
    %v1357 = vmax.f32 %v1355, %v1356
    %v1358 = vrot.slane %v1357, 2
    %v1359 = vmax.f32 %v1357, %v1358
    %v1360 = vrot.slane %v1359, 1
    %v1361 = vmax.f32 %v1359, %v1360
    %v1362 = vsel %vm1221, %v1020, -inf
    %v1363 = vrot.slane %v1362, 4
    %v1364 = vmax.f32 %v1362, %v1363
    %v1365 = vrot.slane %v1364, 2
    %v1366 = vmax.f32 %v1364, %v1365
    %v1367 = vrot.slane %v1366, 1
    %v1368 = vmax.f32 %v1366, %v1367
    %v1369 = vsel %vm1213, %v1027, -inf
    %v1370 = vrot.slane %v1369, 4
    %v1371 = vmax.f32 %v1369, %v1370
    %v1372 = vrot.slane %v1371, 2
    %v1373 = vmax.f32 %v1371, %v1372
    %v1374 = vrot.slane %v1373, 1
    %v1375 = vmax.f32 %v1373, %v1374
    %v1376 = vsel %vm1221, %v1028, -inf
    %v1377 = vrot.slane %v1376, 4
    %v1378 = vmax.f32 %v1376, %v1377
    %v1379 = vrot.slane %v1378, 2
    %v1380 = vmax.f32 %v1378, %v1379
    %v1381 = vrot.slane %v1380, 1
    %v1382 = vmax.f32 %v1380, %v1381
    %v1383 = vsel %vm1213, %v1035, -inf
    %v1384 = vrot.slane %v1383, 4
    %v1385 = vmax.f32 %v1383, %v1384
    %v1386 = vrot.slane %v1385, 2
    %v1387 = vmax.f32 %v1385, %v1386
    %v1388 = vrot.slane %v1387, 1
    %v1389 = vmax.f32 %v1387, %v1388
    %v1390 = vsel %vm1221, %v1036, -inf
    %v1391 = vrot.slane %v1390, 4
    %v1392 = vmax.f32 %v1390, %v1391
    %v1393 = vrot.slane %v1392, 2
    %v1394 = vmax.f32 %v1392, %v1393
    %v1395 = vrot.slane %v1394, 1
    %v1396 = vmax.f32 %v1394, %v1395
    %v1397 = vsel %vm1213, %v1043, -inf
    %v1398 = vrot.slane %v1397, 4
    %v1399 = vmax.f32 %v1397, %v1398
    %v1400 = vrot.slane %v1399, 2
    %v1401 = vmax.f32 %v1399, %v1400
    %v1402 = vrot.slane %v1401, 1
    %v1403 = vmax.f32 %v1401, %v1402
    %v1404 = vsel %vm1221, %v1044, -inf
    %v1405 = vrot.slane %v1404, 4
    %v1406 = vmax.f32 %v1404, %v1405
    %v1407 = vrot.slane %v1406, 2
    %v1408 = vmax.f32 %v1406, %v1407
    %v1409 = vrot.slane %v1408, 1
    %v1410 = vmax.f32 %v1408, %v1409
    %v1411 = vsel %vm1213, %v1051, -inf
    %v1412 = vrot.slane %v1411, 4
    %v1413 = vmax.f32 %v1411, %v1412
    %v1414 = vrot.slane %v1413, 2
    %v1415 = vmax.f32 %v1413, %v1414
    %v1416 = vrot.slane %v1415, 1
    %v1417 = vmax.f32 %v1415, %v1416
    %v1418 = vsel %vm1221, %v1052, -inf
    %v1419 = vrot.slane %v1418, 4
    %v1420 = vmax.f32 %v1418, %v1419
    %v1421 = vrot.slane %v1420, 2
    %v1422 = vmax.f32 %v1420, %v1421
    %v1423 = vrot.slane %v1422, 1
    %v1424 = vmax.f32 %v1422, %v1423
    %v1425 = vsel %vm1213, %v1059, -inf
    %v1426 = vrot.slane %v1425, 4
    %v1427 = vmax.f32 %v1425, %v1426
    %v1428 = vrot.slane %v1427, 2
    %v1429 = vmax.f32 %v1427, %v1428
    %v1430 = vrot.slane %v1429, 1
    %v1431 = vmax.f32 %v1429, %v1430
    %v1432 = vsel %vm1221, %v1060, -inf
    %v1433 = vrot.slane %v1432, 4
    %v1434 = vmax.f32 %v1432, %v1433
    %v1435 = vrot.slane %v1434, 2
    %v1436 = vmax.f32 %v1434, %v1435
    %v1437 = vrot.slane %v1436, 1
    %v1438 = vmax.f32 %v1436, %v1437
    %v1439 = vsel %vm1213, %v1067, -inf
    %v1440 = vrot.slane %v1439, 4
    %v1441 = vmax.f32 %v1439, %v1440
    %v1442 = vrot.slane %v1441, 2
    %v1443 = vmax.f32 %v1441, %v1442
    %v1444 = vrot.slane %v1443, 1
    %v1445 = vmax.f32 %v1443, %v1444
    %v1446 = vsel %vm1221, %v1068, -inf
    %v1447 = vrot.slane %v1446, 4
    %v1448 = vmax.f32 %v1446, %v1447
    %v1449 = vrot.slane %v1448, 2
    %v1450 = vmax.f32 %v1448, %v1449
    %v1451 = vrot.slane %v1450, 1
    %v1452 = vmax.f32 %v1450, %v1451
    %v1453 = vsel %vm1213, %v1075, -inf
    %v1454 = vrot.slane %v1453, 4
    %v1455 = vmax.f32 %v1453, %v1454
    %v1456 = vrot.slane %v1455, 2
    %v1457 = vmax.f32 %v1455, %v1456
    %v1458 = vrot.slane %v1457, 1
    %v1459 = vmax.f32 %v1457, %v1458
    %v1460 = vsel %vm1221, %v1076, -inf
    %v1461 = vrot.slane %v1460, 4
    %v1462 = vmax.f32 %v1460, %v1461
    %v1463 = vrot.slane %v1462, 2
    %v1464 = vmax.f32 %v1462, %v1463
    %v1465 = vrot.slane %v1464, 1
    %v1466 = vmax.f32 %v1464, %v1465
    %v1467 = vsel %vm1213, %v1083, -inf
    %v1468 = vrot.slane %v1467, 4
    %v1469 = vmax.f32 %v1467, %v1468
    %v1470 = vrot.slane %v1469, 2
    %v1471 = vmax.f32 %v1469, %v1470
    %v1472 = vrot.slane %v1471, 1
    %v1473 = vmax.f32 %v1471, %v1472
    %v1474 = vsel %vm1221, %v1084, -inf
    %v1475 = vrot.slane %v1474, 4
    %v1476 = vmax.f32 %v1474, %v1475
    %v1477 = vrot.slane %v1476, 2
    %v1478 = vmax.f32 %v1476, %v1477
    %v1479 = vrot.slane %v1478, 1
    %v1480 = vmax.f32 %v1478, %v1479
    %v1481 = vsel %vm1213, %v1091, -inf
    %v1482 = vrot.slane %v1481, 4
    %v1483 = vmax.f32 %v1481, %v1482
    %v1484 = vrot.slane %v1483, 2
    %v1485 = vmax.f32 %v1483, %v1484
    %v1486 = vrot.slane %v1485, 1
    %v1487 = vmax.f32 %v1485, %v1486
    %v1488 = vsel %vm1221, %v1092, -inf
    %v1489 = vrot.slane %v1488, 4
    %v1490 = vmax.f32 %v1488, %v1489
    %v1491 = vrot.slane %v1490, 2
    %v1492 = vmax.f32 %v1490, %v1491
    %v1493 = vrot.slane %v1492, 1
    %v1494 = vmax.f32 %v1492, %v1493
    %v1495 = vsel %vm1213, %v1099, -inf
    %v1496 = vrot.slane %v1495, 4
    %v1497 = vmax.f32 %v1495, %v1496
    %v1498 = vrot.slane %v1497, 2
    %v1499 = vmax.f32 %v1497, %v1498
    %v1500 = vrot.slane %v1499, 1
    %v1501 = vmax.f32 %v1499, %v1500
    %v1502 = vsel %vm1221, %v1100, -inf
    %v1503 = vrot.slane %v1502, 4
    %v1504 = vmax.f32 %v1502, %v1503
    %v1505 = vrot.slane %v1504, 2
    %v1506 = vmax.f32 %v1504, %v1505
    %v1507 = vrot.slane %v1506, 1
    %v1508 = vmax.f32 %v1506, %v1507
    %v1509 = vsel %vm1213, %v1107, -inf
    %v1510 = vrot.slane %v1509, 4
    %v1511 = vmax.f32 %v1509, %v1510
    %v1512 = vrot.slane %v1511, 2
    %v1513 = vmax.f32 %v1511, %v1512
    %v1514 = vrot.slane %v1513, 1
    %v1515 = vmax.f32 %v1513, %v1514
    %v1516 = vsel %vm1221, %v1108, -inf
    %v1517 = vrot.slane %v1516, 4
    %v1518 = vmax.f32 %v1516, %v1517
    %v1519 = vrot.slane %v1518, 2
    %v1520 = vmax.f32 %v1518, %v1519
    %v1521 = vrot.slane %v1520, 1
    %v1522 = vmax.f32 %v1520, %v1521
    %v1523 = vsel %vm1213, %v1115, -inf
    %v1524 = vrot.slane %v1523, 4
    %v1525 = vmax.f32 %v1523, %v1524
    %v1526 = vrot.slane %v1525, 2
    %v1527 = vmax.f32 %v1525, %v1526
    %v1528 = vrot.slane %v1527, 1
    %v1529 = vmax.f32 %v1527, %v1528
    %v1530 = vsel %vm1221, %v1116, -inf
    %v1531 = vrot.slane %v1530, 4
    %v1532 = vmax.f32 %v1530, %v1531
    %v1533 = vrot.slane %v1532, 2
    %v1534 = vmax.f32 %v1532, %v1533
    %v1535 = vrot.slane %v1534, 1
    %v1536 = vmax.f32 %v1534, %v1535
    %v1537 = vsel %vm1213, %v1123, -inf
    %v1538 = vrot.slane %v1537, 4
    %v1539 = vmax.f32 %v1537, %v1538
    %v1540 = vrot.slane %v1539, 2
    %v1541 = vmax.f32 %v1539, %v1540
    %v1542 = vrot.slane %v1541, 1
    %v1543 = vmax.f32 %v1541, %v1542
    %v1544 = vsel %vm1221, %v1124, -inf
    %v1545 = vrot.slane %v1544, 4
    %v1546 = vmax.f32 %v1544, %v1545
    %v1547 = vrot.slane %v1546, 2
    %v1548 = vmax.f32 %v1546, %v1547
    %v1549 = vrot.slane %v1548, 1
    %v1550 = vmax.f32 %v1548, %v1549
    %v1551 = vsel %vm1213, %v1131, -inf
    %v1552 = vrot.slane %v1551, 4
    %v1553 = vmax.f32 %v1551, %v1552
    %v1554 = vrot.slane %v1553, 2
    %v1555 = vmax.f32 %v1553, %v1554
    %v1556 = vrot.slane %v1555, 1
    %v1557 = vmax.f32 %v1555, %v1556
    %v1558 = vsel %vm1221, %v1132, -inf
    %v1559 = vrot.slane %v1558, 4
    %v1560 = vmax.f32 %v1558, %v1559
    %v1561 = vrot.slane %v1560, 2
    %v1562 = vmax.f32 %v1560, %v1561
    %v1563 = vrot.slane %v1562, 1
    %v1564 = vmax.f32 %v1562, %v1563
    %v1565 = vsel %vm1213, %v1139, -inf
    %v1566 = vrot.slane %v1565, 4
    %v1567 = vmax.f32 %v1565, %v1566
    %v1568 = vrot.slane %v1567, 2
    %v1569 = vmax.f32 %v1567, %v1568
    %v1570 = vrot.slane %v1569, 1
    %v1571 = vmax.f32 %v1569, %v1570
    %v1572 = vsel %vm1221, %v1140, -inf
    %v1573 = vrot.slane %v1572, 4
    %v1574 = vmax.f32 %v1572, %v1573
    %v1575 = vrot.slane %v1574, 2
    %v1576 = vmax.f32 %v1574, %v1575
    %v1577 = vrot.slane %v1576, 1
    %v1578 = vmax.f32 %v1576, %v1577
    %v1579 = vsel %vm1213, %v1147, -inf
    %v1580 = vrot.slane %v1579, 4
    %v1581 = vmax.f32 %v1579, %v1580
    %v1582 = vrot.slane %v1581, 2
    %v1583 = vmax.f32 %v1581, %v1582
    %v1584 = vrot.slane %v1583, 1
    %v1585 = vmax.f32 %v1583, %v1584
    %v1586 = vsel %vm1221, %v1148, -inf
    %v1587 = vrot.slane %v1586, 4
    %v1588 = vmax.f32 %v1586, %v1587
    %v1589 = vrot.slane %v1588, 2
    %v1590 = vmax.f32 %v1588, %v1589
    %v1591 = vrot.slane %v1590, 1
    %v1592 = vmax.f32 %v1590, %v1591
    %v1593 = vsel %vm1213, %v1155, -inf
    %v1594 = vrot.slane %v1593, 4
    %v1595 = vmax.f32 %v1593, %v1594
    %v1596 = vrot.slane %v1595, 2
    %v1597 = vmax.f32 %v1595, %v1596
    %v1598 = vrot.slane %v1597, 1
    %v1599 = vmax.f32 %v1597, %v1598
    %v1600 = vsel %vm1221, %v1156, -inf
    %v1601 = vrot.slane %v1600, 4
    %v1602 = vmax.f32 %v1600, %v1601
    %v1603 = vrot.slane %v1602, 2
    %v1604 = vmax.f32 %v1602, %v1603
    %v1605 = vrot.slane %v1604, 1
    %v1606 = vmax.f32 %v1604, %v1605
    %v1607 = vld [vmem:[#allocation5] sm:$0x3]
    %v1609 = vlaneseq
    %v1610 = vshrl.u32 %v1609, 7
    %v1611 = vsub.s32 0, %v1610
    %v1612 = vrot.slane %v1607, %v1611
    %v1613 = vlaneseq
    %v1614 = vshrl.u32 %v1613, 7
    %v1615 = vsub.s32 1, %v1614
    %v1616 = vrot.slane %v1607, %v1615
    %v1619 = vadd.f32 %v1220, %v1612
    %v1620 = vadd.f32 %v1228, %v1616
    %v1621 = vadd.f32 %v1235, %v1612
    %v1622 = vadd.f32 %v1242, %v1616
    %v1623 = vadd.f32 %v1249, %v1612
    %v1624 = vadd.f32 %v1256, %v1616
    %v1625 = vadd.f32 %v1263, %v1612
    %v1626 = vadd.f32 %v1270, %v1616
    %v1627 = vadd.f32 %v1277, %v1612
    %v1628 = vadd.f32 %v1284, %v1616
    %v1629 = vadd.f32 %v1291, %v1612
    %v1630 = vadd.f32 %v1298, %v1616
    %v1631 = vadd.f32 %v1305, %v1612
    %v1632 = vadd.f32 %v1312, %v1616
    %v1633 = vadd.f32 %v1319, %v1612
    %v1634 = vadd.f32 %v1326, %v1616
    %v1635 = vadd.f32 %v1333, %v1612
    %v1636 = vadd.f32 %v1340, %v1616
    %v1637 = vadd.f32 %v1347, %v1612
    %v1638 = vadd.f32 %v1354, %v1616
    %v1639 = vadd.f32 %v1361, %v1612
    %v1640 = vadd.f32 %v1368, %v1616
    %v1641 = vadd.f32 %v1375, %v1612
    %v1642 = vadd.f32 %v1382, %v1616
    %v1643 = vadd.f32 %v1389, %v1612
    %v1644 = vadd.f32 %v1396, %v1616
    %v1645 = vadd.f32 %v1403, %v1612
    %v1646 = vadd.f32 %v1410, %v1616
    %v1647 = vadd.f32 %v1417, %v1612
    %v1648 = vadd.f32 %v1424, %v1616
    %v1649 = vadd.f32 %v1431, %v1612
    %v1650 = vadd.f32 %v1438, %v1616
    %v1651 = vadd.f32 %v1445, %v1612
    %v1652 = vadd.f32 %v1452, %v1616
    %v1653 = vadd.f32 %v1459, %v1612
    %v1654 = vadd.f32 %v1466, %v1616
    %v1655 = vadd.f32 %v1473, %v1612
    %v1656 = vadd.f32 %v1480, %v1616
    %v1657 = vadd.f32 %v1487, %v1612
    %v1658 = vadd.f32 %v1494, %v1616
    %v1659 = vadd.f32 %v1501, %v1612
    %v1660 = vadd.f32 %v1508, %v1616
    %v1661 = vadd.f32 %v1515, %v1612
    %v1662 = vadd.f32 %v1522, %v1616
    %v1663 = vadd.f32 %v1529, %v1612
    %v1664 = vadd.f32 %v1536, %v1616
    %v1665 = vadd.f32 %v1543, %v1612
    %v1666 = vadd.f32 %v1550, %v1616
    %v1667 = vadd.f32 %v1557, %v1612
    %v1668 = vadd.f32 %v1564, %v1616
    %v1669 = vadd.f32 %v1571, %v1612
    %v1670 = vadd.f32 %v1578, %v1616
    %v1671 = vadd.f32 %v1585, %v1612
    %v1672 = vadd.f32 %v1592, %v1616
    %v1673 = vadd.f32 %v1599, %v1612
    %v1674 = vadd.f32 %v1606, %v1616
    %v1675 = vmax.f32 %v1619, 0.0
    %v1676 = vmax.f32 %v1620, 0.0
    %v1677 = vmax.f32 %v1621, 0.0
    %v1678 = vmax.f32 %v1622, 0.0
    %v1679 = vmax.f32 %v1623, 0.0
    %v1680 = vmax.f32 %v1624, 0.0
    %v1681 = vmax.f32 %v1625, 0.0
    %v1682 = vmax.f32 %v1626, 0.0
    %v1683 = vmax.f32 %v1627, 0.0
    %v1684 = vmax.f32 %v1628, 0.0
    %v1685 = vmax.f32 %v1629, 0.0
    %v1686 = vmax.f32 %v1630, 0.0
    %v1687 = vmax.f32 %v1631, 0.0
    %v1688 = vmax.f32 %v1632, 0.0
    %v1689 = vmax.f32 %v1633, 0.0
    %v1690 = vmax.f32 %v1634, 0.0
    %v1691 = vmax.f32 %v1635, 0.0
    %v1692 = vmax.f32 %v1636, 0.0
    %v1693 = vmax.f32 %v1637, 0.0
    %v1694 = vmax.f32 %v1638, 0.0
    %v1695 = vmax.f32 %v1639, 0.0
    %v1696 = vmax.f32 %v1640, 0.0
    %v1697 = vmax.f32 %v1641, 0.0
    %v1698 = vmax.f32 %v1642, 0.0
    %v1699 = vmax.f32 %v1643, 0.0
    %v1700 = vmax.f32 %v1644, 0.0
    %v1701 = vmax.f32 %v1645, 0.0
    %v1702 = vmax.f32 %v1646, 0.0
    %v1703 = vmax.f32 %v1647, 0.0
    %v1704 = vmax.f32 %v1648, 0.0
    %v1705 = vmax.f32 %v1649, 0.0
    %v1706 = vmax.f32 %v1650, 0.0
    %v1707 = vmax.f32 %v1651, 0.0
    %v1708 = vmax.f32 %v1652, 0.0
    %v1709 = vmax.f32 %v1653, 0.0
    %v1710 = vmax.f32 %v1654, 0.0
    %v1711 = vmax.f32 %v1655, 0.0
    %v1712 = vmax.f32 %v1656, 0.0
    %v1713 = vmax.f32 %v1657, 0.0
    %v1714 = vmax.f32 %v1658, 0.0
    %v1715 = vmax.f32 %v1659, 0.0
    %v1716 = vmax.f32 %v1660, 0.0
    %v1717 = vmax.f32 %v1661, 0.0
    %v1718 = vmax.f32 %v1662, 0.0
    %v1719 = vmax.f32 %v1663, 0.0
    %v1720 = vmax.f32 %v1664, 0.0
    %v1721 = vmax.f32 %v1665, 0.0
    %v1722 = vmax.f32 %v1666, 0.0
    %v1723 = vmax.f32 %v1667, 0.0
    %v1724 = vmax.f32 %v1668, 0.0
    %v1725 = vmax.f32 %v1669, 0.0
    %v1726 = vmax.f32 %v1670, 0.0
    %v1727 = vmax.f32 %v1671, 0.0
    %v1728 = vmax.f32 %v1672, 0.0
    %v1729 = vmax.f32 %v1673, 0.0
    %v1730 = vmax.f32 %v1674, 0.0
    %v1731 = vpack.c.bf16 %v1675, %v1675
    %v1732 = vpack.c.bf16 %v1676, %v1676
    %v1733 = vpack.c.bf16 %v1677, %v1677
    %v1734 = vpack.c.bf16 %v1678, %v1678
    %v1735 = vpack.c.bf16 %v1679, %v1679
    %v1736 = vpack.c.bf16 %v1680, %v1680
    %v1737 = vpack.c.bf16 %v1681, %v1681
    %v1738 = vpack.c.bf16 %v1682, %v1682
    %v1739 = vpack.c.bf16 %v1683, %v1683
    %v1740 = vpack.c.bf16 %v1684, %v1684
    %v1741 = vpack.c.bf16 %v1685, %v1685
    %v1742 = vpack.c.bf16 %v1686, %v1686
    %v1743 = vpack.c.bf16 %v1687, %v1687
    %v1744 = vpack.c.bf16 %v1688, %v1688
    %v1745 = vpack.c.bf16 %v1689, %v1689
    %v1746 = vpack.c.bf16 %v1690, %v1690
    %v1747 = vpack.c.bf16 %v1691, %v1691
    %v1748 = vpack.c.bf16 %v1692, %v1692
    %v1749 = vpack.c.bf16 %v1693, %v1693
    %v1750 = vpack.c.bf16 %v1694, %v1694
    %v1751 = vpack.c.bf16 %v1695, %v1695
    %v1752 = vpack.c.bf16 %v1696, %v1696
    %v1753 = vpack.c.bf16 %v1697, %v1697
    %v1754 = vpack.c.bf16 %v1698, %v1698
    %v1755 = vpack.c.bf16 %v1699, %v1699
    %v1756 = vpack.c.bf16 %v1700, %v1700
    %v1757 = vpack.c.bf16 %v1701, %v1701
    %v1758 = vpack.c.bf16 %v1702, %v1702
    %v1759 = vpack.c.bf16 %v1703, %v1703
    %v1760 = vpack.c.bf16 %v1704, %v1704
    %v1761 = vpack.c.bf16 %v1705, %v1705
    %v1762 = vpack.c.bf16 %v1706, %v1706
    %v1763 = vpack.c.bf16 %v1707, %v1707
    %v1764 = vpack.c.bf16 %v1708, %v1708
    %v1765 = vpack.c.bf16 %v1709, %v1709
    %v1766 = vpack.c.bf16 %v1710, %v1710
    %v1767 = vpack.c.bf16 %v1711, %v1711
    %v1768 = vpack.c.bf16 %v1712, %v1712
    %v1769 = vpack.c.bf16 %v1713, %v1713
    %v1770 = vpack.c.bf16 %v1714, %v1714
    %v1771 = vpack.c.bf16 %v1715, %v1715
    %v1772 = vpack.c.bf16 %v1716, %v1716
    %v1773 = vpack.c.bf16 %v1717, %v1717
    %v1774 = vpack.c.bf16 %v1718, %v1718
    %v1775 = vpack.c.bf16 %v1719, %v1719
    %v1776 = vpack.c.bf16 %v1720, %v1720
    %v1777 = vpack.c.bf16 %v1721, %v1721
    %v1778 = vpack.c.bf16 %v1722, %v1722
    %v1779 = vpack.c.bf16 %v1723, %v1723
    %v1780 = vpack.c.bf16 %v1724, %v1724
    %v1781 = vpack.c.bf16 %v1725, %v1725
    %v1782 = vpack.c.bf16 %v1726, %v1726
    %v1783 = vpack.c.bf16 %v1727, %v1727
    %v1784 = vpack.c.bf16 %v1728, %v1728
    %v1785 = vpack.c.bf16 %v1729, %v1729
    %v1786 = vpack.c.bf16 %v1730, %v1730
    %v1843 = vunpack.c.l.b16 %v1731
    %v1844 = vunpack.c.l.b16 %v1732
    %v1845 = vunpack.c.l.b16 %v1733
    %v1846 = vunpack.c.l.b16 %v1734
    %v1847 = vunpack.c.l.b16 %v1735
    %v1848 = vunpack.c.l.b16 %v1736
    %v1849 = vunpack.c.l.b16 %v1737
    %v1850 = vunpack.c.l.b16 %v1738
    %v1851 = vunpack.c.l.b16 %v1739
    %v1852 = vunpack.c.l.b16 %v1740
    %v1853 = vunpack.c.l.b16 %v1741
    %v1854 = vunpack.c.l.b16 %v1742
    %v1855 = vunpack.c.l.b16 %v1743
    %v1856 = vunpack.c.l.b16 %v1744
    %v1857 = vunpack.c.l.b16 %v1745
    %v1858 = vunpack.c.l.b16 %v1746
    %v1859 = vunpack.c.l.b16 %v1747
    %v1860 = vunpack.c.l.b16 %v1748
    %v1861 = vunpack.c.l.b16 %v1749
    %v1862 = vunpack.c.l.b16 %v1750
    %v1863 = vunpack.c.l.b16 %v1751
    %v1864 = vunpack.c.l.b16 %v1752
    %v1865 = vunpack.c.l.b16 %v1753
    %v1866 = vunpack.c.l.b16 %v1754
    %v1867 = vunpack.c.l.b16 %v1755
    %v1868 = vunpack.c.l.b16 %v1756
    %v1869 = vunpack.c.l.b16 %v1757
    %v1870 = vunpack.c.l.b16 %v1758
    %v1871 = vunpack.c.l.b16 %v1759
    %v1872 = vunpack.c.l.b16 %v1760
    %v1873 = vunpack.c.l.b16 %v1761
    %v1874 = vunpack.c.l.b16 %v1762
    %v1875 = vunpack.c.l.b16 %v1763
    %v1876 = vunpack.c.l.b16 %v1764
    %v1877 = vunpack.c.l.b16 %v1765
    %v1878 = vunpack.c.l.b16 %v1766
    %v1879 = vunpack.c.l.b16 %v1767
    %v1880 = vunpack.c.l.b16 %v1768
    %v1881 = vunpack.c.l.b16 %v1769
    %v1882 = vunpack.c.l.b16 %v1770
    %v1883 = vunpack.c.l.b16 %v1771
    %v1884 = vunpack.c.l.b16 %v1772
    %v1885 = vunpack.c.l.b16 %v1773
    %v1886 = vunpack.c.l.b16 %v1774
    %v1887 = vunpack.c.l.b16 %v1775
    %v1888 = vunpack.c.l.b16 %v1776
    %v1889 = vunpack.c.l.b16 %v1777
    %v1890 = vunpack.c.l.b16 %v1778
    %v1891 = vunpack.c.l.b16 %v1779
    %v1892 = vunpack.c.l.b16 %v1780
    %v1893 = vunpack.c.l.b16 %v1781
    %v1894 = vunpack.c.l.b16 %v1782
    %v1895 = vunpack.c.l.b16 %v1783
    %v1896 = vunpack.c.l.b16 %v1784
    %v1897 = vunpack.c.l.b16 %v1785
    %v1898 = vunpack.c.l.b16 %v1786
    %v1899 = vrot.slane %v1843, 6
    %v1900 = vrot.slane %v1845, 5
    %vm1901 = vcmask 1043459
    %v1902 = vsel %vm1901, %v1900, %v1899
    %v1903 = vrot.slane %v1847, 4
    %vm1904 = vcmask 1044484
    %v1905 = vsel %vm1904, %v1903, %v1902
    %v1906 = vrot.slane %v1849, 3
    %vm1907 = vcmask 1045509
    %v1908 = vsel %vm1907, %v1906, %v1905
    %v1909 = vrot.slane %v1851, 2
    %vm1910 = vcmask 1046534
    %v1911 = vsel %vm1910, %v1909, %v1908
    %v1912 = vrot.slane %v1853, 1
    %vm1913 = vcmask 1047559
    %v1914 = vsel %vm1913, %v1912, %v1911
    %v1915 = vrot.slane %v1844, 6
    %v1916 = vrot.slane %v1846, 5
    %v1917 = vsel %vm1901, %v1916, %v1915
    %v1918 = vrot.slane %v1848, 4
    %v1919 = vsel %vm1904, %v1918, %v1917
    %v1920 = vrot.slane %v1850, 3
    %v1921 = vsel %vm1907, %v1920, %v1919
    %v1922 = vrot.slane %v1852, 2
    %v1923 = vsel %vm1910, %v1922, %v1921
    %v1924 = vrot.slane %v1854, 1
    %v1925 = vsel %vm1913, %v1924, %v1923
    %v1926 = vrot.slane %v1857, 7
    %vm1927 = vcmask 1041409
    %v1928 = vsel %vm1927, %v1926, %v1855
    %v1929 = vrot.slane %v1859, 6
    %vm1930 = vcmask 1042434
    %v1931 = vsel %vm1930, %v1929, %v1928
    %v1932 = vrot.slane %v1861, 5
    %v1933 = vsel %vm1901, %v1932, %v1931
    %v1934 = vrot.slane %v1863, 4
    %v1935 = vsel %vm1904, %v1934, %v1933
    %v1936 = vrot.slane %v1865, 3
    %v1937 = vsel %vm1907, %v1936, %v1935
    %v1938 = vrot.slane %v1867, 2
    %v1939 = vsel %vm1910, %v1938, %v1937
    %v1940 = vrot.slane %v1869, 1
    %v1941 = vsel %vm1913, %v1940, %v1939
    %v1942 = vrot.slane %v1858, 7
    %v1943 = vsel %vm1927, %v1942, %v1856
    %v1944 = vrot.slane %v1860, 6
    %v1945 = vsel %vm1930, %v1944, %v1943
    %v1946 = vrot.slane %v1862, 5
    %v1947 = vsel %vm1901, %v1946, %v1945
    %v1948 = vrot.slane %v1864, 4
    %v1949 = vsel %vm1904, %v1948, %v1947
    %v1950 = vrot.slane %v1866, 3
    %v1951 = vsel %vm1907, %v1950, %v1949
    %v1952 = vrot.slane %v1868, 2
    %v1953 = vsel %vm1910, %v1952, %v1951
    %v1954 = vrot.slane %v1870, 1
    %v1955 = vsel %vm1913, %v1954, %v1953
    %v1956 = vrot.slane %v1871, 6
    %v1957 = vrot.slane %v1873, 5
    %v1958 = vsel %vm1901, %v1957, %v1956
    %v1959 = vrot.slane %v1875, 4
    %v1960 = vsel %vm1904, %v1959, %v1958
    %v1961 = vrot.slane %v1877, 3
    %v1962 = vsel %vm1907, %v1961, %v1960
    %v1963 = vrot.slane %v1879, 2
    %v1964 = vsel %vm1910, %v1963, %v1962
    %v1965 = vrot.slane %v1881, 1
    %v1966 = vsel %vm1913, %v1965, %v1964
    %v1967 = vrot.slane %v1872, 6
    %v1968 = vrot.slane %v1874, 5
    %v1969 = vsel %vm1901, %v1968, %v1967
    %v1970 = vrot.slane %v1876, 4
    %v1971 = vsel %vm1904, %v1970, %v1969
    %v1972 = vrot.slane %v1878, 3
    %v1973 = vsel %vm1907, %v1972, %v1971
    %v1974 = vrot.slane %v1880, 2
    %v1975 = vsel %vm1910, %v1974, %v1973
    %v1976 = vrot.slane %v1882, 1
    %v1977 = vsel %vm1913, %v1976, %v1975
    %v1978 = vrot.slane %v1885, 7
    %v1979 = vsel %vm1927, %v1978, %v1883
    %v1980 = vrot.slane %v1887, 6
    %v1981 = vsel %vm1930, %v1980, %v1979
    %v1982 = vrot.slane %v1889, 5
    %v1983 = vsel %vm1901, %v1982, %v1981
    %v1984 = vrot.slane %v1891, 4
    %v1985 = vsel %vm1904, %v1984, %v1983
    %v1986 = vrot.slane %v1893, 3
    %v1987 = vsel %vm1907, %v1986, %v1985
    %v1988 = vrot.slane %v1895, 2
    %v1989 = vsel %vm1910, %v1988, %v1987
    %v1990 = vrot.slane %v1897, 1
    %v1991 = vsel %vm1913, %v1990, %v1989
    %v1992 = vrot.slane %v1886, 7
    %v1993 = vsel %vm1927, %v1992, %v1884
    %v1994 = vrot.slane %v1888, 6
    %v1995 = vsel %vm1930, %v1994, %v1993
    %v1996 = vrot.slane %v1890, 5
    %v1997 = vsel %vm1901, %v1996, %v1995
    %v1998 = vrot.slane %v1892, 4
    %v1999 = vsel %vm1904, %v1998, %v1997
    %v2000 = vrot.slane %v1894, 3
    %v2001 = vsel %vm1907, %v2000, %v1999
    %v2002 = vrot.slane %v1896, 2
    %v2003 = vsel %vm1910, %v2002, %v2001
    %v2004 = vrot.slane %v1898, 1
    %v2005 = vsel %vm1913, %v2004, %v2003
    %v2006 = vpack.c.b16 %v1941, %v1914
    %v2007 = vpack.c.b16 %v1955, %v1925
    %v2008 = vpack.c.b16 %v1991, %v1966
    %v2009 = vpack.c.b16 %v2005, %v1977
    %vm2010 = vcmask 1040384
    %v2013 = vsel %vm2010, 0, %v2006
    %v2015 = vsel %vm2010, 0, %v2007
    %v2017 = vsel %vm2010, 0, %v2008
    %v2019 = vsel %vm2010, 0, %v2009
    %v2024 = vcombine.low %v2013, %v2015
    %v2025 = vcombine.high %v2013, %v2015
    %v2027 = vunpack.c.l.s4 1966171168
    %v2028 = vunpack.c.0.s8 %v2027
    %v2029 = vlaneseq
    %v2030 = vshrl.u32 %v2029, 7
    %v2031 = vsub.s32 %v2028, %v2030
    %v2032 = vrot.slane %v2024, %v2031
    %v2034 = vunpack.c.l.s4 1966171168
    %v2035 = vunpack.c.0.s8 %v2034
    %v2036 = vlaneseq
    %v2037 = vshrl.u32 %v2036, 7
    %v2038 = vsub.s32 %v2035, %v2037
    %v2039 = vrot.slane %v2025, %v2038
    %v2040 = vcombine.high %v2032, %v2032
    %v2041 = vcombine.high %v2039, %v2039
    %v2043 = vunpack.c.l.s4 1966171168
    %v2044 = vunpack.c.0.s8 %v2043
    %v2045 = vlaneseq
    %v2046 = vshrl.u32 %v2045, 7
    %v2047 = vsub.s32 %v2044, %v2046
    %v2048 = vrot.slane %v2032, %v2047
    %v2050 = vunpack.c.l.s4 1966171168
    %v2051 = vunpack.c.0.s8 %v2050
    %v2052 = vlaneseq
    %v2053 = vshrl.u32 %v2052, 7
    %v2054 = vsub.s32 %v2051, %v2053
    %v2055 = vrot.slane %v2039, %v2054
    %v2057 = vunpack.c.l.s4 1966171168
    %v2058 = vunpack.c.0.s8 %v2057
    %v2059 = vlaneseq
    %v2060 = vshrl.u32 %v2059, 7
    %v2061 = vsub.s32 %v2058, %v2060
    %v2062 = vrot.slane %v2040, %v2061
    %v2064 = vunpack.c.l.s4 1966171168
    %v2065 = vunpack.c.0.s8 %v2064
    %v2066 = vlaneseq
    %v2067 = vshrl.u32 %v2066, 7
    %v2068 = vsub.s32 %v2065, %v2067
    %v2069 = vrot.slane %v2041, %v2068
    %v2070 = vcombine.high %v2048, %v2048
    %v2071 = vcombine.high %v2055, %v2055
    %v2072 = vcombine.high %v2062, %v2062
    %v2073 = vcombine.low %v2017, %v2019
    %v2074 = vcombine.high %v2017, %v2019
    %v2076 = vunpack.c.l.s4 1966171168
    %v2077 = vunpack.c.0.s8 %v2076
    %v2078 = vlaneseq
    %v2079 = vshrl.u32 %v2078, 7
    %v2080 = vsub.s32 %v2077, %v2079
    %v2081 = vrot.slane %v2073, %v2080
    %v2083 = vunpack.c.l.s4 1966171168
    %v2084 = vunpack.c.0.s8 %v2083
    %v2085 = vlaneseq
    %v2086 = vshrl.u32 %v2085, 7
    %v2087 = vsub.s32 %v2084, %v2086
    %v2088 = vrot.slane %v2074, %v2087
    %v2089 = vcombine.high %v2081, %v2081
    %v2090 = vcombine.high %v2088, %v2088
    %v2092 = vunpack.c.l.s4 1966171168
    %v2093 = vunpack.c.0.s8 %v2092
    %v2094 = vlaneseq
    %v2095 = vshrl.u32 %v2094, 7
    %v2096 = vsub.s32 %v2093, %v2095
    %v2097 = vrot.slane %v2081, %v2096
    %v2099 = vunpack.c.l.s4 1966171168
    %v2100 = vunpack.c.0.s8 %v2099
    %v2101 = vlaneseq
    %v2102 = vshrl.u32 %v2101, 7
    %v2103 = vsub.s32 %v2100, %v2102
    %v2104 = vrot.slane %v2088, %v2103
    %v2106 = vunpack.c.l.s4 1966171168
    %v2107 = vunpack.c.0.s8 %v2106
    %v2108 = vlaneseq
    %v2109 = vshrl.u32 %v2108, 7
    %v2110 = vsub.s32 %v2107, %v2109
    %v2111 = vrot.slane %v2089, %v2110
    %v2113 = vunpack.c.l.s4 1966171168
    %v2114 = vunpack.c.0.s8 %v2113
    %v2115 = vlaneseq
    %v2116 = vshrl.u32 %v2115, 7
    %v2117 = vsub.s32 %v2114, %v2116
    %v2118 = vrot.slane %v2090, %v2117
    %v2119 = vcombine.high %v2097, %v2097
    %v2120 = vcombine.high %v2104, %v2104
    %v2121 = vcombine.high %v2111, %v2111
    %v2122 = vld [vmem:[#allocation7] sm:$0xff]
    %v2123 = vld [vmem:[#allocation7 + $0x8] sm:$0xff]
    %v2124 = vld [vmem:[#allocation7 + $0x10] sm:$0xff]
    %v2125 = vld [vmem:[#allocation7 + $0x18] sm:$0xff]
    %v2126 = vld [vmem:[#allocation7 + $0x20] sm:$0xff]
    %v2127 = vld [vmem:[#allocation7 + $0x28] sm:$0xff]
    %v2128 = vld [vmem:[#allocation7 + $0x30] sm:$0xff]
    %v2129 = vld [vmem:[#allocation7 + $0x38] sm:$0xff]
    %v2130 = vld [vmem:[#allocation7 + $0x40] sm:$0xff]
    %v2131 = vld [vmem:[#allocation7 + $0x48] sm:$0xff]
    %v2132 = vld [vmem:[#allocation7 + $0x50] sm:$0xff]
    %v2133 = vld [vmem:[#allocation7 + $0x58] sm:$0xff]
    %v2134 = vld [vmem:[#allocation7 + $0x60] sm:$0xff]
    %v2135 = vld [vmem:[#allocation7 + $0x68] sm:$0xff]
    %v2136 = vld [vmem:[#allocation7 + $0x70] sm:$0xff]
    %v2137 = vld [vmem:[#allocation7 + $0x78] sm:$0xff]
    %v2138 = vld [vmem:[#allocation7 + $0x80] sm:$0xff]
    %v2139 = vld [vmem:[#allocation7 + $0x88] sm:$0xff]
    %v2140 = vld [vmem:[#allocation7 + $0x90] sm:$0xff]
    %v2141 = vld [vmem:[#allocation7 + $0x98] sm:$0xff]
    %v2142 = vld [vmem:[#allocation7 + $0xa0] sm:$0xff]
    %v2143 = vld [vmem:[#allocation7 + $0xa8] sm:$0xff]
    %v2144 = vld [vmem:[#allocation7 + $0xb0] sm:$0xff]
    %v2145 = vld [vmem:[#allocation7 + $0xb8] sm:$0xff]
    %v2146 = vld [vmem:[#allocation7 + $0xc0] sm:$0xff]
    %v2147 = vld [vmem:[#allocation7 + $0xc8] sm:$0xff]
    %v2148 = vld [vmem:[#allocation7 + $0xd0] sm:$0xff]
    %v2149 = vld [vmem:[#allocation7 + $0xd8] sm:$0xff]
    %s2150 = scalar_lea.vmem [#allocation7], 1120
    %v2151 = vld [vmem:[%s2150] sm:$0xff]
    %v2152 = vld [vmem:[%s2150 + $0x8] sm:$0xff]
    %v2153 = vld [vmem:[%s2150 + $0x10] sm:$0xff]
    %v2154 = vld [vmem:[%s2150 + $0x18] sm:$0xff]
    %v2155 = vld [vmem:[%s2150 + $0x20] sm:$0xff]
    %v2156 = vld [vmem:[%s2150 + $0x28] sm:$0xff]
    %v2157 = vld [vmem:[%s2150 + $0x30] sm:$0xff]
    %v2158 = vld [vmem:[%s2150 + $0x38] sm:$0xff]
    %v2159 = vld [vmem:[%s2150 + $0x40] sm:$0xff]
    %v2160 = vld [vmem:[%s2150 + $0x48] sm:$0xff]
    %v2161 = vld [vmem:[%s2150 + $0x50] sm:$0xff]
    %v2162 = vld [vmem:[%s2150 + $0x58] sm:$0xff]
    %v2163 = vld [vmem:[%s2150 + $0x60] sm:$0xff]
    %v2164 = vld [vmem:[%s2150 + $0x68] sm:$0xff]
    %v2165 = vld [vmem:[%s2150 + $0x70] sm:$0xff]
    %v2166 = vld [vmem:[%s2150 + $0x78] sm:$0xff]
    %v2167 = vld [vmem:[%s2150 + $0x80] sm:$0xff]
    %v2168 = vld [vmem:[%s2150 + $0x88] sm:$0xff]
    %v2169 = vld [vmem:[%s2150 + $0x90] sm:$0xff]
    %v2170 = vld [vmem:[%s2150 + $0x98] sm:$0xff]
    %v2171 = vld [vmem:[%s2150 + $0xa0] sm:$0xff]
    %v2172 = vld [vmem:[%s2150 + $0xa8] sm:$0xff]
    %v2173 = vld [vmem:[%s2150 + $0xb0] sm:$0xff]
    %v2174 = vld [vmem:[%s2150 + $0xb8] sm:$0xff]
    %v2175 = vld [vmem:[%s2150 + $0xc0] sm:$0xff]
    %v2176 = vld [vmem:[%s2150 + $0xc8] sm:$0xff]
    %v2177 = vld [vmem:[%s2150 + $0xd0] sm:$0xff]
    %v2178 = vld [vmem:[%s2150 + $0xd8] sm:$0xff]
    %v2179 = vcombine.high %v2069, %v2069
    %v2180 = vcombine.high %v2118, %v2118
    %vm2181 = vsmask.f32 256
    %vm2182 = vsmask.f32 1284
    %vm2183 = vmor %vm2181, %vm2182
    %vm2184 = vsmask.f32 2312
    %vm2185 = vmor %vm2183, %vm2184
    %vm2186 = vsmask.f32 3340
    %vm2187 = vmor %vm2185, %vm2186
    %vm2188 = vsmask.f32 4368
    %vm2189 = vmor %vm2187, %vm2188
    %vm2190 = vsmask.f32 5396
    %vm2191 = vmor %vm2189, %vm2190
    %vm2192 = vsmask.f32 6424
    %vm2193 = vmor %vm2191, %vm2192
    %vm2194 = vsmask.f32 7452
    %vm2195 = vmor %vm2193, %vm2194
    %v2197 = vshrl.u32 %v2048, 16
    %v2199 = vrot.slane %v2197, 7
    %v2200 = vrot.slane %v2199, 1
    %v2202 = vshll.u32 %v2062, 16
    %v2204 = vsel %vm2195, %v2200, %v2202
    %v2205 = vshrl.u32 %v2062, 16
    %v2207 = vrot.slane %v2205, 7
    %v2208 = vrot.slane %v2207, 1
    %v2210 = vshll.u32 %v2070, 16
    %v2212 = vsel %vm2195, %v2208, %v2210
    %v2213 = vshrl.u32 %v2070, 16
    %v2215 = vrot.slane %v2213, 7
    %v2216 = vrot.slane %v2215, 1
    %v2218 = vshll.u32 %v2072, 16
    %v2220 = vsel %vm2195, %v2216, %v2218
    %v2221 = vshrl.u32 %v2072, 16
    %v2223 = vrot.slane %v2221, 7
    %v2224 = vrot.slane %v2223, 1
    %v2226 = vshll.u32 %v2055, 16
    %v2228 = vsel %vm2195, %v2224, %v2226
    %v2229 = vshrl.u32 %v2055, 16
    %v2231 = vrot.slane %v2229, 7
    %v2232 = vrot.slane %v2231, 1
    %v2234 = vshll.u32 %v2069, 16
    %v2236 = vsel %vm2195, %v2232, %v2234
    %v2237 = vshrl.u32 %v2069, 16
    %v2239 = vrot.slane %v2237, 7
    %v2240 = vrot.slane %v2239, 1
    %v2242 = vshll.u32 %v2071, 16
    %v2244 = vsel %vm2195, %v2240, %v2242
    %v2245 = vshrl.u32 %v2071, 16
    %v2247 = vrot.slane %v2245, 7
    %v2248 = vrot.slane %v2247, 1
    %v2250 = vshll.u32 %v2179, 16
    %v2252 = vsel %vm2195, %v2248, %v2250
    %v2254 = vshrl.u32 %v2097, 16
    %v2256 = vrot.slane %v2254, 7
    %v2257 = vrot.slane %v2256, 1
    %v2259 = vshll.u32 %v2111, 16
    %v2261 = vsel %vm2195, %v2257, %v2259
    %v2262 = vshrl.u32 %v2111, 16
    %v2264 = vrot.slane %v2262, 7
    %v2265 = vrot.slane %v2264, 1
    %v2267 = vshll.u32 %v2119, 16
    %v2269 = vsel %vm2195, %v2265, %v2267
    %v2270 = vshrl.u32 %v2119, 16
    %v2272 = vrot.slane %v2270, 7
    %v2273 = vrot.slane %v2272, 1
    %v2275 = vshll.u32 %v2121, 16
    %v2277 = vsel %vm2195, %v2273, %v2275
    %v2278 = vshrl.u32 %v2121, 16
    %v2280 = vrot.slane %v2278, 7
    %v2281 = vrot.slane %v2280, 1
    %v2283 = vshll.u32 %v2104, 16
    %v2285 = vsel %vm2195, %v2281, %v2283
    %v2286 = vshrl.u32 %v2104, 16
    %v2288 = vrot.slane %v2286, 7
    %v2289 = vrot.slane %v2288, 1
    %v2291 = vshll.u32 %v2118, 16
    %v2293 = vsel %vm2195, %v2289, %v2291
    %v2294 = vshrl.u32 %v2118, 16
    %v2296 = vrot.slane %v2294, 7
    %v2297 = vrot.slane %v2296, 1
    %v2299 = vshll.u32 %v2120, 16
    %v2301 = vsel %vm2195, %v2297, %v2299
    %v2302 = vshrl.u32 %v2120, 16
    %v2304 = vrot.slane %v2302, 7
    %v2305 = vrot.slane %v2304, 1
    %v2307 = vshll.u32 %v2180, 16
    %v2309 = vsel %vm2195, %v2305, %v2307
    %s2310 = scalar_lea.vmem [#allocation7], 224
    %v2311 = vld [vmem:[%s2310] sm:$0xff]
    %v2312 = vld [vmem:[%s2310 + $0x8] sm:$0xff]
    %v2313 = vld [vmem:[%s2310 + $0x10] sm:$0xff]
    %v2314 = vld [vmem:[%s2310 + $0x18] sm:$0xff]
    %v2315 = vld [vmem:[%s2310 + $0x20] sm:$0xff]
    %v2316 = vld [vmem:[%s2310 + $0x28] sm:$0xff]
    %v2317 = vld [vmem:[%s2310 + $0x30] sm:$0xff]
    %v2318 = vld [vmem:[%s2310 + $0x38] sm:$0xff]
    %v2319 = vld [vmem:[%s2310 + $0x40] sm:$0xff]
    %v2320 = vld [vmem:[%s2310 + $0x48] sm:$0xff]
    %v2321 = vld [vmem:[%s2310 + $0x50] sm:$0xff]
    %v2322 = vld [vmem:[%s2310 + $0x58] sm:$0xff]
    %v2323 = vld [vmem:[%s2310 + $0x60] sm:$0xff]
    %v2324 = vld [vmem:[%s2310 + $0x68] sm:$0xff]
    %v2325 = vld [vmem:[%s2310 + $0x70] sm:$0xff]
    %v2326 = vld [vmem:[%s2310 + $0x78] sm:$0xff]
    %v2327 = vld [vmem:[%s2310 + $0x80] sm:$0xff]
    %v2328 = vld [vmem:[%s2310 + $0x88] sm:$0xff]
    %v2329 = vld [vmem:[%s2310 + $0x90] sm:$0xff]
    %v2330 = vld [vmem:[%s2310 + $0x98] sm:$0xff]
    %v2331 = vld [vmem:[%s2310 + $0xa0] sm:$0xff]
    %v2332 = vld [vmem:[%s2310 + $0xa8] sm:$0xff]
    %v2333 = vld [vmem:[%s2310 + $0xb0] sm:$0xff]
    %v2334 = vld [vmem:[%s2310 + $0xb8] sm:$0xff]
    %v2335 = vld [vmem:[%s2310 + $0xc0] sm:$0xff]
    %v2336 = vld [vmem:[%s2310 + $0xc8] sm:$0xff]
    %v2337 = vld [vmem:[%s2310 + $0xd0] sm:$0xff]
    %v2338 = vld [vmem:[%s2310 + $0xd8] sm:$0xff]
    %v2339 = vcombine.low %v2204, %v2212
    %v2340 = vcombine.low %v2220, %v2228
    %v2341 = vcombine.low %v2236, %v2244
    %v2342 = vcombine.low %v2252, %v2261
    %v2344 = vunpack.c.l.s4 1966171168
    %v2345 = vunpack.c.0.s8 %v2344
    %v2346 = vlaneseq
    %v2347 = vshrl.u32 %v2346, 7
    %v2348 = vsub.s32 %v2345, %v2347
    %v2349 = vrot.slane %v2339, %v2348
    %v2351 = vunpack.c.l.s4 1966171168
    %v2352 = vunpack.c.0.s8 %v2351
    %v2353 = vlaneseq
    %v2354 = vshrl.u32 %v2353, 7
    %v2355 = vsub.s32 %v2352, %v2354
    %v2356 = vrot.slane %v2340, %v2355
    %v2358 = vunpack.c.l.s4 1966171168
    %v2359 = vunpack.c.0.s8 %v2358
    %v2360 = vlaneseq
    %v2361 = vshrl.u32 %v2360, 7
    %v2362 = vsub.s32 %v2359, %v2361
    %v2363 = vrot.slane %v2341, %v2362
    %v2365 = vunpack.c.l.s4 1966171168
    %v2366 = vunpack.c.0.s8 %v2365
    %v2367 = vlaneseq
    %v2368 = vshrl.u32 %v2367, 7
    %v2369 = vsub.s32 %v2366, %v2368
    %v2370 = vrot.slane %v2342, %v2369
    %v2371 = vcombine.low %v2349, %v2356
    %v2372 = vcombine.high %v2349, %v2356
    %v2373 = vcombine.low %v2363, %v2370
    %v2374 = vcombine.high %v2363, %v2370
    %v2376 = vunpack.c.l.s4 1966171168
    %v2377 = vunpack.c.0.s8 %v2376
    %v2378 = vlaneseq
    %v2379 = vshrl.u32 %v2378, 7
    %v2380 = vsub.s32 %v2377, %v2379
    %v2381 = vrot.slane %v2371, %v2380
    %v2383 = vunpack.c.l.s4 1966171168
    %v2384 = vunpack.c.0.s8 %v2383
    %v2385 = vlaneseq
    %v2386 = vshrl.u32 %v2385, 7
    %v2387 = vsub.s32 %v2384, %v2386
    %v2388 = vrot.slane %v2372, %v2387
    %v2390 = vunpack.c.l.s4 1966171168
    %v2391 = vunpack.c.0.s8 %v2390
    %v2392 = vlaneseq
    %v2393 = vshrl.u32 %v2392, 7
    %v2394 = vsub.s32 %v2391, %v2393
    %v2395 = vrot.slane %v2373, %v2394
    %v2397 = vunpack.c.l.s4 1966171168
    %v2398 = vunpack.c.0.s8 %v2397
    %v2399 = vlaneseq
    %v2400 = vshrl.u32 %v2399, 7
    %v2401 = vsub.s32 %v2398, %v2400
    %v2402 = vrot.slane %v2374, %v2401
    %v2403 = vcombine.low %v2381, %v2395
    %v2404 = vcombine.low %v2388, %v2402
    %v2405 = vcombine.low %v2269, %v2277
    %v2406 = vcombine.low %v2285, %v2293
    %v2407 = vcombine.low %v2301, %v2309
    %v2409 = vunpack.c.l.s4 1966171168
    %v2410 = vunpack.c.0.s8 %v2409
    %v2411 = vlaneseq
    %v2412 = vshrl.u32 %v2411, 7
    %v2413 = vsub.s32 %v2410, %v2412
    %v2414 = vrot.slane %v2405, %v2413
    %v2416 = vunpack.c.l.s4 1966171168
    %v2417 = vunpack.c.0.s8 %v2416
    %v2418 = vlaneseq
    %v2419 = vshrl.u32 %v2418, 7
    %v2420 = vsub.s32 %v2417, %v2419
    %v2421 = vrot.slane %v2406, %v2420
    %v2423 = vunpack.c.l.s4 1966171168
    %v2424 = vunpack.c.0.s8 %v2423
    %v2425 = vlaneseq
    %v2426 = vshrl.u32 %v2425, 7
    %v2427 = vsub.s32 %v2424, %v2426
    %v2428 = vrot.slane %v2407, %v2427
    %v2429 = vcombine.low %v2414, %v2421
    %v2430 = vcombine.high %v2414, %v2421
    %v2431 = vcombine.high %v2428, %v2428
    %v2433 = vunpack.c.l.s4 1966171168
    %v2434 = vunpack.c.0.s8 %v2433
    %v2435 = vlaneseq
    %v2436 = vshrl.u32 %v2435, 7
    %v2437 = vsub.s32 %v2434, %v2436
    %v2438 = vrot.slane %v2429, %v2437
    %v2440 = vunpack.c.l.s4 1966171168
    %v2441 = vunpack.c.0.s8 %v2440
    %v2442 = vlaneseq
    %v2443 = vshrl.u32 %v2442, 7
    %v2444 = vsub.s32 %v2441, %v2443
    %v2445 = vrot.slane %v2430, %v2444
    %v2447 = vunpack.c.l.s4 1966171168
    %v2448 = vunpack.c.0.s8 %v2447
    %v2449 = vlaneseq
    %v2450 = vshrl.u32 %v2449, 7
    %v2451 = vsub.s32 %v2448, %v2450
    %v2452 = vrot.slane %v2428, %v2451
    %v2454 = vunpack.c.l.s4 1966171168
    %v2455 = vunpack.c.0.s8 %v2454
    %v2456 = vlaneseq
    %v2457 = vshrl.u32 %v2456, 7
    %v2458 = vsub.s32 %v2455, %v2457
    %v2459 = vrot.slane %v2431, %v2458
    %v2460 = vcombine.low %v2438, %v2452
    %v2461 = vcombine.low %v2445, %v2459
    %v2492 = vunpack.c.l.b16 %v2311
    %v2493 = vunpack.c.h.b16 %v2311
    %v2494 = vunpack.c.l.b16 %v2312
    %v2495 = vunpack.c.h.b16 %v2312
    %v2496 = vunpack.c.l.b16 %v2313
    %v2497 = vunpack.c.h.b16 %v2313
    %v2498 = vunpack.c.l.b16 %v2314
    %v2499 = vunpack.c.h.b16 %v2314
    %v2500 = vunpack.c.l.b16 %v2315
    %v2501 = vunpack.c.h.b16 %v2315
    %v2502 = vunpack.c.l.b16 %v2316
    %v2503 = vunpack.c.h.b16 %v2316
    %v2504 = vunpack.c.l.b16 %v2317
    %v2505 = vunpack.c.h.b16 %v2317
    %v2506 = vunpack.c.l.b16 %v2318
    %v2507 = vunpack.c.h.b16 %v2318
    %v2508 = vunpack.c.l.b16 %v2319
    %v2509 = vunpack.c.h.b16 %v2319
    %v2510 = vunpack.c.l.b16 %v2320
    %v2511 = vunpack.c.h.b16 %v2320
    %v2512 = vunpack.c.l.b16 %v2321
    %v2513 = vunpack.c.h.b16 %v2321
    %v2514 = vunpack.c.l.b16 %v2322
    %v2515 = vunpack.c.h.b16 %v2322
    %v2516 = vunpack.c.l.b16 %v2323
    %v2517 = vunpack.c.h.b16 %v2323
    %v2518 = vunpack.c.l.b16 %v2324
    %v2519 = vunpack.c.h.b16 %v2324
    %v2520 = vunpack.c.l.b16 %v2325
    %v2521 = vunpack.c.h.b16 %v2325
    %v2522 = vunpack.c.l.b16 %v2326
    %v2523 = vunpack.c.h.b16 %v2326
    %v2524 = vunpack.c.l.b16 %v2327
    %v2525 = vunpack.c.h.b16 %v2327
    %v2526 = vunpack.c.l.b16 %v2328
    %v2527 = vunpack.c.h.b16 %v2328
    %v2528 = vunpack.c.l.b16 %v2329
    %v2529 = vunpack.c.h.b16 %v2329
    %v2530 = vunpack.c.l.b16 %v2330
    %v2531 = vunpack.c.h.b16 %v2330
    %v2532 = vunpack.c.l.b16 %v2331
    %v2533 = vunpack.c.h.b16 %v2331
    %v2534 = vunpack.c.l.b16 %v2332
    %v2535 = vunpack.c.h.b16 %v2332
    %v2536 = vunpack.c.l.b16 %v2333
    %v2537 = vunpack.c.h.b16 %v2333
    %v2538 = vunpack.c.l.b16 %v2334
    %v2539 = vunpack.c.h.b16 %v2334
    %v2540 = vunpack.c.l.b16 %v2335
    %v2541 = vunpack.c.h.b16 %v2335
    %v2542 = vunpack.c.l.b16 %v2336
    %v2543 = vunpack.c.h.b16 %v2336
    %v2544 = vunpack.c.l.b16 %v2337
    %v2545 = vunpack.c.h.b16 %v2337
    %v2546 = vunpack.c.l.b16 %v2338
    %v2547 = vunpack.c.h.b16 %v2338
    %v2548 = vpack.c.b16 %v2494, %v2492
    %v2549 = vpack.c.b16 %v2495, %v2493
    %v2550 = vpack.c.b16 %v2498, %v2496
    %v2551 = vpack.c.b16 %v2499, %v2497
    %v2552 = vpack.c.b16 %v2502, %v2500
    %v2553 = vpack.c.b16 %v2503, %v2501
    %v2554 = vpack.c.b16 %v2506, %v2504
    %v2555 = vpack.c.b16 %v2507, %v2505
    %v2556 = vpack.c.b16 %v2510, %v2508
    %v2557 = vpack.c.b16 %v2511, %v2509
    %v2558 = vpack.c.b16 %v2514, %v2512
    %v2559 = vpack.c.b16 %v2515, %v2513
    %v2560 = vpack.c.b16 %v2518, %v2516
    %v2561 = vpack.c.b16 %v2519, %v2517
    %v2562 = vpack.c.b16 %v2522, %v2520
    %v2563 = vpack.c.b16 %v2523, %v2521
    %v2564 = vpack.c.b16 %v2526, %v2524
    %v2565 = vpack.c.b16 %v2527, %v2525
    %v2566 = vpack.c.b16 %v2530, %v2528
    %v2567 = vpack.c.b16 %v2531, %v2529
    %v2568 = vpack.c.b16 %v2534, %v2532
    %v2569 = vpack.c.b16 %v2535, %v2533
    %v2570 = vpack.c.b16 %v2538, %v2536
    %v2571 = vpack.c.b16 %v2539, %v2537
    %v2572 = vpack.c.b16 %v2542, %v2540
    %v2573 = vpack.c.b16 %v2543, %v2541
    %v2574 = vpack.c.b16 %v2546, %v2544
    %v2575 = vpack.c.b16 %v2547, %v2545
    %v2605 = vsel %vm234, %v2404, 0
    %v2608 = vsel %vm234, %v2461, 0
    %2610 = vmatprep.subr.bf16.mxu0 %v2549
    %2611 = vmatpush1.bf16.msra.mxu0 %v2548
    %2612 = vmatprep.subr.bf16.mxu0 %v2551
    %2613 = vmatpush1.bf16.msra.mxu0 %v2550
    %2614 = vmatprep.subr.bf16.mxu0 %v2553
    %2615 = vmatpush1.bf16.msra.mxu0 %v2552
    %2616 = vmatprep.subr.bf16.mxu0 %v2555
    %2617 = vmatpush1.bf16.msra.mxu0 %v2554
    %2618 = vmatprep.subr.bf16.mxu0 %v2557
    %2619 = vmatpush1.bf16.msra.mxu0 %v2556
    %2620 = vmatprep.subr.bf16.mxu0 %v2559
    %2621 = vmatpush1.bf16.msra.mxu0 %v2558
    %2622 = vmatprep.subr.bf16.mxu0 %v2561
    %2623 = vmatpush1.bf16.msra.mxu0 %v2560
    %2624 = vmatprep.subr.bf16.mxu0 %v2563
    %2625 = vmatpush1.bf16.msra.mxu0 %v2562
    %2626 = vmatprep.subr.bf16.mxu0 %v2565
    %2627 = vmatpush1.bf16.msra.mxu0 %v2564
    %2628 = vmatprep.subr.bf16.mxu0 %v2567
    %2629 = vmatpush1.bf16.msra.mxu0 %v2566
    %2630 = vmatprep.subr.bf16.mxu0 %v2569
    %2631 = vmatpush1.bf16.msra.mxu0 %v2568
    %2632 = vmatprep.subr.bf16.mxu0 %v2571
    %2633 = vmatpush1.bf16.msra.mxu0 %v2570
    %2634 = vmatprep.subr.bf16.mxu0 %v2573
    %2635 = vmatpush1.bf16.msra.mxu0 %v2572
    %2636 = vmatprep.subr.bf16.mxu0 %v2575
    %2637 = vmatpush1.bf16.msra.mxu0 %v2574
    %2638 = vmatprep.subr.bf16.mxu0 0
    %2639 = vmatpush1.bf16.msra.mxu0 0
    %2640 = vmatprep.subr.bf16.mxu0 0
    %2641 = vmatpush1.bf16.msra.mxu0 0
    %2642 = vmatprep.mubr.bf16.mxu0 %v2605
    %2643 = vmatmul.mubr.bf16.gmra.mrb[0].mxu0 %v2403
    %v2644 = vpop.f32.mrb[0].mxu0
    %v2645 = vadd.f32 0.0, %v2644
    %v2646 = vpop.f32.mrb[0].mxu0
    %v2647 = vadd.f32 0.0, %v2646
    %v2648 = vpop.f32.mrb[0].mxu0
    %v2649 = vadd.f32 0.0, %v2648
    %v2650 = vpop.f32.mrb[0].mxu0
    %v2651 = vadd.f32 0.0, %v2650
    %2652 = vmatprep.mubr.bf16.mxu0 %v2608
    %2653 = vmatmul.mubr.bf16.gmra.mrb[0].mxu0 %v2460
    %v2654 = vpop.f32.mrb[0].mxu0
    %v2655 = vadd.f32 0.0, %v2654
    %v2656 = vpop.f32.mrb[0].mxu0
    %v2657 = vadd.f32 0.0, %v2656
    %v2658 = vpop.f32.mrb[0].mxu0
    %v2659 = vadd.f32 0.0, %v2658
    %v2660 = vpop.f32.mrb[0].mxu0
    %v2661 = vadd.f32 0.0, %v2660
    %2662 = vdwg.mxu0
    %v2663 = vcombine.low %v2048, %v2062
    %v2664 = vcombine.low %v2070, %v2072
    %v2665 = vcombine.low %v2055, %v2069
    %v2666 = vcombine.low %v2071, %v2097
    %v2668 = vunpack.c.l.s4 1966171168
    %v2669 = vunpack.c.0.s8 %v2668
    %v2670 = vlaneseq
    %v2671 = vshrl.u32 %v2670, 7
    %v2672 = vsub.s32 %v2669, %v2671
    %v2673 = vrot.slane %v2663, %v2672
    %v2675 = vunpack.c.l.s4 1966171168
    %v2676 = vunpack.c.0.s8 %v2675
    %v2677 = vlaneseq
    %v2678 = vshrl.u32 %v2677, 7
    %v2679 = vsub.s32 %v2676, %v2678
    %v2680 = vrot.slane %v2664, %v2679
    %v2682 = vunpack.c.l.s4 1966171168
    %v2683 = vunpack.c.0.s8 %v2682
    %v2684 = vlaneseq
    %v2685 = vshrl.u32 %v2684, 7
    %v2686 = vsub.s32 %v2683, %v2685
    %v2687 = vrot.slane %v2665, %v2686
    %v2689 = vunpack.c.l.s4 1966171168
    %v2690 = vunpack.c.0.s8 %v2689
    %v2691 = vlaneseq
    %v2692 = vshrl.u32 %v2691, 7
    %v2693 = vsub.s32 %v2690, %v2692
    %v2694 = vrot.slane %v2666, %v2693
    %v2695 = vcombine.low %v2673, %v2680
    %v2696 = vcombine.high %v2673, %v2680
    %v2697 = vcombine.low %v2687, %v2694
    %v2698 = vcombine.high %v2687, %v2694
    %v2700 = vunpack.c.l.s4 1966171168
    %v2701 = vunpack.c.0.s8 %v2700
    %v2702 = vlaneseq
    %v2703 = vshrl.u32 %v2702, 7
    %v2704 = vsub.s32 %v2701, %v2703
    %v2705 = vrot.slane %v2695, %v2704
    %v2707 = vunpack.c.l.s4 1966171168
    %v2708 = vunpack.c.0.s8 %v2707
    %v2709 = vlaneseq
    %v2710 = vshrl.u32 %v2709, 7
    %v2711 = vsub.s32 %v2708, %v2710
    %v2712 = vrot.slane %v2696, %v2711
    %v2714 = vunpack.c.l.s4 1966171168
    %v2715 = vunpack.c.0.s8 %v2714
    %v2716 = vlaneseq
    %v2717 = vshrl.u32 %v2716, 7
    %v2718 = vsub.s32 %v2715, %v2717
    %v2719 = vrot.slane %v2697, %v2718
    %v2721 = vunpack.c.l.s4 1966171168
    %v2722 = vunpack.c.0.s8 %v2721
    %v2723 = vlaneseq
    %v2724 = vshrl.u32 %v2723, 7
    %v2725 = vsub.s32 %v2722, %v2724
    %v2726 = vrot.slane %v2698, %v2725
    %v2727 = vcombine.low %v2705, %v2719
    %v2728 = vcombine.low %v2712, %v2726
    %v2729 = vcombine.low %v2111, %v2119
    %v2730 = vcombine.low %v2121, %v2104
    %v2731 = vcombine.low %v2118, %v2120
    %v2733 = vunpack.c.l.s4 1966171168
    %v2734 = vunpack.c.0.s8 %v2733
    %v2735 = vlaneseq
    %v2736 = vshrl.u32 %v2735, 7
    %v2737 = vsub.s32 %v2734, %v2736
    %v2738 = vrot.slane %v2729, %v2737
    %v2740 = vunpack.c.l.s4 1966171168
    %v2741 = vunpack.c.0.s8 %v2740
    %v2742 = vlaneseq
    %v2743 = vshrl.u32 %v2742, 7
    %v2744 = vsub.s32 %v2741, %v2743
    %v2745 = vrot.slane %v2730, %v2744
    %v2747 = vunpack.c.l.s4 1966171168
    %v2748 = vunpack.c.0.s8 %v2747
    %v2749 = vlaneseq
    %v2750 = vshrl.u32 %v2749, 7
    %v2751 = vsub.s32 %v2748, %v2750
    %v2752 = vrot.slane %v2731, %v2751
    %v2753 = vcombine.low %v2738, %v2745
    %v2754 = vcombine.high %v2738, %v2745
    %v2755 = vcombine.high %v2752, %v2752
    %v2757 = vunpack.c.l.s4 1966171168
    %v2758 = vunpack.c.0.s8 %v2757
    %v2759 = vlaneseq
    %v2760 = vshrl.u32 %v2759, 7
    %v2761 = vsub.s32 %v2758, %v2760
    %v2762 = vrot.slane %v2753, %v2761
    %v2764 = vunpack.c.l.s4 1966171168
    %v2765 = vunpack.c.0.s8 %v2764
    %v2766 = vlaneseq
    %v2767 = vshrl.u32 %v2766, 7
    %v2768 = vsub.s32 %v2765, %v2767
    %v2769 = vrot.slane %v2754, %v2768
    %v2771 = vunpack.c.l.s4 1966171168
    %v2772 = vunpack.c.0.s8 %v2771
    %v2773 = vlaneseq
    %v2774 = vshrl.u32 %v2773, 7
    %v2775 = vsub.s32 %v2772, %v2774
    %v2776 = vrot.slane %v2752, %v2775
    %v2778 = vunpack.c.l.s4 1966171168
    %v2779 = vunpack.c.0.s8 %v2778
    %v2780 = vlaneseq
    %v2781 = vshrl.u32 %v2780, 7
    %v2782 = vsub.s32 %v2779, %v2781
    %v2783 = vrot.slane %v2755, %v2782
    %v2784 = vcombine.low %v2762, %v2776
    %v2785 = vcombine.low %v2769, %v2783
    %v2816 = vunpack.c.l.b16 %v2122
    %v2817 = vunpack.c.h.b16 %v2122
    %v2818 = vunpack.c.l.b16 %v2123
    %v2819 = vunpack.c.h.b16 %v2123
    %v2820 = vunpack.c.l.b16 %v2124
    %v2821 = vunpack.c.h.b16 %v2124
    %v2822 = vunpack.c.l.b16 %v2125
    %v2823 = vunpack.c.h.b16 %v2125
    %v2824 = vunpack.c.l.b16 %v2126
    %v2825 = vunpack.c.h.b16 %v2126
    %v2826 = vunpack.c.l.b16 %v2127
    %v2827 = vunpack.c.h.b16 %v2127
    %v2828 = vunpack.c.l.b16 %v2128
    %v2829 = vunpack.c.h.b16 %v2128
    %v2830 = vunpack.c.l.b16 %v2129
    %v2831 = vunpack.c.h.b16 %v2129
    %v2832 = vunpack.c.l.b16 %v2130
    %v2833 = vunpack.c.h.b16 %v2130
    %v2834 = vunpack.c.l.b16 %v2131
    %v2835 = vunpack.c.h.b16 %v2131
    %v2836 = vunpack.c.l.b16 %v2132
    %v2837 = vunpack.c.h.b16 %v2132
    %v2838 = vunpack.c.l.b16 %v2133
    %v2839 = vunpack.c.h.b16 %v2133
    %v2840 = vunpack.c.l.b16 %v2134
    %v2841 = vunpack.c.h.b16 %v2134
    %v2842 = vunpack.c.l.b16 %v2135
    %v2843 = vunpack.c.h.b16 %v2135
    %v2844 = vunpack.c.l.b16 %v2136
    %v2845 = vunpack.c.h.b16 %v2136
    %v2846 = vunpack.c.l.b16 %v2137
    %v2847 = vunpack.c.h.b16 %v2137
    %v2848 = vunpack.c.l.b16 %v2138
    %v2849 = vunpack.c.h.b16 %v2138
    %v2850 = vunpack.c.l.b16 %v2139
    %v2851 = vunpack.c.h.b16 %v2139
    %v2852 = vunpack.c.l.b16 %v2140
    %v2853 = vunpack.c.h.b16 %v2140
    %v2854 = vunpack.c.l.b16 %v2141
    %v2855 = vunpack.c.h.b16 %v2141
    %v2856 = vunpack.c.l.b16 %v2142
    %v2857 = vunpack.c.h.b16 %v2142
    %v2858 = vunpack.c.l.b16 %v2143
    %v2859 = vunpack.c.h.b16 %v2143
    %v2860 = vunpack.c.l.b16 %v2144
    %v2861 = vunpack.c.h.b16 %v2144
    %v2862 = vunpack.c.l.b16 %v2145
    %v2863 = vunpack.c.h.b16 %v2145
    %v2864 = vunpack.c.l.b16 %v2146
    %v2865 = vunpack.c.h.b16 %v2146
    %v2866 = vunpack.c.l.b16 %v2147
    %v2867 = vunpack.c.h.b16 %v2147
    %v2868 = vunpack.c.l.b16 %v2148
    %v2869 = vunpack.c.h.b16 %v2148
    %v2870 = vunpack.c.l.b16 %v2149
    %v2871 = vunpack.c.h.b16 %v2149
    %v2872 = vpack.c.b16 %v2818, %v2816
    %v2873 = vpack.c.b16 %v2819, %v2817
    %v2874 = vpack.c.b16 %v2822, %v2820
    %v2875 = vpack.c.b16 %v2823, %v2821
    %v2876 = vpack.c.b16 %v2826, %v2824
    %v2877 = vpack.c.b16 %v2827, %v2825
    %v2878 = vpack.c.b16 %v2830, %v2828
    %v2879 = vpack.c.b16 %v2831, %v2829
    %v2880 = vpack.c.b16 %v2834, %v2832
    %v2881 = vpack.c.b16 %v2835, %v2833
    %v2882 = vpack.c.b16 %v2838, %v2836
    %v2883 = vpack.c.b16 %v2839, %v2837
    %v2884 = vpack.c.b16 %v2842, %v2840
    %v2885 = vpack.c.b16 %v2843, %v2841
    %v2886 = vpack.c.b16 %v2846, %v2844
    %v2887 = vpack.c.b16 %v2847, %v2845
    %v2888 = vpack.c.b16 %v2850, %v2848
    %v2889 = vpack.c.b16 %v2851, %v2849
    %v2890 = vpack.c.b16 %v2854, %v2852
    %v2891 = vpack.c.b16 %v2855, %v2853
    %v2892 = vpack.c.b16 %v2858, %v2856
    %v2893 = vpack.c.b16 %v2859, %v2857
    %v2894 = vpack.c.b16 %v2862, %v2860
    %v2895 = vpack.c.b16 %v2863, %v2861
    %v2896 = vpack.c.b16 %v2866, %v2864
    %v2897 = vpack.c.b16 %v2867, %v2865
    %v2898 = vpack.c.b16 %v2870, %v2868
    %v2899 = vpack.c.b16 %v2871, %v2869
    %v2929 = vsel %vm234, %v2728, 0
    %v2932 = vsel %vm234, %v2785, 0
    %2934 = vmatprep.subr.bf16.mxu0 %v2873
    %2935 = vmatpush1.bf16.msra.mxu0 %v2872
    %2936 = vmatprep.subr.bf16.mxu0 %v2875
    %2937 = vmatpush1.bf16.msra.mxu0 %v2874
    %2938 = vmatprep.subr.bf16.mxu0 %v2877
    %2939 = vmatpush1.bf16.msra.mxu0 %v2876
    %2940 = vmatprep.subr.bf16.mxu0 %v2879
    %2941 = vmatpush1.bf16.msra.mxu0 %v2878
    %2942 = vmatprep.subr.bf16.mxu0 %v2881
    %2943 = vmatpush1.bf16.msra.mxu0 %v2880
    %2944 = vmatprep.subr.bf16.mxu0 %v2883
    %2945 = vmatpush1.bf16.msra.mxu0 %v2882
    %2946 = vmatprep.subr.bf16.mxu0 %v2885
    %2947 = vmatpush1.bf16.msra.mxu0 %v2884
    %2948 = vmatprep.subr.bf16.mxu0 %v2887
    %2949 = vmatpush1.bf16.msra.mxu0 %v2886
    %2950 = vmatprep.subr.bf16.mxu0 %v2889
    %2951 = vmatpush1.bf16.msra.mxu0 %v2888
    %2952 = vmatprep.subr.bf16.mxu0 %v2891
    %2953 = vmatpush1.bf16.msra.mxu0 %v2890
    %2954 = vmatprep.subr.bf16.mxu0 %v2893
    %2955 = vmatpush1.bf16.msra.mxu0 %v2892
    %2956 = vmatprep.subr.bf16.mxu0 %v2895
    %2957 = vmatpush1.bf16.msra.mxu0 %v2894
    %2958 = vmatprep.subr.bf16.mxu0 %v2897
    %2959 = vmatpush1.bf16.msra.mxu0 %v2896
    %2960 = vmatprep.subr.bf16.mxu0 %v2899
    %2961 = vmatpush1.bf16.msra.mxu0 %v2898
    %2962 = vmatprep.subr.bf16.mxu0 0
    %2963 = vmatpush1.bf16.msra.mxu0 0
    %2964 = vmatprep.subr.bf16.mxu0 0
    %2965 = vmatpush1.bf16.msra.mxu0 0
    %2966 = vmatprep.mubr.bf16.mxu0 %v2929
    %2967 = vmatmul.mubr.bf16.gmra.mrb[0].mxu0 %v2727
    %v2968 = vpop.f32.mrb[0].mxu0
    %v2969 = vadd.f32 %v2645, %v2968
    %v2970 = vpop.f32.mrb[0].mxu0
    %v2971 = vadd.f32 %v2647, %v2970
    %v2972 = vpop.f32.mrb[0].mxu0
    %v2973 = vadd.f32 %v2649, %v2972
    %v2974 = vpop.f32.mrb[0].mxu0
    %v2975 = vadd.f32 %v2651, %v2974
    %2976 = vmatprep.mubr.bf16.mxu0 %v2932
    %2977 = vmatmul.mubr.bf16.gmra.mrb[0].mxu0 %v2784
    %v2978 = vpop.f32.mrb[0].mxu0
    %v2979 = vadd.f32 %v2655, %v2978
    %v2980 = vpop.f32.mrb[0].mxu0
    %v2981 = vadd.f32 %v2657, %v2980
    %v2982 = vpop.f32.mrb[0].mxu0
    %v2983 = vadd.f32 %v2659, %v2982
    %v2984 = vpop.f32.mrb[0].mxu0
    %v2985 = vadd.f32 %v2661, %v2984
    %2986 = vdwg.mxu0
    %s2987 = scalar_lea.vmem [#allocation7], 1344
    %v2988 = vld [vmem:[%s2987] sm:$0xff]
    %v2989 = vld [vmem:[%s2987 + $0x8] sm:$0xff]
    %v2990 = vld [vmem:[%s2987 + $0x10] sm:$0xff]
    %v2991 = vld [vmem:[%s2987 + $0x18] sm:$0xff]
    %v2992 = vld [vmem:[%s2987 + $0x20] sm:$0xff]
    %v2993 = vld [vmem:[%s2987 + $0x28] sm:$0xff]
    %v2994 = vld [vmem:[%s2987 + $0x30] sm:$0xff]
    %v2995 = vld [vmem:[%s2987 + $0x38] sm:$0xff]
    %v2996 = vld [vmem:[%s2987 + $0x40] sm:$0xff]
    %v2997 = vld [vmem:[%s2987 + $0x48] sm:$0xff]
    %v2998 = vld [vmem:[%s2987 + $0x50] sm:$0xff]
    %v2999 = vld [vmem:[%s2987 + $0x58] sm:$0xff]
    %v3000 = vld [vmem:[%s2987 + $0x60] sm:$0xff]
    %v3001 = vld [vmem:[%s2987 + $0x68] sm:$0xff]
    %v3002 = vld [vmem:[%s2987 + $0x70] sm:$0xff]
    %v3003 = vld [vmem:[%s2987 + $0x78] sm:$0xff]
    %v3004 = vld [vmem:[%s2987 + $0x80] sm:$0xff]
    %v3005 = vld [vmem:[%s2987 + $0x88] sm:$0xff]
    %v3006 = vld [vmem:[%s2987 + $0x90] sm:$0xff]
    %v3007 = vld [vmem:[%s2987 + $0x98] sm:$0xff]
    %v3008 = vld [vmem:[%s2987 + $0xa0] sm:$0xff]
    %v3009 = vld [vmem:[%s2987 + $0xa8] sm:$0xff]
    %v3010 = vld [vmem:[%s2987 + $0xb0] sm:$0xff]
    %v3011 = vld [vmem:[%s2987 + $0xb8] sm:$0xff]
    %v3012 = vld [vmem:[%s2987 + $0xc0] sm:$0xff]
    %v3013 = vld [vmem:[%s2987 + $0xc8] sm:$0xff]
    %v3014 = vld [vmem:[%s2987 + $0xd0] sm:$0xff]
    %v3015 = vld [vmem:[%s2987 + $0xd8] sm:$0xff]
    %v3044 = vunpack.c.l.b16 %v2988
    %v3045 = vunpack.c.h.b16 %v2988
    %v3046 = vunpack.c.l.b16 %v2989
    %v3047 = vunpack.c.h.b16 %v2989
    %v3048 = vunpack.c.l.b16 %v2990
    %v3049 = vunpack.c.h.b16 %v2990
    %v3050 = vunpack.c.l.b16 %v2991
    %v3051 = vunpack.c.h.b16 %v2991
    %v3052 = vunpack.c.l.b16 %v2992
    %v3053 = vunpack.c.h.b16 %v2992
    %v3054 = vunpack.c.l.b16 %v2993
    %v3055 = vunpack.c.h.b16 %v2993
    %v3056 = vunpack.c.l.b16 %v2994
    %v3057 = vunpack.c.h.b16 %v2994
    %v3058 = vunpack.c.l.b16 %v2995
    %v3059 = vunpack.c.h.b16 %v2995
    %v3060 = vunpack.c.l.b16 %v2996
    %v3061 = vunpack.c.h.b16 %v2996
    %v3062 = vunpack.c.l.b16 %v2997
    %v3063 = vunpack.c.h.b16 %v2997
    %v3064 = vunpack.c.l.b16 %v2998
    %v3065 = vunpack.c.h.b16 %v2998
    %v3066 = vunpack.c.l.b16 %v2999
    %v3067 = vunpack.c.h.b16 %v2999
    %v3068 = vunpack.c.l.b16 %v3000
    %v3069 = vunpack.c.h.b16 %v3000
    %v3070 = vunpack.c.l.b16 %v3001
    %v3071 = vunpack.c.h.b16 %v3001
    %v3072 = vunpack.c.l.b16 %v3002
    %v3073 = vunpack.c.h.b16 %v3002
    %v3074 = vunpack.c.l.b16 %v3003
    %v3075 = vunpack.c.h.b16 %v3003
    %v3076 = vunpack.c.l.b16 %v3004
    %v3077 = vunpack.c.h.b16 %v3004
    %v3078 = vunpack.c.l.b16 %v3005
    %v3079 = vunpack.c.h.b16 %v3005
    %v3080 = vunpack.c.l.b16 %v3006
    %v3081 = vunpack.c.h.b16 %v3006
    %v3082 = vunpack.c.l.b16 %v3007
    %v3083 = vunpack.c.h.b16 %v3007
    %v3084 = vunpack.c.l.b16 %v3008
    %v3085 = vunpack.c.h.b16 %v3008
    %v3086 = vunpack.c.l.b16 %v3009
    %v3087 = vunpack.c.h.b16 %v3009
    %v3088 = vunpack.c.l.b16 %v3010
    %v3089 = vunpack.c.h.b16 %v3010
    %v3090 = vunpack.c.l.b16 %v3011
    %v3091 = vunpack.c.h.b16 %v3011
    %v3092 = vunpack.c.l.b16 %v3012
    %v3093 = vunpack.c.h.b16 %v3012
    %v3094 = vunpack.c.l.b16 %v3013
    %v3095 = vunpack.c.h.b16 %v3013
    %v3096 = vunpack.c.l.b16 %v3014
    %v3097 = vunpack.c.h.b16 %v3014
    %v3098 = vunpack.c.l.b16 %v3015
    %v3099 = vunpack.c.h.b16 %v3015
    %v3100 = vpack.c.b16 %v3046, %v3044
    %v3101 = vpack.c.b16 %v3047, %v3045
    %v3102 = vpack.c.b16 %v3050, %v3048
    %v3103 = vpack.c.b16 %v3051, %v3049
    %v3104 = vpack.c.b16 %v3054, %v3052
    %v3105 = vpack.c.b16 %v3055, %v3053
    %v3106 = vpack.c.b16 %v3058, %v3056
    %v3107 = vpack.c.b16 %v3059, %v3057
    %v3108 = vpack.c.b16 %v3062, %v3060
    %v3109 = vpack.c.b16 %v3063, %v3061
    %v3110 = vpack.c.b16 %v3066, %v3064
    %v3111 = vpack.c.b16 %v3067, %v3065
    %v3112 = vpack.c.b16 %v3070, %v3068
    %v3113 = vpack.c.b16 %v3071, %v3069
    %v3114 = vpack.c.b16 %v3074, %v3072
    %v3115 = vpack.c.b16 %v3075, %v3073
    %v3116 = vpack.c.b16 %v3078, %v3076
    %v3117 = vpack.c.b16 %v3079, %v3077
    %v3118 = vpack.c.b16 %v3082, %v3080
    %v3119 = vpack.c.b16 %v3083, %v3081
    %v3120 = vpack.c.b16 %v3086, %v3084
    %v3121 = vpack.c.b16 %v3087, %v3085
    %v3122 = vpack.c.b16 %v3090, %v3088
    %v3123 = vpack.c.b16 %v3091, %v3089
    %v3124 = vpack.c.b16 %v3094, %v3092
    %v3125 = vpack.c.b16 %v3095, %v3093
    %v3126 = vpack.c.b16 %v3098, %v3096
    %v3127 = vpack.c.b16 %v3099, %v3097
    %3156 = vmatprep.subr.bf16.mxu0 %v3101
    %3157 = vmatpush1.bf16.msra.mxu0 %v3100
    %3158 = vmatprep.subr.bf16.mxu0 %v3103
    %3159 = vmatpush1.bf16.msra.mxu0 %v3102
    %3160 = vmatprep.subr.bf16.mxu0 %v3105
    %3161 = vmatpush1.bf16.msra.mxu0 %v3104
    %3162 = vmatprep.subr.bf16.mxu0 %v3107
    %3163 = vmatpush1.bf16.msra.mxu0 %v3106
    %3164 = vmatprep.subr.bf16.mxu0 %v3109
    %3165 = vmatpush1.bf16.msra.mxu0 %v3108
    %3166 = vmatprep.subr.bf16.mxu0 %v3111
    %3167 = vmatpush1.bf16.msra.mxu0 %v3110
    %3168 = vmatprep.subr.bf16.mxu0 %v3113
    %3169 = vmatpush1.bf16.msra.mxu0 %v3112
    %3170 = vmatprep.subr.bf16.mxu0 %v3115
    %3171 = vmatpush1.bf16.msra.mxu0 %v3114
    %3172 = vmatprep.subr.bf16.mxu0 %v3117
    %3173 = vmatpush1.bf16.msra.mxu0 %v3116
    %3174 = vmatprep.subr.bf16.mxu0 %v3119
    %3175 = vmatpush1.bf16.msra.mxu0 %v3118
    %3176 = vmatprep.subr.bf16.mxu0 %v3121
    %3177 = vmatpush1.bf16.msra.mxu0 %v3120
    %3178 = vmatprep.subr.bf16.mxu0 %v3123
    %3179 = vmatpush1.bf16.msra.mxu0 %v3122
    %3180 = vmatprep.subr.bf16.mxu0 %v3125
    %3181 = vmatpush1.bf16.msra.mxu0 %v3124
    %3182 = vmatprep.subr.bf16.mxu0 %v3127
    %3183 = vmatpush1.bf16.msra.mxu0 %v3126
    %3184 = vmatprep.subr.bf16.mxu0 0
    %3185 = vmatpush1.bf16.msra.mxu0 0
    %3186 = vmatprep.subr.bf16.mxu0 0
    %3187 = vmatpush1.bf16.msra.mxu0 0
    %3188 = vmatprep.mubr.bf16.mxu0 %v2605
    %3189 = vmatmul.mubr.bf16.gmra.mrb[0].mxu0 %v2403
    %v3190 = vpop.f32.mrb[0].mxu0
    %v3191 = vadd.f32 0.0, %v3190
    %v3192 = vpop.f32.mrb[0].mxu0
    %v3193 = vadd.f32 0.0, %v3192
    %v3194 = vpop.f32.mrb[0].mxu0
    %v3195 = vadd.f32 0.0, %v3194
    %v3196 = vpop.f32.mrb[0].mxu0
    %v3197 = vadd.f32 0.0, %v3196
    %3198 = vmatprep.mubr.bf16.mxu0 %v2608
    %3199 = vmatmul.mubr.bf16.gmra.mrb[0].mxu0 %v2460
    %v3200 = vpop.f32.mrb[0].mxu0
    %v3201 = vadd.f32 0.0, %v3200
    %v3202 = vpop.f32.mrb[0].mxu0
    %v3203 = vadd.f32 0.0, %v3202
    %v3204 = vpop.f32.mrb[0].mxu0
    %v3205 = vadd.f32 0.0, %v3204
    %v3206 = vpop.f32.mrb[0].mxu0
    %v3207 = vadd.f32 0.0, %v3206
    %3208 = vdwg.mxu0
    %v3237 = vunpack.c.l.b16 %v2151
    %v3238 = vunpack.c.h.b16 %v2151
    %v3239 = vunpack.c.l.b16 %v2152
    %v3240 = vunpack.c.h.b16 %v2152
    %v3241 = vunpack.c.l.b16 %v2153
    %v3242 = vunpack.c.h.b16 %v2153
    %v3243 = vunpack.c.l.b16 %v2154
    %v3244 = vunpack.c.h.b16 %v2154
    %v3245 = vunpack.c.l.b16 %v2155
    %v3246 = vunpack.c.h.b16 %v2155
    %v3247 = vunpack.c.l.b16 %v2156
    %v3248 = vunpack.c.h.b16 %v2156
    %v3249 = vunpack.c.l.b16 %v2157
    %v3250 = vunpack.c.h.b16 %v2157
    %v3251 = vunpack.c.l.b16 %v2158
    %v3252 = vunpack.c.h.b16 %v2158
    %v3253 = vunpack.c.l.b16 %v2159
    %v3254 = vunpack.c.h.b16 %v2159
    %v3255 = vunpack.c.l.b16 %v2160
    %v3256 = vunpack.c.h.b16 %v2160
    %v3257 = vunpack.c.l.b16 %v2161
    %v3258 = vunpack.c.h.b16 %v2161
    %v3259 = vunpack.c.l.b16 %v2162
    %v3260 = vunpack.c.h.b16 %v2162
    %v3261 = vunpack.c.l.b16 %v2163
    %v3262 = vunpack.c.h.b16 %v2163
    %v3263 = vunpack.c.l.b16 %v2164
    %v3264 = vunpack.c.h.b16 %v2164
    %v3265 = vunpack.c.l.b16 %v2165
    %v3266 = vunpack.c.h.b16 %v2165
    %v3267 = vunpack.c.l.b16 %v2166
    %v3268 = vunpack.c.h.b16 %v2166
    %v3269 = vunpack.c.l.b16 %v2167
    %v3270 = vunpack.c.h.b16 %v2167
    %v3271 = vunpack.c.l.b16 %v2168
    %v3272 = vunpack.c.h.b16 %v2168
    %v3273 = vunpack.c.l.b16 %v2169
    %v3274 = vunpack.c.h.b16 %v2169
    %v3275 = vunpack.c.l.b16 %v2170
    %v3276 = vunpack.c.h.b16 %v2170
    %v3277 = vunpack.c.l.b16 %v2171
    %v3278 = vunpack.c.h.b16 %v2171
    %v3279 = vunpack.c.l.b16 %v2172
    %v3280 = vunpack.c.h.b16 %v2172
    %v3281 = vunpack.c.l.b16 %v2173
    %v3282 = vunpack.c.h.b16 %v2173
    %v3283 = vunpack.c.l.b16 %v2174
    %v3284 = vunpack.c.h.b16 %v2174
    %v3285 = vunpack.c.l.b16 %v2175
    %v3286 = vunpack.c.h.b16 %v2175
    %v3287 = vunpack.c.l.b16 %v2176
    %v3288 = vunpack.c.h.b16 %v2176
    %v3289 = vunpack.c.l.b16 %v2177
    %v3290 = vunpack.c.h.b16 %v2177
    %v3291 = vunpack.c.l.b16 %v2178
    %v3292 = vunpack.c.h.b16 %v2178
    %v3293 = vpack.c.b16 %v3239, %v3237
    %v3294 = vpack.c.b16 %v3240, %v3238
    %v3295 = vpack.c.b16 %v3243, %v3241
    %v3296 = vpack.c.b16 %v3244, %v3242
    %v3297 = vpack.c.b16 %v3247, %v3245
    %v3298 = vpack.c.b16 %v3248, %v3246
    %v3299 = vpack.c.b16 %v3251, %v3249
    %v3300 = vpack.c.b16 %v3252, %v3250
    %v3301 = vpack.c.b16 %v3255, %v3253
    %v3302 = vpack.c.b16 %v3256, %v3254
    %v3303 = vpack.c.b16 %v3259, %v3257
    %v3304 = vpack.c.b16 %v3260, %v3258
    %v3305 = vpack.c.b16 %v3263, %v3261
    %v3306 = vpack.c.b16 %v3264, %v3262
    %v3307 = vpack.c.b16 %v3267, %v3265
    %v3308 = vpack.c.b16 %v3268, %v3266
    %v3309 = vpack.c.b16 %v3271, %v3269
    %v3310 = vpack.c.b16 %v3272, %v3270
    %v3311 = vpack.c.b16 %v3275, %v3273
    %v3312 = vpack.c.b16 %v3276, %v3274
    %v3313 = vpack.c.b16 %v3279, %v3277
    %v3314 = vpack.c.b16 %v3280, %v3278
    %v3315 = vpack.c.b16 %v3283, %v3281
    %v3316 = vpack.c.b16 %v3284, %v3282
    %v3317 = vpack.c.b16 %v3287, %v3285
    %v3318 = vpack.c.b16 %v3288, %v3286
    %v3319 = vpack.c.b16 %v3291, %v3289
    %v3320 = vpack.c.b16 %v3292, %v3290
    %3349 = vmatprep.subr.bf16.mxu0 %v3294
    %3350 = vmatpush1.bf16.msra.mxu0 %v3293
    %3351 = vmatprep.subr.bf16.mxu0 %v3296
    %3352 = vmatpush1.bf16.msra.mxu0 %v3295
    %3353 = vmatprep.subr.bf16.mxu0 %v3298
    %3354 = vmatpush1.bf16.msra.mxu0 %v3297
    %3355 = vmatprep.subr.bf16.mxu0 %v3300
    %3356 = vmatpush1.bf16.msra.mxu0 %v3299
    %3357 = vmatprep.subr.bf16.mxu0 %v3302
    %3358 = vmatpush1.bf16.msra.mxu0 %v3301
    %3359 = vmatprep.subr.bf16.mxu0 %v3304
    %3360 = vmatpush1.bf16.msra.mxu0 %v3303
    %3361 = vmatprep.subr.bf16.mxu0 %v3306
    %3362 = vmatpush1.bf16.msra.mxu0 %v3305
    %3363 = vmatprep.subr.bf16.mxu0 %v3308
    %3364 = vmatpush1.bf16.msra.mxu0 %v3307
    %3365 = vmatprep.subr.bf16.mxu0 %v3310
    %3366 = vmatpush1.bf16.msra.mxu0 %v3309
    %3367 = vmatprep.subr.bf16.mxu0 %v3312
    %3368 = vmatpush1.bf16.msra.mxu0 %v3311
    %3369 = vmatprep.subr.bf16.mxu0 %v3314
    %3370 = vmatpush1.bf16.msra.mxu0 %v3313
    %3371 = vmatprep.subr.bf16.mxu0 %v3316
    %3372 = vmatpush1.bf16.msra.mxu0 %v3315
    %3373 = vmatprep.subr.bf16.mxu0 %v3318
    %3374 = vmatpush1.bf16.msra.mxu0 %v3317
    %3375 = vmatprep.subr.bf16.mxu0 %v3320
    %3376 = vmatpush1.bf16.msra.mxu0 %v3319
    %3377 = vmatprep.subr.bf16.mxu0 0
    %3378 = vmatpush1.bf16.msra.mxu0 0
    %3379 = vmatprep.subr.bf16.mxu0 0
    %3380 = vmatpush1.bf16.msra.mxu0 0
    %3381 = vmatprep.mubr.bf16.mxu0 %v2929
    %3382 = vmatmul.mubr.bf16.gmra.mrb[0].mxu0 %v2727
    %v3383 = vpop.f32.mrb[0].mxu0
    %v3384 = vadd.f32 %v3191, %v3383
    %v3385 = vpop.f32.mrb[0].mxu0
    %v3386 = vadd.f32 %v3193, %v3385
    %v3387 = vpop.f32.mrb[0].mxu0
    %v3388 = vadd.f32 %v3195, %v3387
    %v3389 = vpop.f32.mrb[0].mxu0
    %v3390 = vadd.f32 %v3197, %v3389
    %3391 = vmatprep.mubr.bf16.mxu0 %v2932
    %3392 = vmatmul.mubr.bf16.gmra.mrb[0].mxu0 %v2784
    %v3393 = vpop.f32.mrb[0].mxu0
    %v3394 = vadd.f32 %v3201, %v3393
    %v3395 = vpop.f32.mrb[0].mxu0
    %v3396 = vadd.f32 %v3203, %v3395
    %v3397 = vpop.f32.mrb[0].mxu0
    %v3398 = vadd.f32 %v3205, %v3397
    %v3399 = vpop.f32.mrb[0].mxu0
    %v3400 = vadd.f32 %v3207, %v3399
    %3401 = vdwg.mxu0
    %s3402 = scalar_lea.vmem [#allocation7], 448
    %v3403 = vld [vmem:[%s3402] sm:$0xff]
    %v3404 = vld [vmem:[%s3402 + $0x8] sm:$0xff]
    %v3405 = vld [vmem:[%s3402 + $0x10] sm:$0xff]
    %v3406 = vld [vmem:[%s3402 + $0x18] sm:$0xff]
    %v3407 = vld [vmem:[%s3402 + $0x20] sm:$0xff]
    %v3408 = vld [vmem:[%s3402 + $0x28] sm:$0xff]
    %v3409 = vld [vmem:[%s3402 + $0x30] sm:$0xff]
    %v3410 = vld [vmem:[%s3402 + $0x38] sm:$0xff]
    %v3411 = vld [vmem:[%s3402 + $0x40] sm:$0xff]
    %v3412 = vld [vmem:[%s3402 + $0x48] sm:$0xff]
    %v3413 = vld [vmem:[%s3402 + $0x50] sm:$0xff]
    %v3414 = vld [vmem:[%s3402 + $0x58] sm:$0xff]
    %v3415 = vld [vmem:[%s3402 + $0x60] sm:$0xff]
    %v3416 = vld [vmem:[%s3402 + $0x68] sm:$0xff]
    %v3417 = vld [vmem:[%s3402 + $0x70] sm:$0xff]
    %v3418 = vld [vmem:[%s3402 + $0x78] sm:$0xff]
    %v3419 = vld [vmem:[%s3402 + $0x80] sm:$0xff]
    %v3420 = vld [vmem:[%s3402 + $0x88] sm:$0xff]
    %v3421 = vld [vmem:[%s3402 + $0x90] sm:$0xff]
    %v3422 = vld [vmem:[%s3402 + $0x98] sm:$0xff]
    %v3423 = vld [vmem:[%s3402 + $0xa0] sm:$0xff]
    %v3424 = vld [vmem:[%s3402 + $0xa8] sm:$0xff]
    %v3425 = vld [vmem:[%s3402 + $0xb0] sm:$0xff]
    %v3426 = vld [vmem:[%s3402 + $0xb8] sm:$0xff]
    %v3427 = vld [vmem:[%s3402 + $0xc0] sm:$0xff]
    %v3428 = vld [vmem:[%s3402 + $0xc8] sm:$0xff]
    %v3429 = vld [vmem:[%s3402 + $0xd0] sm:$0xff]
    %v3430 = vld [vmem:[%s3402 + $0xd8] sm:$0xff]
    %v3431 = vcombine.low %v2062, %v2070
    %v3432 = vcombine.low %v2072, %v2055
    %v3433 = vcombine.low %v2069, %v2071
    %v3434 = vcombine.low %v2179, %v2111
    %v3436 = vunpack.c.l.s4 1966171168
    %v3437 = vunpack.c.0.s8 %v3436
    %v3438 = vlaneseq
    %v3439 = vshrl.u32 %v3438, 7
    %v3440 = vsub.s32 %v3437, %v3439
    %v3441 = vrot.slane %v3431, %v3440
    %v3443 = vunpack.c.l.s4 1966171168
    %v3444 = vunpack.c.0.s8 %v3443
    %v3445 = vlaneseq
    %v3446 = vshrl.u32 %v3445, 7
    %v3447 = vsub.s32 %v3444, %v3446
    %v3448 = vrot.slane %v3432, %v3447
    %v3450 = vunpack.c.l.s4 1966171168
    %v3451 = vunpack.c.0.s8 %v3450
    %v3452 = vlaneseq
    %v3453 = vshrl.u32 %v3452, 7
    %v3454 = vsub.s32 %v3451, %v3453
    %v3455 = vrot.slane %v3433, %v3454
    %v3457 = vunpack.c.l.s4 1966171168
    %v3458 = vunpack.c.0.s8 %v3457
    %v3459 = vlaneseq
    %v3460 = vshrl.u32 %v3459, 7
    %v3461 = vsub.s32 %v3458, %v3460
    %v3462 = vrot.slane %v3434, %v3461
    %v3463 = vcombine.low %v3441, %v3448
    %v3464 = vcombine.high %v3441, %v3448
    %v3465 = vcombine.low %v3455, %v3462
    %v3466 = vcombine.high %v3455, %v3462
    %v3468 = vunpack.c.l.s4 1966171168
    %v3469 = vunpack.c.0.s8 %v3468
    %v3470 = vlaneseq
    %v3471 = vshrl.u32 %v3470, 7
    %v3472 = vsub.s32 %v3469, %v3471
    %v3473 = vrot.slane %v3463, %v3472
    %v3475 = vunpack.c.l.s4 1966171168
    %v3476 = vunpack.c.0.s8 %v3475
    %v3477 = vlaneseq
    %v3478 = vshrl.u32 %v3477, 7
    %v3479 = vsub.s32 %v3476, %v3478
    %v3480 = vrot.slane %v3464, %v3479
    %v3482 = vunpack.c.l.s4 1966171168
    %v3483 = vunpack.c.0.s8 %v3482
    %v3484 = vlaneseq
    %v3485 = vshrl.u32 %v3484, 7
    %v3486 = vsub.s32 %v3483, %v3485
    %v3487 = vrot.slane %v3465, %v3486
    %v3489 = vunpack.c.l.s4 1966171168
    %v3490 = vunpack.c.0.s8 %v3489
    %v3491 = vlaneseq
    %v3492 = vshrl.u32 %v3491, 7
    %v3493 = vsub.s32 %v3490, %v3492
    %v3494 = vrot.slane %v3466, %v3493
    %v3495 = vcombine.low %v3473, %v3487
    %v3496 = vcombine.low %v3480, %v3494
    %v3497 = vcombine.low %v2119, %v2121
    %v3498 = vcombine.low %v2104, %v2118
    %v3499 = vcombine.low %v2120, %v2180
    %v3501 = vunpack.c.l.s4 1966171168
    %v3502 = vunpack.c.0.s8 %v3501
    %v3503 = vlaneseq
    %v3504 = vshrl.u32 %v3503, 7
    %v3505 = vsub.s32 %v3502, %v3504
    %v3506 = vrot.slane %v3497, %v3505
    %v3508 = vunpack.c.l.s4 1966171168
    %v3509 = vunpack.c.0.s8 %v3508
    %v3510 = vlaneseq
    %v3511 = vshrl.u32 %v3510, 7
    %v3512 = vsub.s32 %v3509, %v3511
    %v3513 = vrot.slane %v3498, %v3512
    %v3515 = vunpack.c.l.s4 1966171168
    %v3516 = vunpack.c.0.s8 %v3515
    %v3517 = vlaneseq
    %v3518 = vshrl.u32 %v3517, 7
    %v3519 = vsub.s32 %v3516, %v3518
    %v3520 = vrot.slane %v3499, %v3519
    %v3521 = vcombine.low %v3506, %v3513
    %v3522 = vcombine.high %v3506, %v3513
    %v3523 = vcombine.high %v3520, %v3520
    %v3525 = vunpack.c.l.s4 1966171168
    %v3526 = vunpack.c.0.s8 %v3525
    %v3527 = vlaneseq
    %v3528 = vshrl.u32 %v3527, 7
    %v3529 = vsub.s32 %v3526, %v3528
    %v3530 = vrot.slane %v3521, %v3529
    %v3532 = vunpack.c.l.s4 1966171168
    %v3533 = vunpack.c.0.s8 %v3532
    %v3534 = vlaneseq
    %v3535 = vshrl.u32 %v3534, 7
    %v3536 = vsub.s32 %v3533, %v3535
    %v3537 = vrot.slane %v3522, %v3536
    %v3539 = vunpack.c.l.s4 1966171168
    %v3540 = vunpack.c.0.s8 %v3539
    %v3541 = vlaneseq
    %v3542 = vshrl.u32 %v3541, 7
    %v3543 = vsub.s32 %v3540, %v3542
    %v3544 = vrot.slane %v3520, %v3543
    %v3546 = vunpack.c.l.s4 1966171168
    %v3547 = vunpack.c.0.s8 %v3546
    %v3548 = vlaneseq
    %v3549 = vshrl.u32 %v3548, 7
    %v3550 = vsub.s32 %v3547, %v3549
    %v3551 = vrot.slane %v3523, %v3550
    %v3552 = vcombine.low %v3530, %v3544
    %v3553 = vcombine.low %v3537, %v3551
    %v3584 = vunpack.c.l.b16 %v3403
    %v3585 = vunpack.c.h.b16 %v3403
    %v3586 = vunpack.c.l.b16 %v3404
    %v3587 = vunpack.c.h.b16 %v3404
    %v3588 = vunpack.c.l.b16 %v3405
    %v3589 = vunpack.c.h.b16 %v3405
    %v3590 = vunpack.c.l.b16 %v3406
    %v3591 = vunpack.c.h.b16 %v3406
    %v3592 = vunpack.c.l.b16 %v3407
    %v3593 = vunpack.c.h.b16 %v3407
    %v3594 = vunpack.c.l.b16 %v3408
    %v3595 = vunpack.c.h.b16 %v3408
    %v3596 = vunpack.c.l.b16 %v3409
    %v3597 = vunpack.c.h.b16 %v3409
    %v3598 = vunpack.c.l.b16 %v3410
    %v3599 = vunpack.c.h.b16 %v3410
    %v3600 = vunpack.c.l.b16 %v3411
    %v3601 = vunpack.c.h.b16 %v3411
    %v3602 = vunpack.c.l.b16 %v3412
    %v3603 = vunpack.c.h.b16 %v3412
    %v3604 = vunpack.c.l.b16 %v3413
    %v3605 = vunpack.c.h.b16 %v3413
    %v3606 = vunpack.c.l.b16 %v3414
    %v3607 = vunpack.c.h.b16 %v3414
    %v3608 = vunpack.c.l.b16 %v3415
    %v3609 = vunpack.c.h.b16 %v3415
    %v3610 = vunpack.c.l.b16 %v3416
    %v3611 = vunpack.c.h.b16 %v3416
    %v3612 = vunpack.c.l.b16 %v3417
    %v3613 = vunpack.c.h.b16 %v3417
    %v3614 = vunpack.c.l.b16 %v3418
    %v3615 = vunpack.c.h.b16 %v3418
    %v3616 = vunpack.c.l.b16 %v3419
    %v3617 = vunpack.c.h.b16 %v3419
    %v3618 = vunpack.c.l.b16 %v3420
    %v3619 = vunpack.c.h.b16 %v3420
    %v3620 = vunpack.c.l.b16 %v3421
    %v3621 = vunpack.c.h.b16 %v3421
    %v3622 = vunpack.c.l.b16 %v3422
    %v3623 = vunpack.c.h.b16 %v3422
    %v3624 = vunpack.c.l.b16 %v3423
    %v3625 = vunpack.c.h.b16 %v3423
    %v3626 = vunpack.c.l.b16 %v3424
    %v3627 = vunpack.c.h.b16 %v3424
    %v3628 = vunpack.c.l.b16 %v3425
    %v3629 = vunpack.c.h.b16 %v3425
    %v3630 = vunpack.c.l.b16 %v3426
    %v3631 = vunpack.c.h.b16 %v3426
    %v3632 = vunpack.c.l.b16 %v3427
    %v3633 = vunpack.c.h.b16 %v3427
    %v3634 = vunpack.c.l.b16 %v3428
    %v3635 = vunpack.c.h.b16 %v3428
    %v3636 = vunpack.c.l.b16 %v3429
    %v3637 = vunpack.c.h.b16 %v3429
    %v3638 = vunpack.c.l.b16 %v3430
    %v3639 = vunpack.c.h.b16 %v3430
    %v3640 = vpack.c.b16 %v3586, %v3584
    %v3641 = vpack.c.b16 %v3587, %v3585
    %v3642 = vpack.c.b16 %v3590, %v3588
    %v3643 = vpack.c.b16 %v3591, %v3589
    %v3644 = vpack.c.b16 %v3594, %v3592
    %v3645 = vpack.c.b16 %v3595, %v3593
    %v3646 = vpack.c.b16 %v3598, %v3596
    %v3647 = vpack.c.b16 %v3599, %v3597
    %v3648 = vpack.c.b16 %v3602, %v3600
    %v3649 = vpack.c.b16 %v3603, %v3601
    %v3650 = vpack.c.b16 %v3606, %v3604
    %v3651 = vpack.c.b16 %v3607, %v3605
    %v3652 = vpack.c.b16 %v3610, %v3608
    %v3653 = vpack.c.b16 %v3611, %v3609
    %v3654 = vpack.c.b16 %v3614, %v3612
    %v3655 = vpack.c.b16 %v3615, %v3613
    %v3656 = vpack.c.b16 %v3618, %v3616
    %v3657 = vpack.c.b16 %v3619, %v3617
    %v3658 = vpack.c.b16 %v3622, %v3620
    %v3659 = vpack.c.b16 %v3623, %v3621
    %v3660 = vpack.c.b16 %v3626, %v3624
    %v3661 = vpack.c.b16 %v3627, %v3625
    %v3662 = vpack.c.b16 %v3630, %v3628
    %v3663 = vpack.c.b16 %v3631, %v3629
    %v3664 = vpack.c.b16 %v3634, %v3632
    %v3665 = vpack.c.b16 %v3635, %v3633
    %v3666 = vpack.c.b16 %v3638, %v3636
    %v3667 = vpack.c.b16 %v3639, %v3637
    %v3697 = vsel %vm234, %v3496, 0
    %v3700 = vsel %vm234, %v3553, 0
    %3702 = vmatprep.subr.bf16.mxu0 %v3641
    %3703 = vmatpush1.bf16.msra.mxu0 %v3640
    %3704 = vmatprep.subr.bf16.mxu0 %v3643
    %3705 = vmatpush1.bf16.msra.mxu0 %v3642
    %3706 = vmatprep.subr.bf16.mxu0 %v3645
    %3707 = vmatpush1.bf16.msra.mxu0 %v3644
    %3708 = vmatprep.subr.bf16.mxu0 %v3647
    %3709 = vmatpush1.bf16.msra.mxu0 %v3646
    %3710 = vmatprep.subr.bf16.mxu0 %v3649
    %3711 = vmatpush1.bf16.msra.mxu0 %v3648
    %3712 = vmatprep.subr.bf16.mxu0 %v3651
    %3713 = vmatpush1.bf16.msra.mxu0 %v3650
    %3714 = vmatprep.subr.bf16.mxu0 %v3653
    %3715 = vmatpush1.bf16.msra.mxu0 %v3652
    %3716 = vmatprep.subr.bf16.mxu0 %v3655
    %3717 = vmatpush1.bf16.msra.mxu0 %v3654
    %3718 = vmatprep.subr.bf16.mxu0 %v3657
    %3719 = vmatpush1.bf16.msra.mxu0 %v3656
    %3720 = vmatprep.subr.bf16.mxu0 %v3659
    %3721 = vmatpush1.bf16.msra.mxu0 %v3658
    %3722 = vmatprep.subr.bf16.mxu0 %v3661
    %3723 = vmatpush1.bf16.msra.mxu0 %v3660
    %3724 = vmatprep.subr.bf16.mxu0 %v3663
    %3725 = vmatpush1.bf16.msra.mxu0 %v3662
    %3726 = vmatprep.subr.bf16.mxu0 %v3665
    %3727 = vmatpush1.bf16.msra.mxu0 %v3664
    %3728 = vmatprep.subr.bf16.mxu0 %v3667
    %3729 = vmatpush1.bf16.msra.mxu0 %v3666
    %3730 = vmatprep.subr.bf16.mxu0 0
    %3731 = vmatpush1.bf16.msra.mxu0 0
    %3732 = vmatprep.subr.bf16.mxu0 0
    %3733 = vmatpush1.bf16.msra.mxu0 0
    %3734 = vmatprep.mubr.bf16.mxu0 %v3697
    %3735 = vmatmul.mubr.bf16.gmra.mrb[0].mxu0 %v3495
    %v3736 = vpop.f32.mrb[0].mxu0
    %v3737 = vadd.f32 0.0, %v3736
    %v3738 = vpop.f32.mrb[0].mxu0
    %v3739 = vadd.f32 0.0, %v3738
    %v3740 = vpop.f32.mrb[0].mxu0
    %v3741 = vadd.f32 0.0, %v3740
    %v3742 = vpop.f32.mrb[0].mxu0
    %v3743 = vadd.f32 0.0, %v3742
    %3744 = vmatprep.mubr.bf16.mxu0 %v3700
    %3745 = vmatmul.mubr.bf16.gmra.mrb[0].mxu0 %v3552
    %v3746 = vpop.f32.mrb[0].mxu0
    %v3747 = vadd.f32 0.0, %v3746
    %v3748 = vpop.f32.mrb[0].mxu0
    %v3749 = vadd.f32 0.0, %v3748
    %v3750 = vpop.f32.mrb[0].mxu0
    %v3751 = vadd.f32 0.0, %v3750
    %v3752 = vpop.f32.mrb[0].mxu0
    %v3753 = vadd.f32 0.0, %v3752
    %3754 = vdwg.mxu0
    %v3755 = vadd.f32 %v2969, %v3737
    %v3756 = vadd.f32 %v2971, %v3739
    %v3757 = vadd.f32 %v2973, %v3741
    %v3758 = vadd.f32 %v2975, %v3743
    %v3759 = vadd.f32 %v2979, %v3747
    %v3760 = vadd.f32 %v2981, %v3749
    %v3761 = vadd.f32 %v2983, %v3751
    %v3762 = vadd.f32 %v2985, %v3753
    %s3763 = scalar_lea.vmem [#allocation7], 1568
    %v3764 = vld [vmem:[%s3763] sm:$0xff]
    %v3765 = vld [vmem:[%s3763 + $0x8] sm:$0xff]
    %v3766 = vld [vmem:[%s3763 + $0x10] sm:$0xff]
    %v3767 = vld [vmem:[%s3763 + $0x18] sm:$0xff]
    %v3768 = vld [vmem:[%s3763 + $0x20] sm:$0xff]
    %v3769 = vld [vmem:[%s3763 + $0x28] sm:$0xff]
    %v3770 = vld [vmem:[%s3763 + $0x30] sm:$0xff]
    %v3771 = vld [vmem:[%s3763 + $0x38] sm:$0xff]
    %v3772 = vld [vmem:[%s3763 + $0x40] sm:$0xff]
    %v3773 = vld [vmem:[%s3763 + $0x48] sm:$0xff]
    %v3774 = vld [vmem:[%s3763 + $0x50] sm:$0xff]
    %v3775 = vld [vmem:[%s3763 + $0x58] sm:$0xff]
    %v3776 = vld [vmem:[%s3763 + $0x60] sm:$0xff]
    %v3777 = vld [vmem:[%s3763 + $0x68] sm:$0xff]
    %v3778 = vld [vmem:[%s3763 + $0x70] sm:$0xff]
    %v3779 = vld [vmem:[%s3763 + $0x78] sm:$0xff]
    %v3780 = vld [vmem:[%s3763 + $0x80] sm:$0xff]
    %v3781 = vld [vmem:[%s3763 + $0x88] sm:$0xff]
    %v3782 = vld [vmem:[%s3763 + $0x90] sm:$0xff]
    %v3783 = vld [vmem:[%s3763 + $0x98] sm:$0xff]
    %v3784 = vld [vmem:[%s3763 + $0xa0] sm:$0xff]
    %v3785 = vld [vmem:[%s3763 + $0xa8] sm:$0xff]
    %v3786 = vld [vmem:[%s3763 + $0xb0] sm:$0xff]
    %v3787 = vld [vmem:[%s3763 + $0xb8] sm:$0xff]
    %v3788 = vld [vmem:[%s3763 + $0xc0] sm:$0xff]
    %v3789 = vld [vmem:[%s3763 + $0xc8] sm:$0xff]
    %v3790 = vld [vmem:[%s3763 + $0xd0] sm:$0xff]
    %v3791 = vld [vmem:[%s3763 + $0xd8] sm:$0xff]
    %v3820 = vunpack.c.l.b16 %v3764
    %v3821 = vunpack.c.h.b16 %v3764
    %v3822 = vunpack.c.l.b16 %v3765
    %v3823 = vunpack.c.h.b16 %v3765
    %v3824 = vunpack.c.l.b16 %v3766
    %v3825 = vunpack.c.h.b16 %v3766
    %v3826 = vunpack.c.l.b16 %v3767
    %v3827 = vunpack.c.h.b16 %v3767
    %v3828 = vunpack.c.l.b16 %v3768
    %v3829 = vunpack.c.h.b16 %v3768
    %v3830 = vunpack.c.l.b16 %v3769
    %v3831 = vunpack.c.h.b16 %v3769
    %v3832 = vunpack.c.l.b16 %v3770
    %v3833 = vunpack.c.h.b16 %v3770
    %v3834 = vunpack.c.l.b16 %v3771
    %v3835 = vunpack.c.h.b16 %v3771
    %v3836 = vunpack.c.l.b16 %v3772
    %v3837 = vunpack.c.h.b16 %v3772
    %v3838 = vunpack.c.l.b16 %v3773
    %v3839 = vunpack.c.h.b16 %v3773
    %v3840 = vunpack.c.l.b16 %v3774
    %v3841 = vunpack.c.h.b16 %v3774
    %v3842 = vunpack.c.l.b16 %v3775
    %v3843 = vunpack.c.h.b16 %v3775
    %v3844 = vunpack.c.l.b16 %v3776
    %v3845 = vunpack.c.h.b16 %v3776
    %v3846 = vunpack.c.l.b16 %v3777
    %v3847 = vunpack.c.h.b16 %v3777
    %v3848 = vunpack.c.l.b16 %v3778
    %v3849 = vunpack.c.h.b16 %v3778
    %v3850 = vunpack.c.l.b16 %v3779
    %v3851 = vunpack.c.h.b16 %v3779
    %v3852 = vunpack.c.l.b16 %v3780
    %v3853 = vunpack.c.h.b16 %v3780
    %v3854 = vunpack.c.l.b16 %v3781
    %v3855 = vunpack.c.h.b16 %v3781
    %v3856 = vunpack.c.l.b16 %v3782
    %v3857 = vunpack.c.h.b16 %v3782
    %v3858 = vunpack.c.l.b16 %v3783
    %v3859 = vunpack.c.h.b16 %v3783
    %v3860 = vunpack.c.l.b16 %v3784
    %v3861 = vunpack.c.h.b16 %v3784
    %v3862 = vunpack.c.l.b16 %v3785
    %v3863 = vunpack.c.h.b16 %v3785
    %v3864 = vunpack.c.l.b16 %v3786
    %v3865 = vunpack.c.h.b16 %v3786
    %v3866 = vunpack.c.l.b16 %v3787
    %v3867 = vunpack.c.h.b16 %v3787
    %v3868 = vunpack.c.l.b16 %v3788
    %v3869 = vunpack.c.h.b16 %v3788
    %v3870 = vunpack.c.l.b16 %v3789
    %v3871 = vunpack.c.h.b16 %v3789
    %v3872 = vunpack.c.l.b16 %v3790
    %v3873 = vunpack.c.h.b16 %v3790
    %v3874 = vunpack.c.l.b16 %v3791
    %v3875 = vunpack.c.h.b16 %v3791
    %v3876 = vpack.c.b16 %v3822, %v3820
    %v3877 = vpack.c.b16 %v3823, %v3821
    %v3878 = vpack.c.b16 %v3826, %v3824
    %v3879 = vpack.c.b16 %v3827, %v3825
    %v3880 = vpack.c.b16 %v3830, %v3828
    %v3881 = vpack.c.b16 %v3831, %v3829
    %v3882 = vpack.c.b16 %v3834, %v3832
    %v3883 = vpack.c.b16 %v3835, %v3833
    %v3884 = vpack.c.b16 %v3838, %v3836
    %v3885 = vpack.c.b16 %v3839, %v3837
    %v3886 = vpack.c.b16 %v3842, %v3840
    %v3887 = vpack.c.b16 %v3843, %v3841
    %v3888 = vpack.c.b16 %v3846, %v3844
    %v3889 = vpack.c.b16 %v3847, %v3845
    %v3890 = vpack.c.b16 %v3850, %v3848
    %v3891 = vpack.c.b16 %v3851, %v3849
    %v3892 = vpack.c.b16 %v3854, %v3852
    %v3893 = vpack.c.b16 %v3855, %v3853
    %v3894 = vpack.c.b16 %v3858, %v3856
    %v3895 = vpack.c.b16 %v3859, %v3857
    %v3896 = vpack.c.b16 %v3862, %v3860
    %v3897 = vpack.c.b16 %v3863, %v3861
    %v3898 = vpack.c.b16 %v3866, %v3864
    %v3899 = vpack.c.b16 %v3867, %v3865
    %v3900 = vpack.c.b16 %v3870, %v3868
    %v3901 = vpack.c.b16 %v3871, %v3869
    %v3902 = vpack.c.b16 %v3874, %v3872
    %v3903 = vpack.c.b16 %v3875, %v3873
    %3932 = vmatprep.subr.bf16.mxu0 %v3877
    %3933 = vmatpush1.bf16.msra.mxu0 %v3876
    %3934 = vmatprep.subr.bf16.mxu0 %v3879
    %3935 = vmatpush1.bf16.msra.mxu0 %v3878
    %3936 = vmatprep.subr.bf16.mxu0 %v3881
    %3937 = vmatpush1.bf16.msra.mxu0 %v3880
    %3938 = vmatprep.subr.bf16.mxu0 %v3883
    %3939 = vmatpush1.bf16.msra.mxu0 %v3882
    %3940 = vmatprep.subr.bf16.mxu0 %v3885
    %3941 = vmatpush1.bf16.msra.mxu0 %v3884
    %3942 = vmatprep.subr.bf16.mxu0 %v3887
    %3943 = vmatpush1.bf16.msra.mxu0 %v3886
    %3944 = vmatprep.subr.bf16.mxu0 %v3889
    %3945 = vmatpush1.bf16.msra.mxu0 %v3888
    %3946 = vmatprep.subr.bf16.mxu0 %v3891
    %3947 = vmatpush1.bf16.msra.mxu0 %v3890
    %3948 = vmatprep.subr.bf16.mxu0 %v3893
    %3949 = vmatpush1.bf16.msra.mxu0 %v3892
    %3950 = vmatprep.subr.bf16.mxu0 %v3895
    %3951 = vmatpush1.bf16.msra.mxu0 %v3894
    %3952 = vmatprep.subr.bf16.mxu0 %v3897
    %3953 = vmatpush1.bf16.msra.mxu0 %v3896
    %3954 = vmatprep.subr.bf16.mxu0 %v3899
    %3955 = vmatpush1.bf16.msra.mxu0 %v3898
    %3956 = vmatprep.subr.bf16.mxu0 %v3901
    %3957 = vmatpush1.bf16.msra.mxu0 %v3900
    %3958 = vmatprep.subr.bf16.mxu0 %v3903
    %3959 = vmatpush1.bf16.msra.mxu0 %v3902
    %3960 = vmatprep.subr.bf16.mxu0 0
    %3961 = vmatpush1.bf16.msra.mxu0 0
    %3962 = vmatprep.subr.bf16.mxu0 0
    %3963 = vmatpush1.bf16.msra.mxu0 0
    %3964 = vmatprep.mubr.bf16.mxu0 %v3697
    %3965 = vmatmul.mubr.bf16.gmra.mrb[0].mxu0 %v3495
    %v3966 = vpop.f32.mrb[0].mxu0
    %v3967 = vadd.f32 0.0, %v3966
    %v3968 = vpop.f32.mrb[0].mxu0
    %v3969 = vadd.f32 0.0, %v3968
    %v3970 = vpop.f32.mrb[0].mxu0
    %v3971 = vadd.f32 0.0, %v3970
    %v3972 = vpop.f32.mrb[0].mxu0
    %v3973 = vadd.f32 0.0, %v3972
    %3974 = vmatprep.mubr.bf16.mxu0 %v3700
    %3975 = vmatmul.mubr.bf16.gmra.mrb[0].mxu0 %v3552
    %v3976 = vpop.f32.mrb[0].mxu0
    %v3977 = vadd.f32 0.0, %v3976
    %v3978 = vpop.f32.mrb[0].mxu0
    %v3979 = vadd.f32 0.0, %v3978
    %v3980 = vpop.f32.mrb[0].mxu0
    %v3981 = vadd.f32 0.0, %v3980
    %v3982 = vpop.f32.mrb[0].mxu0
    %v3983 = vadd.f32 0.0, %v3982
    %3984 = vdwg.mxu0
    %v3985 = vadd.f32 %v3384, %v3967
    %v3986 = vadd.f32 %v3386, %v3969
    %v3987 = vadd.f32 %v3388, %v3971
    %v3988 = vadd.f32 %v3390, %v3973
    %v3989 = vadd.f32 %v3394, %v3977
    %v3990 = vadd.f32 %v3396, %v3979
    %v3991 = vadd.f32 %v3398, %v3981
    %v3992 = vadd.f32 %v3400, %v3983
    %v3994 = vcombine.low 0, 0
    %v3996 = vunpack.c.l.s4 1966171168
    %v3997 = vunpack.c.0.s8 %v3996
    %v3998 = vlaneseq
    %v3999 = vshrl.u32 %v3998, 7
    %v4000 = vsub.s32 %v3997, %v3999
    %v4001 = vrot.slane %v3994, %v4000
    %v4003 = vunpack.c.l.s4 1966171168
    %v4004 = vunpack.c.0.s8 %v4003
    %v4005 = vlaneseq
    %v4006 = vshrl.u32 %v4005, 7
    %v4007 = vsub.s32 %v4004, %v4006
    %v4008 = vrot.slane %v4001, %v4007
    %v4009 = vshrl.u32 %v2179, 16
    %v4011 = vrot.slane %v4009, 7
    %v4012 = vrot.slane %v4011, 1
    %v4014 = vshll.u32 %v4008, 16
    %v4016 = vsel %vm2195, %v4012, %v4014
    %v4017 = vshrl.u32 %v2180, 16
    %v4019 = vrot.slane %v4017, 7
    %v4020 = vrot.slane %v4019, 1
    %v4021 = vsel %vm2195, %v4020, %v4014
    %s4022 = scalar_lea.vmem [#allocation7], 672
    %v4023 = vld [vmem:[%s4022] sm:$0xff]
    %v4024 = vld [vmem:[%s4022 + $0x8] sm:$0xff]
    %v4025 = vld [vmem:[%s4022 + $0x10] sm:$0xff]
    %v4026 = vld [vmem:[%s4022 + $0x18] sm:$0xff]
    %v4027 = vld [vmem:[%s4022 + $0x20] sm:$0xff]
    %v4028 = vld [vmem:[%s4022 + $0x28] sm:$0xff]
    %v4029 = vld [vmem:[%s4022 + $0x30] sm:$0xff]
    %v4030 = vld [vmem:[%s4022 + $0x38] sm:$0xff]
    %v4031 = vld [vmem:[%s4022 + $0x40] sm:$0xff]
    %v4032 = vld [vmem:[%s4022 + $0x48] sm:$0xff]
    %v4033 = vld [vmem:[%s4022 + $0x50] sm:$0xff]
    %v4034 = vld [vmem:[%s4022 + $0x58] sm:$0xff]
    %v4035 = vld [vmem:[%s4022 + $0x60] sm:$0xff]
    %v4036 = vld [vmem:[%s4022 + $0x68] sm:$0xff]
    %v4037 = vld [vmem:[%s4022 + $0x70] sm:$0xff]
    %v4038 = vld [vmem:[%s4022 + $0x78] sm:$0xff]
    %v4039 = vld [vmem:[%s4022 + $0x80] sm:$0xff]
    %v4040 = vld [vmem:[%s4022 + $0x88] sm:$0xff]
    %v4041 = vld [vmem:[%s4022 + $0x90] sm:$0xff]
    %v4042 = vld [vmem:[%s4022 + $0x98] sm:$0xff]
    %v4043 = vld [vmem:[%s4022 + $0xa0] sm:$0xff]
    %v4044 = vld [vmem:[%s4022 + $0xa8] sm:$0xff]
    %v4045 = vld [vmem:[%s4022 + $0xb0] sm:$0xff]
    %v4046 = vld [vmem:[%s4022 + $0xb8] sm:$0xff]
    %v4047 = vld [vmem:[%s4022 + $0xc0] sm:$0xff]
    %v4048 = vld [vmem:[%s4022 + $0xc8] sm:$0xff]
    %v4049 = vld [vmem:[%s4022 + $0xd0] sm:$0xff]
    %v4050 = vld [vmem:[%s4022 + $0xd8] sm:$0xff]
    %v4051 = vcombine.low %v2212, %v2220
    %v4052 = vcombine.low %v2228, %v2236
    %v4053 = vcombine.low %v2244, %v2252
    %v4054 = vcombine.low %v4016, %v2269
    %v4056 = vunpack.c.l.s4 1966171168
    %v4057 = vunpack.c.0.s8 %v4056
    %v4058 = vlaneseq
    %v4059 = vshrl.u32 %v4058, 7
    %v4060 = vsub.s32 %v4057, %v4059
    %v4061 = vrot.slane %v4051, %v4060
    %v4063 = vunpack.c.l.s4 1966171168
    %v4064 = vunpack.c.0.s8 %v4063
    %v4065 = vlaneseq
    %v4066 = vshrl.u32 %v4065, 7
    %v4067 = vsub.s32 %v4064, %v4066
    %v4068 = vrot.slane %v4052, %v4067
    %v4070 = vunpack.c.l.s4 1966171168
    %v4071 = vunpack.c.0.s8 %v4070
    %v4072 = vlaneseq
    %v4073 = vshrl.u32 %v4072, 7
    %v4074 = vsub.s32 %v4071, %v4073
    %v4075 = vrot.slane %v4053, %v4074
    %v4077 = vunpack.c.l.s4 1966171168
    %v4078 = vunpack.c.0.s8 %v4077
    %v4079 = vlaneseq
    %v4080 = vshrl.u32 %v4079, 7
    %v4081 = vsub.s32 %v4078, %v4080
    %v4082 = vrot.slane %v4054, %v4081
    %v4083 = vcombine.low %v4061, %v4068
    %v4084 = vcombine.high %v4061, %v4068
    %v4085 = vcombine.low %v4075, %v4082
    %v4086 = vcombine.high %v4075, %v4082
    %v4088 = vunpack.c.l.s4 1966171168
    %v4089 = vunpack.c.0.s8 %v4088
    %v4090 = vlaneseq
    %v4091 = vshrl.u32 %v4090, 7
    %v4092 = vsub.s32 %v4089, %v4091
    %v4093 = vrot.slane %v4083, %v4092
    %v4095 = vunpack.c.l.s4 1966171168
    %v4096 = vunpack.c.0.s8 %v4095
    %v4097 = vlaneseq
    %v4098 = vshrl.u32 %v4097, 7
    %v4099 = vsub.s32 %v4096, %v4098
    %v4100 = vrot.slane %v4084, %v4099
    %v4102 = vunpack.c.l.s4 1966171168
    %v4103 = vunpack.c.0.s8 %v4102
    %v4104 = vlaneseq
    %v4105 = vshrl.u32 %v4104, 7
    %v4106 = vsub.s32 %v4103, %v4105
    %v4107 = vrot.slane %v4085, %v4106
    %v4109 = vunpack.c.l.s4 1966171168
    %v4110 = vunpack.c.0.s8 %v4109
    %v4111 = vlaneseq
    %v4112 = vshrl.u32 %v4111, 7
    %v4113 = vsub.s32 %v4110, %v4112
    %v4114 = vrot.slane %v4086, %v4113
    %v4115 = vcombine.low %v4093, %v4107
    %v4116 = vcombine.low %v4100, %v4114
    %v4117 = vcombine.low %v2277, %v2285
    %v4118 = vcombine.low %v2293, %v2301
    %v4119 = vcombine.low %v2309, %v4021
    %v4121 = vunpack.c.l.s4 1966171168
    %v4122 = vunpack.c.0.s8 %v4121
    %v4123 = vlaneseq
    %v4124 = vshrl.u32 %v4123, 7
    %v4125 = vsub.s32 %v4122, %v4124
    %v4126 = vrot.slane %v4117, %v4125
    %v4128 = vunpack.c.l.s4 1966171168
    %v4129 = vunpack.c.0.s8 %v4128
    %v4130 = vlaneseq
    %v4131 = vshrl.u32 %v4130, 7
    %v4132 = vsub.s32 %v4129, %v4131
    %v4133 = vrot.slane %v4118, %v4132
    %v4135 = vunpack.c.l.s4 1966171168
    %v4136 = vunpack.c.0.s8 %v4135
    %v4137 = vlaneseq
    %v4138 = vshrl.u32 %v4137, 7
    %v4139 = vsub.s32 %v4136, %v4138
    %v4140 = vrot.slane %v4119, %v4139
    %v4141 = vcombine.low %v4126, %v4133
    %v4142 = vcombine.high %v4126, %v4133
    %v4143 = vcombine.high %v4140, %v4140
    %v4145 = vunpack.c.l.s4 1966171168
    %v4146 = vunpack.c.0.s8 %v4145
    %v4147 = vlaneseq
    %v4148 = vshrl.u32 %v4147, 7
    %v4149 = vsub.s32 %v4146, %v4148
    %v4150 = vrot.slane %v4141, %v4149
    %v4152 = vunpack.c.l.s4 1966171168
    %v4153 = vunpack.c.0.s8 %v4152
    %v4154 = vlaneseq
    %v4155 = vshrl.u32 %v4154, 7
    %v4156 = vsub.s32 %v4153, %v4155
    %v4157 = vrot.slane %v4142, %v4156
    %v4159 = vunpack.c.l.s4 1966171168
    %v4160 = vunpack.c.0.s8 %v4159
    %v4161 = vlaneseq
    %v4162 = vshrl.u32 %v4161, 7
    %v4163 = vsub.s32 %v4160, %v4162
    %v4164 = vrot.slane %v4140, %v4163
    %v4166 = vunpack.c.l.s4 1966171168
    %v4167 = vunpack.c.0.s8 %v4166
    %v4168 = vlaneseq
    %v4169 = vshrl.u32 %v4168, 7
    %v4170 = vsub.s32 %v4167, %v4169
    %v4171 = vrot.slane %v4143, %v4170
    %v4172 = vcombine.low %v4150, %v4164
    %v4173 = vcombine.low %v4157, %v4171
    %v4204 = vunpack.c.l.b16 %v4023
    %v4205 = vunpack.c.h.b16 %v4023
    %v4206 = vunpack.c.l.b16 %v4024
    %v4207 = vunpack.c.h.b16 %v4024
    %v4208 = vunpack.c.l.b16 %v4025
    %v4209 = vunpack.c.h.b16 %v4025
    %v4210 = vunpack.c.l.b16 %v4026
    %v4211 = vunpack.c.h.b16 %v4026
    %v4212 = vunpack.c.l.b16 %v4027
    %v4213 = vunpack.c.h.b16 %v4027
    %v4214 = vunpack.c.l.b16 %v4028
    %v4215 = vunpack.c.h.b16 %v4028
    %v4216 = vunpack.c.l.b16 %v4029
    %v4217 = vunpack.c.h.b16 %v4029
    %v4218 = vunpack.c.l.b16 %v4030
    %v4219 = vunpack.c.h.b16 %v4030
    %v4220 = vunpack.c.l.b16 %v4031
    %v4221 = vunpack.c.h.b16 %v4031
    %v4222 = vunpack.c.l.b16 %v4032
    %v4223 = vunpack.c.h.b16 %v4032
    %v4224 = vunpack.c.l.b16 %v4033
    %v4225 = vunpack.c.h.b16 %v4033
    %v4226 = vunpack.c.l.b16 %v4034
    %v4227 = vunpack.c.h.b16 %v4034
    %v4228 = vunpack.c.l.b16 %v4035
    %v4229 = vunpack.c.h.b16 %v4035
    %v4230 = vunpack.c.l.b16 %v4036
    %v4231 = vunpack.c.h.b16 %v4036
    %v4232 = vunpack.c.l.b16 %v4037
    %v4233 = vunpack.c.h.b16 %v4037
    %v4234 = vunpack.c.l.b16 %v4038
    %v4235 = vunpack.c.h.b16 %v4038
    %v4236 = vunpack.c.l.b16 %v4039
    %v4237 = vunpack.c.h.b16 %v4039
    %v4238 = vunpack.c.l.b16 %v4040
    %v4239 = vunpack.c.h.b16 %v4040
    %v4240 = vunpack.c.l.b16 %v4041
    %v4241 = vunpack.c.h.b16 %v4041
    %v4242 = vunpack.c.l.b16 %v4042
    %v4243 = vunpack.c.h.b16 %v4042
    %v4244 = vunpack.c.l.b16 %v4043
    %v4245 = vunpack.c.h.b16 %v4043
    %v4246 = vunpack.c.l.b16 %v4044
    %v4247 = vunpack.c.h.b16 %v4044
    %v4248 = vunpack.c.l.b16 %v4045
    %v4249 = vunpack.c.h.b16 %v4045
    %v4250 = vunpack.c.l.b16 %v4046
    %v4251 = vunpack.c.h.b16 %v4046
    %v4252 = vunpack.c.l.b16 %v4047
    %v4253 = vunpack.c.h.b16 %v4047
    %v4254 = vunpack.c.l.b16 %v4048
    %v4255 = vunpack.c.h.b16 %v4048
    %v4256 = vunpack.c.l.b16 %v4049
    %v4257 = vunpack.c.h.b16 %v4049
    %v4258 = vunpack.c.l.b16 %v4050
    %v4259 = vunpack.c.h.b16 %v4050
    %v4260 = vpack.c.b16 %v4206, %v4204
    %v4261 = vpack.c.b16 %v4207, %v4205
    %v4262 = vpack.c.b16 %v4210, %v4208
    %v4263 = vpack.c.b16 %v4211, %v4209
    %v4264 = vpack.c.b16 %v4214, %v4212
    %v4265 = vpack.c.b16 %v4215, %v4213
    %v4266 = vpack.c.b16 %v4218, %v4216
    %v4267 = vpack.c.b16 %v4219, %v4217
    %v4268 = vpack.c.b16 %v4222, %v4220
    %v4269 = vpack.c.b16 %v4223, %v4221
    %v4270 = vpack.c.b16 %v4226, %v4224
    %v4271 = vpack.c.b16 %v4227, %v4225
    %v4272 = vpack.c.b16 %v4230, %v4228
    %v4273 = vpack.c.b16 %v4231, %v4229
    %v4274 = vpack.c.b16 %v4234, %v4232
    %v4275 = vpack.c.b16 %v4235, %v4233
    %v4276 = vpack.c.b16 %v4238, %v4236
    %v4277 = vpack.c.b16 %v4239, %v4237
    %v4278 = vpack.c.b16 %v4242, %v4240
    %v4279 = vpack.c.b16 %v4243, %v4241
    %v4280 = vpack.c.b16 %v4246, %v4244
    %v4281 = vpack.c.b16 %v4247, %v4245
    %v4282 = vpack.c.b16 %v4250, %v4248
    %v4283 = vpack.c.b16 %v4251, %v4249
    %v4284 = vpack.c.b16 %v4254, %v4252
    %v4285 = vpack.c.b16 %v4255, %v4253
    %v4286 = vpack.c.b16 %v4258, %v4256
    %v4287 = vpack.c.b16 %v4259, %v4257
    %v4317 = vsel %vm234, %v4116, 0
    %v4320 = vsel %vm234, %v4173, 0
    %4322 = vmatprep.subr.bf16.mxu0 %v4261
    %4323 = vmatpush1.bf16.msra.mxu0 %v4260
    %4324 = vmatprep.subr.bf16.mxu0 %v4263
    %4325 = vmatpush1.bf16.msra.mxu0 %v4262
    %4326 = vmatprep.subr.bf16.mxu0 %v4265
    %4327 = vmatpush1.bf16.msra.mxu0 %v4264
    %4328 = vmatprep.subr.bf16.mxu0 %v4267
    %4329 = vmatpush1.bf16.msra.mxu0 %v4266
    %4330 = vmatprep.subr.bf16.mxu0 %v4269
    %4331 = vmatpush1.bf16.msra.mxu0 %v4268
    %4332 = vmatprep.subr.bf16.mxu0 %v4271
    %4333 = vmatpush1.bf16.msra.mxu0 %v4270
    %4334 = vmatprep.subr.bf16.mxu0 %v4273
    %4335 = vmatpush1.bf16.msra.mxu0 %v4272
    %4336 = vmatprep.subr.bf16.mxu0 %v4275
    %4337 = vmatpush1.bf16.msra.mxu0 %v4274
    %4338 = vmatprep.subr.bf16.mxu0 %v4277
    %4339 = vmatpush1.bf16.msra.mxu0 %v4276
    %4340 = vmatprep.subr.bf16.mxu0 %v4279
    %4341 = vmatpush1.bf16.msra.mxu0 %v4278
    %4342 = vmatprep.subr.bf16.mxu0 %v4281
    %4343 = vmatpush1.bf16.msra.mxu0 %v4280
    %4344 = vmatprep.subr.bf16.mxu0 %v4283
    %4345 = vmatpush1.bf16.msra.mxu0 %v4282
    %4346 = vmatprep.subr.bf16.mxu0 %v4285
    %4347 = vmatpush1.bf16.msra.mxu0 %v4284
    %4348 = vmatprep.subr.bf16.mxu0 %v4287
    %4349 = vmatpush1.bf16.msra.mxu0 %v4286
    %4350 = vmatprep.subr.bf16.mxu0 0
    %4351 = vmatpush1.bf16.msra.mxu0 0
    %4352 = vmatprep.subr.bf16.mxu0 0
    %4353 = vmatpush1.bf16.msra.mxu0 0
    %4354 = vmatprep.mubr.bf16.mxu0 %v4317
    %4355 = vmatmul.mubr.bf16.gmra.mrb[0].mxu0 %v4115
    %v4356 = vpop.f32.mrb[0].mxu0
    %v4357 = vadd.f32 0.0, %v4356
    %v4358 = vpop.f32.mrb[0].mxu0
    %v4359 = vadd.f32 0.0, %v4358
    %v4360 = vpop.f32.mrb[0].mxu0
    %v4361 = vadd.f32 0.0, %v4360
    %v4362 = vpop.f32.mrb[0].mxu0
    %v4363 = vadd.f32 0.0, %v4362
    %4364 = vmatprep.mubr.bf16.mxu0 %v4320
    %4365 = vmatmul.mubr.bf16.gmra.mrb[0].mxu0 %v4172
    %v4366 = vpop.f32.mrb[0].mxu0
    %v4367 = vadd.f32 0.0, %v4366
    %v4368 = vpop.f32.mrb[0].mxu0
    %v4369 = vadd.f32 0.0, %v4368
    %v4370 = vpop.f32.mrb[0].mxu0
    %v4371 = vadd.f32 0.0, %v4370
    %v4372 = vpop.f32.mrb[0].mxu0
    %v4373 = vadd.f32 0.0, %v4372
    %4374 = vdwg.mxu0
    %v4375 = vadd.f32 %v3755, %v4357
    %v4376 = vadd.f32 %v3756, %v4359
    %v4377 = vadd.f32 %v3757, %v4361
    %v4378 = vadd.f32 %v3758, %v4363
    %v4379 = vadd.f32 %v3759, %v4367
    %v4380 = vadd.f32 %v3760, %v4369
    %v4381 = vadd.f32 %v3761, %v4371
    %v4382 = vadd.f32 %v3762, %v4373
    %s4383 = scalar_lea.vmem [#allocation7], 1792
    %v4384 = vld [vmem:[%s4383] sm:$0xff]
    %v4385 = vld [vmem:[%s4383 + $0x8] sm:$0xff]
    %v4386 = vld [vmem:[%s4383 + $0x10] sm:$0xff]
    %v4387 = vld [vmem:[%s4383 + $0x18] sm:$0xff]
    %v4388 = vld [vmem:[%s4383 + $0x20] sm:$0xff]
    %v4389 = vld [vmem:[%s4383 + $0x28] sm:$0xff]
    %v4390 = vld [vmem:[%s4383 + $0x30] sm:$0xff]
    %v4391 = vld [vmem:[%s4383 + $0x38] sm:$0xff]
    %v4392 = vld [vmem:[%s4383 + $0x40] sm:$0xff]
    %v4393 = vld [vmem:[%s4383 + $0x48] sm:$0xff]
    %v4394 = vld [vmem:[%s4383 + $0x50] sm:$0xff]
    %v4395 = vld [vmem:[%s4383 + $0x58] sm:$0xff]
    %v4396 = vld [vmem:[%s4383 + $0x60] sm:$0xff]
    %v4397 = vld [vmem:[%s4383 + $0x68] sm:$0xff]
    %v4398 = vld [vmem:[%s4383 + $0x70] sm:$0xff]
    %v4399 = vld [vmem:[%s4383 + $0x78] sm:$0xff]
    %v4400 = vld [vmem:[%s4383 + $0x80] sm:$0xff]
    %v4401 = vld [vmem:[%s4383 + $0x88] sm:$0xff]
    %v4402 = vld [vmem:[%s4383 + $0x90] sm:$0xff]
    %v4403 = vld [vmem:[%s4383 + $0x98] sm:$0xff]
    %v4404 = vld [vmem:[%s4383 + $0xa0] sm:$0xff]
    %v4405 = vld [vmem:[%s4383 + $0xa8] sm:$0xff]
    %v4406 = vld [vmem:[%s4383 + $0xb0] sm:$0xff]
    %v4407 = vld [vmem:[%s4383 + $0xb8] sm:$0xff]
    %v4408 = vld [vmem:[%s4383 + $0xc0] sm:$0xff]
    %v4409 = vld [vmem:[%s4383 + $0xc8] sm:$0xff]
    %v4410 = vld [vmem:[%s4383 + $0xd0] sm:$0xff]
    %v4411 = vld [vmem:[%s4383 + $0xd8] sm:$0xff]
    %v4440 = vunpack.c.l.b16 %v4384
    %v4441 = vunpack.c.h.b16 %v4384
    %v4442 = vunpack.c.l.b16 %v4385
    %v4443 = vunpack.c.h.b16 %v4385
    %v4444 = vunpack.c.l.b16 %v4386
    %v4445 = vunpack.c.h.b16 %v4386
    %v4446 = vunpack.c.l.b16 %v4387
    %v4447 = vunpack.c.h.b16 %v4387
    %v4448 = vunpack.c.l.b16 %v4388
    %v4449 = vunpack.c.h.b16 %v4388
    %v4450 = vunpack.c.l.b16 %v4389
    %v4451 = vunpack.c.h.b16 %v4389
    %v4452 = vunpack.c.l.b16 %v4390
    %v4453 = vunpack.c.h.b16 %v4390
    %v4454 = vunpack.c.l.b16 %v4391
    %v4455 = vunpack.c.h.b16 %v4391
    %v4456 = vunpack.c.l.b16 %v4392
    %v4457 = vunpack.c.h.b16 %v4392
    %v4458 = vunpack.c.l.b16 %v4393
    %v4459 = vunpack.c.h.b16 %v4393
    %v4460 = vunpack.c.l.b16 %v4394
    %v4461 = vunpack.c.h.b16 %v4394
    %v4462 = vunpack.c.l.b16 %v4395
    %v4463 = vunpack.c.h.b16 %v4395
    %v4464 = vunpack.c.l.b16 %v4396
    %v4465 = vunpack.c.h.b16 %v4396
    %v4466 = vunpack.c.l.b16 %v4397
    %v4467 = vunpack.c.h.b16 %v4397
    %v4468 = vunpack.c.l.b16 %v4398
    %v4469 = vunpack.c.h.b16 %v4398
    %v4470 = vunpack.c.l.b16 %v4399
    %v4471 = vunpack.c.h.b16 %v4399
    %v4472 = vunpack.c.l.b16 %v4400
    %v4473 = vunpack.c.h.b16 %v4400
    %v4474 = vunpack.c.l.b16 %v4401
    %v4475 = vunpack.c.h.b16 %v4401
    %v4476 = vunpack.c.l.b16 %v4402
    %v4477 = vunpack.c.h.b16 %v4402
    %v4478 = vunpack.c.l.b16 %v4403
    %v4479 = vunpack.c.h.b16 %v4403
    %v4480 = vunpack.c.l.b16 %v4404
    %v4481 = vunpack.c.h.b16 %v4404
    %v4482 = vunpack.c.l.b16 %v4405
    %v4483 = vunpack.c.h.b16 %v4405
    %v4484 = vunpack.c.l.b16 %v4406
    %v4485 = vunpack.c.h.b16 %v4406
    %v4486 = vunpack.c.l.b16 %v4407
    %v4487 = vunpack.c.h.b16 %v4407
    %v4488 = vunpack.c.l.b16 %v4408
    %v4489 = vunpack.c.h.b16 %v4408
    %v4490 = vunpack.c.l.b16 %v4409
    %v4491 = vunpack.c.h.b16 %v4409
    %v4492 = vunpack.c.l.b16 %v4410
    %v4493 = vunpack.c.h.b16 %v4410
    %v4494 = vunpack.c.l.b16 %v4411
    %v4495 = vunpack.c.h.b16 %v4411
    %v4496 = vpack.c.b16 %v4442, %v4440
    %v4497 = vpack.c.b16 %v4443, %v4441
    %v4498 = vpack.c.b16 %v4446, %v4444
    %v4499 = vpack.c.b16 %v4447, %v4445
    %v4500 = vpack.c.b16 %v4450, %v4448
    %v4501 = vpack.c.b16 %v4451, %v4449
    %v4502 = vpack.c.b16 %v4454, %v4452
    %v4503 = vpack.c.b16 %v4455, %v4453
    %v4504 = vpack.c.b16 %v4458, %v4456
    %v4505 = vpack.c.b16 %v4459, %v4457
    %v4506 = vpack.c.b16 %v4462, %v4460
    %v4507 = vpack.c.b16 %v4463, %v4461
    %v4508 = vpack.c.b16 %v4466, %v4464
    %v4509 = vpack.c.b16 %v4467, %v4465
    %v4510 = vpack.c.b16 %v4470, %v4468
    %v4511 = vpack.c.b16 %v4471, %v4469
    %v4512 = vpack.c.b16 %v4474, %v4472
    %v4513 = vpack.c.b16 %v4475, %v4473
    %v4514 = vpack.c.b16 %v4478, %v4476
    %v4515 = vpack.c.b16 %v4479, %v4477
    %v4516 = vpack.c.b16 %v4482, %v4480
    %v4517 = vpack.c.b16 %v4483, %v4481
    %v4518 = vpack.c.b16 %v4486, %v4484
    %v4519 = vpack.c.b16 %v4487, %v4485
    %v4520 = vpack.c.b16 %v4490, %v4488
    %v4521 = vpack.c.b16 %v4491, %v4489
    %v4522 = vpack.c.b16 %v4494, %v4492
    %v4523 = vpack.c.b16 %v4495, %v4493
    %4552 = vmatprep.subr.bf16.mxu0 %v4497
    %4553 = vmatpush1.bf16.msra.mxu0 %v4496
    %4554 = vmatprep.subr.bf16.mxu0 %v4499
    %4555 = vmatpush1.bf16.msra.mxu0 %v4498
    %4556 = vmatprep.subr.bf16.mxu0 %v4501
    %4557 = vmatpush1.bf16.msra.mxu0 %v4500
    %4558 = vmatprep.subr.bf16.mxu0 %v4503
    %4559 = vmatpush1.bf16.msra.mxu0 %v4502
    %4560 = vmatprep.subr.bf16.mxu0 %v4505
    %4561 = vmatpush1.bf16.msra.mxu0 %v4504
    %4562 = vmatprep.subr.bf16.mxu0 %v4507
    %4563 = vmatpush1.bf16.msra.mxu0 %v4506
    %4564 = vmatprep.subr.bf16.mxu0 %v4509
    %4565 = vmatpush1.bf16.msra.mxu0 %v4508
    %4566 = vmatprep.subr.bf16.mxu0 %v4511
    %4567 = vmatpush1.bf16.msra.mxu0 %v4510
    %4568 = vmatprep.subr.bf16.mxu0 %v4513
    %4569 = vmatpush1.bf16.msra.mxu0 %v4512
    %4570 = vmatprep.subr.bf16.mxu0 %v4515
    %4571 = vmatpush1.bf16.msra.mxu0 %v4514
    %4572 = vmatprep.subr.bf16.mxu0 %v4517
    %4573 = vmatpush1.bf16.msra.mxu0 %v4516
    %4574 = vmatprep.subr.bf16.mxu0 %v4519
    %4575 = vmatpush1.bf16.msra.mxu0 %v4518
    %4576 = vmatprep.subr.bf16.mxu0 %v4521
    %4577 = vmatpush1.bf16.msra.mxu0 %v4520
    %4578 = vmatprep.subr.bf16.mxu0 %v4523
    %4579 = vmatpush1.bf16.msra.mxu0 %v4522
    %4580 = vmatprep.subr.bf16.mxu0 0
    %4581 = vmatpush1.bf16.msra.mxu0 0
    %4582 = vmatprep.subr.bf16.mxu0 0
    %4583 = vmatpush1.bf16.msra.mxu0 0
    %4584 = vmatprep.mubr.bf16.mxu0 %v4317
    %4585 = vmatmul.mubr.bf16.gmra.mrb[0].mxu0 %v4115
    %v4586 = vpop.f32.mrb[0].mxu0
    %v4587 = vadd.f32 0.0, %v4586
    %v4588 = vpop.f32.mrb[0].mxu0
    %v4589 = vadd.f32 0.0, %v4588
    %v4590 = vpop.f32.mrb[0].mxu0
    %v4591 = vadd.f32 0.0, %v4590
    %v4592 = vpop.f32.mrb[0].mxu0
    %v4593 = vadd.f32 0.0, %v4592
    %4594 = vmatprep.mubr.bf16.mxu0 %v4320
    %4595 = vmatmul.mubr.bf16.gmra.mrb[0].mxu0 %v4172
    %v4596 = vpop.f32.mrb[0].mxu0
    %v4597 = vadd.f32 0.0, %v4596
    %v4598 = vpop.f32.mrb[0].mxu0
    %v4599 = vadd.f32 0.0, %v4598
    %v4600 = vpop.f32.mrb[0].mxu0
    %v4601 = vadd.f32 0.0, %v4600
    %v4602 = vpop.f32.mrb[0].mxu0
    %v4603 = vadd.f32 0.0, %v4602
    %4604 = vdwg.mxu0
    %v4605 = vadd.f32 %v3985, %v4587
    %v4606 = vadd.f32 %v3986, %v4589
    %v4607 = vadd.f32 %v3987, %v4591
    %v4608 = vadd.f32 %v3988, %v4593
    %v4609 = vadd.f32 %v3989, %v4597
    %v4610 = vadd.f32 %v3990, %v4599
    %v4611 = vadd.f32 %v3991, %v4601
    %v4612 = vadd.f32 %v3992, %v4603
    %s4613 = scalar_lea.vmem [#allocation7], 896
    %v4614 = vld [vmem:[%s4613] sm:$0xff]
    %v4615 = vld [vmem:[%s4613 + $0x8] sm:$0xff]
    %v4616 = vld [vmem:[%s4613 + $0x10] sm:$0xff]
    %v4617 = vld [vmem:[%s4613 + $0x18] sm:$0xff]
    %v4618 = vld [vmem:[%s4613 + $0x20] sm:$0xff]
    %v4619 = vld [vmem:[%s4613 + $0x28] sm:$0xff]
    %v4620 = vld [vmem:[%s4613 + $0x30] sm:$0xff]
    %v4621 = vld [vmem:[%s4613 + $0x38] sm:$0xff]
    %v4622 = vld [vmem:[%s4613 + $0x40] sm:$0xff]
    %v4623 = vld [vmem:[%s4613 + $0x48] sm:$0xff]
    %v4624 = vld [vmem:[%s4613 + $0x50] sm:$0xff]
    %v4625 = vld [vmem:[%s4613 + $0x58] sm:$0xff]
    %v4626 = vld [vmem:[%s4613 + $0x60] sm:$0xff]
    %v4627 = vld [vmem:[%s4613 + $0x68] sm:$0xff]
    %v4628 = vld [vmem:[%s4613 + $0x70] sm:$0xff]
    %v4629 = vld [vmem:[%s4613 + $0x78] sm:$0xff]
    %v4630 = vld [vmem:[%s4613 + $0x80] sm:$0xff]
    %v4631 = vld [vmem:[%s4613 + $0x88] sm:$0xff]
    %v4632 = vld [vmem:[%s4613 + $0x90] sm:$0xff]
    %v4633 = vld [vmem:[%s4613 + $0x98] sm:$0xff]
    %v4634 = vld [vmem:[%s4613 + $0xa0] sm:$0xff]
    %v4635 = vld [vmem:[%s4613 + $0xa8] sm:$0xff]
    %v4636 = vld [vmem:[%s4613 + $0xb0] sm:$0xff]
    %v4637 = vld [vmem:[%s4613 + $0xb8] sm:$0xff]
    %v4638 = vld [vmem:[%s4613 + $0xc0] sm:$0xff]
    %v4639 = vld [vmem:[%s4613 + $0xc8] sm:$0xff]
    %v4640 = vld [vmem:[%s4613 + $0xd0] sm:$0xff]
    %v4641 = vld [vmem:[%s4613 + $0xd8] sm:$0xff]
    %v4642 = vcombine.low %v2071, %v2179
    %v4643 = vcombine.low %v4008, %v2119
    %v4645 = vunpack.c.l.s4 1966171168
    %v4646 = vunpack.c.0.s8 %v4645
    %v4647 = vlaneseq
    %v4648 = vshrl.u32 %v4647, 7
    %v4649 = vsub.s32 %v4646, %v4648
    %v4650 = vrot.slane %v4642, %v4649
    %v4652 = vunpack.c.l.s4 1966171168
    %v4653 = vunpack.c.0.s8 %v4652
    %v4654 = vlaneseq
    %v4655 = vshrl.u32 %v4654, 7
    %v4656 = vsub.s32 %v4653, %v4655
    %v4657 = vrot.slane %v4643, %v4656
    %v4658 = vcombine.low %v2680, %v2687
    %v4659 = vcombine.high %v2680, %v2687
    %v4660 = vcombine.low %v4650, %v4657
    %v4661 = vcombine.high %v4650, %v4657
    %v4663 = vunpack.c.l.s4 1966171168
    %v4664 = vunpack.c.0.s8 %v4663
    %v4665 = vlaneseq
    %v4666 = vshrl.u32 %v4665, 7
    %v4667 = vsub.s32 %v4664, %v4666
    %v4668 = vrot.slane %v4658, %v4667
    %v4670 = vunpack.c.l.s4 1966171168
    %v4671 = vunpack.c.0.s8 %v4670
    %v4672 = vlaneseq
    %v4673 = vshrl.u32 %v4672, 7
    %v4674 = vsub.s32 %v4671, %v4673
    %v4675 = vrot.slane %v4659, %v4674
    %v4677 = vunpack.c.l.s4 1966171168
    %v4678 = vunpack.c.0.s8 %v4677
    %v4679 = vlaneseq
    %v4680 = vshrl.u32 %v4679, 7
    %v4681 = vsub.s32 %v4678, %v4680
    %v4682 = vrot.slane %v4660, %v4681
    %v4684 = vunpack.c.l.s4 1966171168
    %v4685 = vunpack.c.0.s8 %v4684
    %v4686 = vlaneseq
    %v4687 = vshrl.u32 %v4686, 7
    %v4688 = vsub.s32 %v4685, %v4687
    %v4689 = vrot.slane %v4661, %v4688
    %v4690 = vcombine.low %v4668, %v4682
    %v4691 = vcombine.low %v4675, %v4689
    %v4692 = vcombine.low %v2180, %v4008
    %v4694 = vunpack.c.l.s4 1966171168
    %v4695 = vunpack.c.0.s8 %v4694
    %v4696 = vlaneseq
    %v4697 = vshrl.u32 %v4696, 7
    %v4698 = vsub.s32 %v4695, %v4697
    %v4699 = vrot.slane %v4692, %v4698
    %v4700 = vcombine.low %v2745, %v2752
    %v4701 = vcombine.high %v2745, %v2752
    %v4702 = vcombine.high %v4699, %v4699
    %v4704 = vunpack.c.l.s4 1966171168
    %v4705 = vunpack.c.0.s8 %v4704
    %v4706 = vlaneseq
    %v4707 = vshrl.u32 %v4706, 7
    %v4708 = vsub.s32 %v4705, %v4707
    %v4709 = vrot.slane %v4700, %v4708
    %v4711 = vunpack.c.l.s4 1966171168
    %v4712 = vunpack.c.0.s8 %v4711
    %v4713 = vlaneseq
    %v4714 = vshrl.u32 %v4713, 7
    %v4715 = vsub.s32 %v4712, %v4714
    %v4716 = vrot.slane %v4701, %v4715
    %v4718 = vunpack.c.l.s4 1966171168
    %v4719 = vunpack.c.0.s8 %v4718
    %v4720 = vlaneseq
    %v4721 = vshrl.u32 %v4720, 7
    %v4722 = vsub.s32 %v4719, %v4721
    %v4723 = vrot.slane %v4699, %v4722
    %v4725 = vunpack.c.l.s4 1966171168
    %v4726 = vunpack.c.0.s8 %v4725
    %v4727 = vlaneseq
    %v4728 = vshrl.u32 %v4727, 7
    %v4729 = vsub.s32 %v4726, %v4728
    %v4730 = vrot.slane %v4702, %v4729
    %v4731 = vcombine.low %v4709, %v4723
    %v4732 = vcombine.low %v4716, %v4730
    %v4763 = vunpack.c.l.b16 %v4614
    %v4764 = vunpack.c.h.b16 %v4614
    %v4765 = vunpack.c.l.b16 %v4615
    %v4766 = vunpack.c.h.b16 %v4615
    %v4767 = vunpack.c.l.b16 %v4616
    %v4768 = vunpack.c.h.b16 %v4616
    %v4769 = vunpack.c.l.b16 %v4617
    %v4770 = vunpack.c.h.b16 %v4617
    %v4771 = vunpack.c.l.b16 %v4618
    %v4772 = vunpack.c.h.b16 %v4618
    %v4773 = vunpack.c.l.b16 %v4619
    %v4774 = vunpack.c.h.b16 %v4619
    %v4775 = vunpack.c.l.b16 %v4620
    %v4776 = vunpack.c.h.b16 %v4620
    %v4777 = vunpack.c.l.b16 %v4621
    %v4778 = vunpack.c.h.b16 %v4621
    %v4779 = vunpack.c.l.b16 %v4622
    %v4780 = vunpack.c.h.b16 %v4622
    %v4781 = vunpack.c.l.b16 %v4623
    %v4782 = vunpack.c.h.b16 %v4623
    %v4783 = vunpack.c.l.b16 %v4624
    %v4784 = vunpack.c.h.b16 %v4624
    %v4785 = vunpack.c.l.b16 %v4625
    %v4786 = vunpack.c.h.b16 %v4625
    %v4787 = vunpack.c.l.b16 %v4626
    %v4788 = vunpack.c.h.b16 %v4626
    %v4789 = vunpack.c.l.b16 %v4627
    %v4790 = vunpack.c.h.b16 %v4627
    %v4791 = vunpack.c.l.b16 %v4628
    %v4792 = vunpack.c.h.b16 %v4628
    %v4793 = vunpack.c.l.b16 %v4629
    %v4794 = vunpack.c.h.b16 %v4629
    %v4795 = vunpack.c.l.b16 %v4630
    %v4796 = vunpack.c.h.b16 %v4630
    %v4797 = vunpack.c.l.b16 %v4631
    %v4798 = vunpack.c.h.b16 %v4631
    %v4799 = vunpack.c.l.b16 %v4632
    %v4800 = vunpack.c.h.b16 %v4632
    %v4801 = vunpack.c.l.b16 %v4633
    %v4802 = vunpack.c.h.b16 %v4633
    %v4803 = vunpack.c.l.b16 %v4634
    %v4804 = vunpack.c.h.b16 %v4634
    %v4805 = vunpack.c.l.b16 %v4635
    %v4806 = vunpack.c.h.b16 %v4635
    %v4807 = vunpack.c.l.b16 %v4636
    %v4808 = vunpack.c.h.b16 %v4636
    %v4809 = vunpack.c.l.b16 %v4637
    %v4810 = vunpack.c.h.b16 %v4637
    %v4811 = vunpack.c.l.b16 %v4638
    %v4812 = vunpack.c.h.b16 %v4638
    %v4813 = vunpack.c.l.b16 %v4639
    %v4814 = vunpack.c.h.b16 %v4639
    %v4815 = vunpack.c.l.b16 %v4640
    %v4816 = vunpack.c.h.b16 %v4640
    %v4817 = vunpack.c.l.b16 %v4641
    %v4818 = vunpack.c.h.b16 %v4641
    %v4819 = vpack.c.b16 %v4765, %v4763
    %v4820 = vpack.c.b16 %v4766, %v4764
    %v4821 = vpack.c.b16 %v4769, %v4767
    %v4822 = vpack.c.b16 %v4770, %v4768
    %v4823 = vpack.c.b16 %v4773, %v4771
    %v4824 = vpack.c.b16 %v4774, %v4772
    %v4825 = vpack.c.b16 %v4777, %v4775
    %v4826 = vpack.c.b16 %v4778, %v4776
    %v4827 = vpack.c.b16 %v4781, %v4779
    %v4828 = vpack.c.b16 %v4782, %v4780
    %v4829 = vpack.c.b16 %v4785, %v4783
    %v4830 = vpack.c.b16 %v4786, %v4784
    %v4831 = vpack.c.b16 %v4789, %v4787
    %v4832 = vpack.c.b16 %v4790, %v4788
    %v4833 = vpack.c.b16 %v4793, %v4791
    %v4834 = vpack.c.b16 %v4794, %v4792
    %v4835 = vpack.c.b16 %v4797, %v4795
    %v4836 = vpack.c.b16 %v4798, %v4796
    %v4837 = vpack.c.b16 %v4801, %v4799
    %v4838 = vpack.c.b16 %v4802, %v4800
    %v4839 = vpack.c.b16 %v4805, %v4803
    %v4840 = vpack.c.b16 %v4806, %v4804
    %v4841 = vpack.c.b16 %v4809, %v4807
    %v4842 = vpack.c.b16 %v4810, %v4808
    %v4843 = vpack.c.b16 %v4813, %v4811
    %v4844 = vpack.c.b16 %v4814, %v4812
    %v4845 = vpack.c.b16 %v4817, %v4815
    %v4846 = vpack.c.b16 %v4818, %v4816
    %v4876 = vsel %vm234, %v4691, 0
    %v4879 = vsel %vm234, %v4732, 0
    %4881 = vmatprep.subr.bf16.mxu0 %v4820
    %4882 = vmatpush1.bf16.msra.mxu0 %v4819
    %4883 = vmatprep.subr.bf16.mxu0 %v4822
    %4884 = vmatpush1.bf16.msra.mxu0 %v4821
    %4885 = vmatprep.subr.bf16.mxu0 %v4824
    %4886 = vmatpush1.bf16.msra.mxu0 %v4823
    %4887 = vmatprep.subr.bf16.mxu0 %v4826
    %4888 = vmatpush1.bf16.msra.mxu0 %v4825
    %4889 = vmatprep.subr.bf16.mxu0 %v4828
    %4890 = vmatpush1.bf16.msra.mxu0 %v4827
    %4891 = vmatprep.subr.bf16.mxu0 %v4830
    %4892 = vmatpush1.bf16.msra.mxu0 %v4829
    %4893 = vmatprep.subr.bf16.mxu0 %v4832
    %4894 = vmatpush1.bf16.msra.mxu0 %v4831
    %4895 = vmatprep.subr.bf16.mxu0 %v4834
    %4896 = vmatpush1.bf16.msra.mxu0 %v4833
    %4897 = vmatprep.subr.bf16.mxu0 %v4836
    %4898 = vmatpush1.bf16.msra.mxu0 %v4835
    %4899 = vmatprep.subr.bf16.mxu0 %v4838
    %4900 = vmatpush1.bf16.msra.mxu0 %v4837
    %4901 = vmatprep.subr.bf16.mxu0 %v4840
    %4902 = vmatpush1.bf16.msra.mxu0 %v4839
    %4903 = vmatprep.subr.bf16.mxu0 %v4842
    %4904 = vmatpush1.bf16.msra.mxu0 %v4841
    %4905 = vmatprep.subr.bf16.mxu0 %v4844
    %4906 = vmatpush1.bf16.msra.mxu0 %v4843
    %4907 = vmatprep.subr.bf16.mxu0 %v4846
    %4908 = vmatpush1.bf16.msra.mxu0 %v4845
    %4909 = vmatprep.subr.bf16.mxu0 0
    %4910 = vmatpush1.bf16.msra.mxu0 0
    %4911 = vmatprep.subr.bf16.mxu0 0
    %4912 = vmatpush1.bf16.msra.mxu0 0
    %4913 = vmatprep.mubr.bf16.mxu0 %v4876
    %4914 = vmatmul.mubr.bf16.gmra.mrb[0].mxu0 %v4690
    %v4915 = vpop.f32.mrb[0].mxu0
    %v4916 = vadd.f32 0.0, %v4915
    %v4917 = vpop.f32.mrb[0].mxu0
    %v4918 = vadd.f32 0.0, %v4917
    %v4919 = vpop.f32.mrb[0].mxu0
    %v4920 = vadd.f32 0.0, %v4919
    %v4921 = vpop.f32.mrb[0].mxu0
    %v4922 = vadd.f32 0.0, %v4921
    %4923 = vmatprep.mubr.bf16.mxu0 %v4879
    %4924 = vmatmul.mubr.bf16.gmra.mrb[0].mxu0 %v4731
    %v4925 = vpop.f32.mrb[0].mxu0
    %v4926 = vadd.f32 0.0, %v4925
    %v4927 = vpop.f32.mrb[0].mxu0
    %v4928 = vadd.f32 0.0, %v4927
    %v4929 = vpop.f32.mrb[0].mxu0
    %v4930 = vadd.f32 0.0, %v4929
    %v4931 = vpop.f32.mrb[0].mxu0
    %v4932 = vadd.f32 0.0, %v4931
    %4933 = vdwg.mxu0
    %v4934 = vadd.f32 %v4375, %v4916
    %v4935 = vadd.f32 %v4376, %v4918
    %v4936 = vadd.f32 %v4377, %v4920
    %v4937 = vadd.f32 %v4378, %v4922
    %v4938 = vadd.f32 %v4379, %v4926
    %v4939 = vadd.f32 %v4380, %v4928
    %v4940 = vadd.f32 %v4381, %v4930
    %v4941 = vadd.f32 %v4382, %v4932
    %s4942 = scalar_lea.vmem [#allocation7], 2016
    %v4943 = vld [vmem:[%s4942] sm:$0xff]
    %v4944 = vld [vmem:[%s4942 + $0x8] sm:$0xff]
    %v4945 = vld [vmem:[%s4942 + $0x10] sm:$0xff]
    %v4946 = vld [vmem:[%s4942 + $0x18] sm:$0xff]
    %v4947 = vld [vmem:[%s4942 + $0x20] sm:$0xff]
    %v4948 = vld [vmem:[%s4942 + $0x28] sm:$0xff]
    %v4949 = vld [vmem:[%s4942 + $0x30] sm:$0xff]
    %v4950 = vld [vmem:[%s4942 + $0x38] sm:$0xff]
    %v4951 = vld [vmem:[%s4942 + $0x40] sm:$0xff]
    %v4952 = vld [vmem:[%s4942 + $0x48] sm:$0xff]
    %v4953 = vld [vmem:[%s4942 + $0x50] sm:$0xff]
    %v4954 = vld [vmem:[%s4942 + $0x58] sm:$0xff]
    %v4955 = vld [vmem:[%s4942 + $0x60] sm:$0xff]
    %v4956 = vld [vmem:[%s4942 + $0x68] sm:$0xff]
    %v4957 = vld [vmem:[%s4942 + $0x70] sm:$0xff]
    %v4958 = vld [vmem:[%s4942 + $0x78] sm:$0xff]
    %v4959 = vld [vmem:[%s4942 + $0x80] sm:$0xff]
    %v4960 = vld [vmem:[%s4942 + $0x88] sm:$0xff]
    %v4961 = vld [vmem:[%s4942 + $0x90] sm:$0xff]
    %v4962 = vld [vmem:[%s4942 + $0x98] sm:$0xff]
    %v4963 = vld [vmem:[%s4942 + $0xa0] sm:$0xff]
    %v4964 = vld [vmem:[%s4942 + $0xa8] sm:$0xff]
    %v4965 = vld [vmem:[%s4942 + $0xb0] sm:$0xff]
    %v4966 = vld [vmem:[%s4942 + $0xb8] sm:$0xff]
    %v4967 = vld [vmem:[%s4942 + $0xc0] sm:$0xff]
    %v4968 = vld [vmem:[%s4942 + $0xc8] sm:$0xff]
    %v4969 = vld [vmem:[%s4942 + $0xd0] sm:$0xff]
    %v4970 = vld [vmem:[%s4942 + $0xd8] sm:$0xff]
    %v4999 = vunpack.c.l.b16 %v4943
    %v5000 = vunpack.c.h.b16 %v4943
    %v5001 = vunpack.c.l.b16 %v4944
    %v5002 = vunpack.c.h.b16 %v4944
    %v5003 = vunpack.c.l.b16 %v4945
    %v5004 = vunpack.c.h.b16 %v4945
    %v5005 = vunpack.c.l.b16 %v4946
    %v5006 = vunpack.c.h.b16 %v4946
    %v5007 = vunpack.c.l.b16 %v4947
    %v5008 = vunpack.c.h.b16 %v4947
    %v5009 = vunpack.c.l.b16 %v4948
    %v5010 = vunpack.c.h.b16 %v4948
    %v5011 = vunpack.c.l.b16 %v4949
    %v5012 = vunpack.c.h.b16 %v4949
    %v5013 = vunpack.c.l.b16 %v4950
    %v5014 = vunpack.c.h.b16 %v4950
    %v5015 = vunpack.c.l.b16 %v4951
    %v5016 = vunpack.c.h.b16 %v4951
    %v5017 = vunpack.c.l.b16 %v4952
    %v5018 = vunpack.c.h.b16 %v4952
    %v5019 = vunpack.c.l.b16 %v4953
    %v5020 = vunpack.c.h.b16 %v4953
    %v5021 = vunpack.c.l.b16 %v4954
    %v5022 = vunpack.c.h.b16 %v4954
    %v5023 = vunpack.c.l.b16 %v4955
    %v5024 = vunpack.c.h.b16 %v4955
    %v5025 = vunpack.c.l.b16 %v4956
    %v5026 = vunpack.c.h.b16 %v4956
    %v5027 = vunpack.c.l.b16 %v4957
    %v5028 = vunpack.c.h.b16 %v4957
    %v5029 = vunpack.c.l.b16 %v4958
    %v5030 = vunpack.c.h.b16 %v4958
    %v5031 = vunpack.c.l.b16 %v4959
    %v5032 = vunpack.c.h.b16 %v4959
    %v5033 = vunpack.c.l.b16 %v4960
    %v5034 = vunpack.c.h.b16 %v4960
    %v5035 = vunpack.c.l.b16 %v4961
    %v5036 = vunpack.c.h.b16 %v4961
    %v5037 = vunpack.c.l.b16 %v4962
    %v5038 = vunpack.c.h.b16 %v4962
    %v5039 = vunpack.c.l.b16 %v4963
    %v5040 = vunpack.c.h.b16 %v4963
    %v5041 = vunpack.c.l.b16 %v4964
    %v5042 = vunpack.c.h.b16 %v4964
    %v5043 = vunpack.c.l.b16 %v4965
    %v5044 = vunpack.c.h.b16 %v4965
    %v5045 = vunpack.c.l.b16 %v4966
    %v5046 = vunpack.c.h.b16 %v4966
    %v5047 = vunpack.c.l.b16 %v4967
    %v5048 = vunpack.c.h.b16 %v4967
    %v5049 = vunpack.c.l.b16 %v4968
    %v5050 = vunpack.c.h.b16 %v4968
    %v5051 = vunpack.c.l.b16 %v4969
    %v5052 = vunpack.c.h.b16 %v4969
    %v5053 = vunpack.c.l.b16 %v4970
    %v5054 = vunpack.c.h.b16 %v4970
    %v5055 = vpack.c.b16 %v5001, %v4999
    %v5056 = vpack.c.b16 %v5002, %v5000
    %v5057 = vpack.c.b16 %v5005, %v5003
    %v5058 = vpack.c.b16 %v5006, %v5004
    %v5059 = vpack.c.b16 %v5009, %v5007
    %v5060 = vpack.c.b16 %v5010, %v5008
    %v5061 = vpack.c.b16 %v5013, %v5011
    %v5062 = vpack.c.b16 %v5014, %v5012
    %v5063 = vpack.c.b16 %v5017, %v5015
    %v5064 = vpack.c.b16 %v5018, %v5016
    %v5065 = vpack.c.b16 %v5021, %v5019
    %v5066 = vpack.c.b16 %v5022, %v5020
    %v5067 = vpack.c.b16 %v5025, %v5023
    %v5068 = vpack.c.b16 %v5026, %v5024
    %v5069 = vpack.c.b16 %v5029, %v5027
    %v5070 = vpack.c.b16 %v5030, %v5028
    %v5071 = vpack.c.b16 %v5033, %v5031
    %v5072 = vpack.c.b16 %v5034, %v5032
    %v5073 = vpack.c.b16 %v5037, %v5035
    %v5074 = vpack.c.b16 %v5038, %v5036
    %v5075 = vpack.c.b16 %v5041, %v5039
    %v5076 = vpack.c.b16 %v5042, %v5040
    %v5077 = vpack.c.b16 %v5045, %v5043
    %v5078 = vpack.c.b16 %v5046, %v5044
    %v5079 = vpack.c.b16 %v5049, %v5047
    %v5080 = vpack.c.b16 %v5050, %v5048
    %v5081 = vpack.c.b16 %v5053, %v5051
    %v5082 = vpack.c.b16 %v5054, %v5052
    %5111 = vmatprep.subr.bf16.mxu0 %v5056
    %5112 = vmatpush1.bf16.msra.mxu0 %v5055
    %5113 = vmatprep.subr.bf16.mxu0 %v5058
    %5114 = vmatpush1.bf16.msra.mxu0 %v5057
    %5115 = vmatprep.subr.bf16.mxu0 %v5060
    %5116 = vmatpush1.bf16.msra.mxu0 %v5059
    %5117 = vmatprep.subr.bf16.mxu0 %v5062
    %5118 = vmatpush1.bf16.msra.mxu0 %v5061
    %5119 = vmatprep.subr.bf16.mxu0 %v5064
    %5120 = vmatpush1.bf16.msra.mxu0 %v5063
    %5121 = vmatprep.subr.bf16.mxu0 %v5066
    %5122 = vmatpush1.bf16.msra.mxu0 %v5065
    %5123 = vmatprep.subr.bf16.mxu0 %v5068
    %5124 = vmatpush1.bf16.msra.mxu0 %v5067
    %5125 = vmatprep.subr.bf16.mxu0 %v5070
    %5126 = vmatpush1.bf16.msra.mxu0 %v5069
    %5127 = vmatprep.subr.bf16.mxu0 %v5072
    %5128 = vmatpush1.bf16.msra.mxu0 %v5071
    %5129 = vmatprep.subr.bf16.mxu0 %v5074
    %5130 = vmatpush1.bf16.msra.mxu0 %v5073
    %5131 = vmatprep.subr.bf16.mxu0 %v5076
    %5132 = vmatpush1.bf16.msra.mxu0 %v5075
    %5133 = vmatprep.subr.bf16.mxu0 %v5078
    %5134 = vmatpush1.bf16.msra.mxu0 %v5077
    %5135 = vmatprep.subr.bf16.mxu0 %v5080
    %5136 = vmatpush1.bf16.msra.mxu0 %v5079
    %5137 = vmatprep.subr.bf16.mxu0 %v5082
    %5138 = vmatpush1.bf16.msra.mxu0 %v5081
    %5139 = vmatprep.subr.bf16.mxu0 0
    %5140 = vmatpush1.bf16.msra.mxu0 0
    %5141 = vmatprep.subr.bf16.mxu0 0
    %5142 = vmatpush1.bf16.msra.mxu0 0
    %5143 = vmatprep.mubr.bf16.mxu0 %v4876
    %5144 = vmatmul.mubr.bf16.gmra.mrb[0].mxu0 %v4690
    %v5145 = vpop.f32.mrb[0].mxu0
    %v5146 = vadd.f32 0.0, %v5145
    %v5147 = vpop.f32.mrb[0].mxu0
    %v5148 = vadd.f32 0.0, %v5147
    %v5149 = vpop.f32.mrb[0].mxu0
    %v5150 = vadd.f32 0.0, %v5149
    %v5151 = vpop.f32.mrb[0].mxu0
    %v5152 = vadd.f32 0.0, %v5151
    %5153 = vmatprep.mubr.bf16.mxu0 %v4879
    %5154 = vmatmul.mubr.bf16.gmra.mrb[0].mxu0 %v4731
    %v5155 = vpop.f32.mrb[0].mxu0
    %v5156 = vadd.f32 0.0, %v5155
    %v5157 = vpop.f32.mrb[0].mxu0
    %v5158 = vadd.f32 0.0, %v5157
    %v5159 = vpop.f32.mrb[0].mxu0
    %v5160 = vadd.f32 0.0, %v5159
    %v5161 = vpop.f32.mrb[0].mxu0
    %v5162 = vadd.f32 0.0, %v5161
    %5163 = vdwg.mxu0
    %v5164 = vadd.f32 %v4605, %v5146
    %v5165 = vadd.f32 %v4606, %v5148
    %v5166 = vadd.f32 %v4607, %v5150
    %v5167 = vadd.f32 %v4608, %v5152
    %v5168 = vadd.f32 %v4609, %v5156
    %v5169 = vadd.f32 %v4610, %v5158
    %v5170 = vadd.f32 %v4611, %v5160
    %v5171 = vadd.f32 %v4612, %v5162
    %v5172 = vmax.f32 %v4934, %v5164
    %v5173 = vmax.f32 %v4935, %v5165
    %v5174 = vmax.f32 %v4936, %v5166
    %v5175 = vmax.f32 %v4937, %v5167
    %v5176 = vmax.f32 %v4938, %v5168
    %v5177 = vmax.f32 %v4939, %v5169
    %v5178 = vmax.f32 %v4940, %v5170
    %v5179 = vmax.f32 %v4941, %v5171
    %v5188 = vcombine.low %v5172, %v5173
    %v5189 = vcombine.high %v5172, %v5173
    %v5191 = vunpack.c.l.s4 1983009808
    %v5192 = vunpack.c.0.s8 %v5191
    %v5193 = vlaneseq
    %v5194 = vshrl.u32 %v5193, 7
    %v5195 = vsub.s32 %v5192, %v5194
    %v5196 = vrot.slane %v5188, %v5195
    %v5198 = vunpack.c.l.s4 1983009808
    %v5199 = vunpack.c.0.s8 %v5198
    %v5200 = vlaneseq
    %v5201 = vshrl.u32 %v5200, 7
    %v5202 = vsub.s32 %v5199, %v5201
    %v5203 = vrot.slane %v5189, %v5202
    %v5204 = vcombine.high %v5196, %v5196
    %v5205 = vcombine.high %v5203, %v5203
    %v5206 = vcombine.low %v5174, %v5175
    %v5207 = vcombine.high %v5174, %v5175
    %v5209 = vunpack.c.l.s4 1983009808
    %v5210 = vunpack.c.0.s8 %v5209
    %v5211 = vlaneseq
    %v5212 = vshrl.u32 %v5211, 7
    %v5213 = vsub.s32 %v5210, %v5212
    %v5214 = vrot.slane %v5206, %v5213
    %v5216 = vunpack.c.l.s4 1983009808
    %v5217 = vunpack.c.0.s8 %v5216
    %v5218 = vlaneseq
    %v5219 = vshrl.u32 %v5218, 7
    %v5220 = vsub.s32 %v5217, %v5219
    %v5221 = vrot.slane %v5207, %v5220
    %v5222 = vcombine.high %v5214, %v5214
    %v5223 = vcombine.high %v5221, %v5221
    %v5224 = vcombine.low %v5176, %v5177
    %v5225 = vcombine.high %v5176, %v5177
    %v5227 = vunpack.c.l.s4 1983009808
    %v5228 = vunpack.c.0.s8 %v5227
    %v5229 = vlaneseq
    %v5230 = vshrl.u32 %v5229, 7
    %v5231 = vsub.s32 %v5228, %v5230
    %v5232 = vrot.slane %v5224, %v5231
    %v5234 = vunpack.c.l.s4 1983009808
    %v5235 = vunpack.c.0.s8 %v5234
    %v5236 = vlaneseq
    %v5237 = vshrl.u32 %v5236, 7
    %v5238 = vsub.s32 %v5235, %v5237
    %v5239 = vrot.slane %v5225, %v5238
    %v5240 = vcombine.high %v5232, %v5232
    %v5241 = vcombine.high %v5239, %v5239
    %v5242 = vcombine.low %v5178, %v5179
    %v5244 = vunpack.c.l.s4 1983009808
    %v5245 = vunpack.c.0.s8 %v5244
    %v5246 = vlaneseq
    %v5247 = vshrl.u32 %v5246, 7
    %v5248 = vsub.s32 %v5245, %v5247
    %v5249 = vrot.slane %v5242, %v5248
    %v5250 = vcombine.high %v5249, %v5249
    %v5252 = vunpack.c.l.s4 1983009808
    %v5253 = vunpack.c.0.s8 %v5252
    %v5254 = vlaneseq
    %v5255 = vshrl.u32 %v5254, 7
    %v5256 = vsub.s32 %v5253, %v5255
    %v5257 = vrot.slane %v5196, %v5256
    %v5258 = vcombine.high %v5257, %v5257
    %v5260 = vunpack.c.l.s4 1983009808
    %v5261 = vunpack.c.0.s8 %v5260
    %v5262 = vlaneseq
    %v5263 = vshrl.u32 %v5262, 7
    %v5264 = vsub.s32 %v5261, %v5263
    %v5265 = vrot.slane %v5204, %v5264
    %v5266 = vcombine.high %v5265, %v5265
    %v5268 = vunpack.c.l.s4 1983009808
    %v5269 = vunpack.c.0.s8 %v5268
    %v5270 = vlaneseq
    %v5271 = vshrl.u32 %v5270, 7
    %v5272 = vsub.s32 %v5269, %v5271
    %v5273 = vrot.slane %v5203, %v5272
    %v5274 = vcombine.high %v5273, %v5273
    %v5276 = vunpack.c.l.s4 1983009808
    %v5277 = vunpack.c.0.s8 %v5276
    %v5278 = vlaneseq
    %v5279 = vshrl.u32 %v5278, 7
    %v5280 = vsub.s32 %v5277, %v5279
    %v5281 = vrot.slane %v5205, %v5280
    %v5282 = vcombine.high %v5281, %v5281
    %v5284 = vunpack.c.l.s4 1983009808
    %v5285 = vunpack.c.0.s8 %v5284
    %v5286 = vlaneseq
    %v5287 = vshrl.u32 %v5286, 7
    %v5288 = vsub.s32 %v5285, %v5287
    %v5289 = vrot.slane %v5214, %v5288
    %v5290 = vcombine.high %v5289, %v5289
    %v5292 = vunpack.c.l.s4 1983009808
    %v5293 = vunpack.c.0.s8 %v5292
    %v5294 = vlaneseq
    %v5295 = vshrl.u32 %v5294, 7
    %v5296 = vsub.s32 %v5293, %v5295
    %v5297 = vrot.slane %v5222, %v5296
    %v5298 = vcombine.high %v5297, %v5297
    %v5300 = vunpack.c.l.s4 1983009808
    %v5301 = vunpack.c.0.s8 %v5300
    %v5302 = vlaneseq
    %v5303 = vshrl.u32 %v5302, 7
    %v5304 = vsub.s32 %v5301, %v5303
    %v5305 = vrot.slane %v5221, %v5304
    %v5306 = vcombine.high %v5305, %v5305
    %v5308 = vunpack.c.l.s4 1983009808
    %v5309 = vunpack.c.0.s8 %v5308
    %v5310 = vlaneseq
    %v5311 = vshrl.u32 %v5310, 7
    %v5312 = vsub.s32 %v5309, %v5311
    %v5313 = vrot.slane %v5223, %v5312
    %v5314 = vcombine.high %v5313, %v5313
    %v5316 = vunpack.c.l.s4 1983009808
    %v5317 = vunpack.c.0.s8 %v5316
    %v5318 = vlaneseq
    %v5319 = vshrl.u32 %v5318, 7
    %v5320 = vsub.s32 %v5317, %v5319
    %v5321 = vrot.slane %v5232, %v5320
    %v5322 = vcombine.high %v5321, %v5321
    %v5324 = vunpack.c.l.s4 1983009808
    %v5325 = vunpack.c.0.s8 %v5324
    %v5326 = vlaneseq
    %v5327 = vshrl.u32 %v5326, 7
    %v5328 = vsub.s32 %v5325, %v5327
    %v5329 = vrot.slane %v5240, %v5328
    %v5330 = vcombine.high %v5329, %v5329
    %v5332 = vunpack.c.l.s4 1983009808
    %v5333 = vunpack.c.0.s8 %v5332
    %v5334 = vlaneseq
    %v5335 = vshrl.u32 %v5334, 7
    %v5336 = vsub.s32 %v5333, %v5335
    %v5337 = vrot.slane %v5239, %v5336
    %v5338 = vcombine.high %v5337, %v5337
    %v5340 = vunpack.c.l.s4 1983009808
    %v5341 = vunpack.c.0.s8 %v5340
    %v5342 = vlaneseq
    %v5343 = vshrl.u32 %v5342, 7
    %v5344 = vsub.s32 %v5341, %v5343
    %v5345 = vrot.slane %v5241, %v5344
    %v5346 = vcombine.high %v5345, %v5345
    %v5348 = vunpack.c.l.s4 1983009808
    %v5349 = vunpack.c.0.s8 %v5348
    %v5350 = vlaneseq
    %v5351 = vshrl.u32 %v5350, 7
    %v5352 = vsub.s32 %v5349, %v5351
    %v5353 = vrot.slane %v5249, %v5352
    %v5354 = vcombine.high %v5353, %v5353
    %v5356 = vunpack.c.l.s4 1983009808
    %v5357 = vunpack.c.0.s8 %v5356
    %v5358 = vlaneseq
    %v5359 = vshrl.u32 %v5358, 7
    %v5360 = vsub.s32 %v5357, %v5359
    %v5361 = vrot.slane %v5250, %v5360
    %v5362 = vcombine.high %v5361, %v5361
    %v5391 = vsel %vm1213, %v5257, -inf
    %v5392 = vrot.slane %v5391, 4
    %v5393 = vmax.f32 %v5391, %v5392
    %v5394 = vrot.slane %v5393, 2
    %v5395 = vmax.f32 %v5393, %v5394
    %v5396 = vrot.slane %v5395, 1
    %v5397 = vmax.f32 %v5395, %v5396
    %v5398 = vsel %vm1221, %v5258, -inf
    %v5399 = vrot.slane %v5398, 4
    %v5400 = vmax.f32 %v5398, %v5399
    %v5401 = vrot.slane %v5400, 2
    %v5402 = vmax.f32 %v5400, %v5401
    %v5403 = vrot.slane %v5402, 1
    %v5404 = vmax.f32 %v5402, %v5403
    %v5405 = vsel %vm1213, %v5265, -inf
    %v5406 = vrot.slane %v5405, 4
    %v5407 = vmax.f32 %v5405, %v5406
    %v5408 = vrot.slane %v5407, 2
    %v5409 = vmax.f32 %v5407, %v5408
    %v5410 = vrot.slane %v5409, 1
    %v5411 = vmax.f32 %v5409, %v5410
    %v5412 = vsel %vm1221, %v5266, -inf
    %v5413 = vrot.slane %v5412, 4
    %v5414 = vmax.f32 %v5412, %v5413
    %v5415 = vrot.slane %v5414, 2
    %v5416 = vmax.f32 %v5414, %v5415
    %v5417 = vrot.slane %v5416, 1
    %v5418 = vmax.f32 %v5416, %v5417
    %v5419 = vsel %vm1213, %v5273, -inf
    %v5420 = vrot.slane %v5419, 4
    %v5421 = vmax.f32 %v5419, %v5420
    %v5422 = vrot.slane %v5421, 2
    %v5423 = vmax.f32 %v5421, %v5422
    %v5424 = vrot.slane %v5423, 1
    %v5425 = vmax.f32 %v5423, %v5424
    %v5426 = vsel %vm1221, %v5274, -inf
    %v5427 = vrot.slane %v5426, 4
    %v5428 = vmax.f32 %v5426, %v5427
    %v5429 = vrot.slane %v5428, 2
    %v5430 = vmax.f32 %v5428, %v5429
    %v5431 = vrot.slane %v5430, 1
    %v5432 = vmax.f32 %v5430, %v5431
    %v5433 = vsel %vm1213, %v5281, -inf
    %v5434 = vrot.slane %v5433, 4
    %v5435 = vmax.f32 %v5433, %v5434
    %v5436 = vrot.slane %v5435, 2
    %v5437 = vmax.f32 %v5435, %v5436
    %v5438 = vrot.slane %v5437, 1
    %v5439 = vmax.f32 %v5437, %v5438
    %v5440 = vsel %vm1221, %v5282, -inf
    %v5441 = vrot.slane %v5440, 4
    %v5442 = vmax.f32 %v5440, %v5441
    %v5443 = vrot.slane %v5442, 2
    %v5444 = vmax.f32 %v5442, %v5443
    %v5445 = vrot.slane %v5444, 1
    %v5446 = vmax.f32 %v5444, %v5445
    %v5447 = vsel %vm1213, %v5289, -inf
    %v5448 = vrot.slane %v5447, 4
    %v5449 = vmax.f32 %v5447, %v5448
    %v5450 = vrot.slane %v5449, 2
    %v5451 = vmax.f32 %v5449, %v5450
    %v5452 = vrot.slane %v5451, 1
    %v5453 = vmax.f32 %v5451, %v5452
    %v5454 = vsel %vm1221, %v5290, -inf
    %v5455 = vrot.slane %v5454, 4
    %v5456 = vmax.f32 %v5454, %v5455
    %v5457 = vrot.slane %v5456, 2
    %v5458 = vmax.f32 %v5456, %v5457
    %v5459 = vrot.slane %v5458, 1
    %v5460 = vmax.f32 %v5458, %v5459
    %v5461 = vsel %vm1213, %v5297, -inf
    %v5462 = vrot.slane %v5461, 4
    %v5463 = vmax.f32 %v5461, %v5462
    %v5464 = vrot.slane %v5463, 2
    %v5465 = vmax.f32 %v5463, %v5464
    %v5466 = vrot.slane %v5465, 1
    %v5467 = vmax.f32 %v5465, %v5466
    %v5468 = vsel %vm1221, %v5298, -inf
    %v5469 = vrot.slane %v5468, 4
    %v5470 = vmax.f32 %v5468, %v5469
    %v5471 = vrot.slane %v5470, 2
    %v5472 = vmax.f32 %v5470, %v5471
    %v5473 = vrot.slane %v5472, 1
    %v5474 = vmax.f32 %v5472, %v5473
    %v5475 = vsel %vm1213, %v5305, -inf
    %v5476 = vrot.slane %v5475, 4
    %v5477 = vmax.f32 %v5475, %v5476
    %v5478 = vrot.slane %v5477, 2
    %v5479 = vmax.f32 %v5477, %v5478
    %v5480 = vrot.slane %v5479, 1
    %v5481 = vmax.f32 %v5479, %v5480
    %v5482 = vsel %vm1221, %v5306, -inf
    %v5483 = vrot.slane %v5482, 4
    %v5484 = vmax.f32 %v5482, %v5483
    %v5485 = vrot.slane %v5484, 2
    %v5486 = vmax.f32 %v5484, %v5485
    %v5487 = vrot.slane %v5486, 1
    %v5488 = vmax.f32 %v5486, %v5487
    %v5489 = vsel %vm1213, %v5313, -inf
    %v5490 = vrot.slane %v5489, 4
    %v5491 = vmax.f32 %v5489, %v5490
    %v5492 = vrot.slane %v5491, 2
    %v5493 = vmax.f32 %v5491, %v5492
    %v5494 = vrot.slane %v5493, 1
    %v5495 = vmax.f32 %v5493, %v5494
    %v5496 = vsel %vm1221, %v5314, -inf
    %v5497 = vrot.slane %v5496, 4
    %v5498 = vmax.f32 %v5496, %v5497
    %v5499 = vrot.slane %v5498, 2
    %v5500 = vmax.f32 %v5498, %v5499
    %v5501 = vrot.slane %v5500, 1
    %v5502 = vmax.f32 %v5500, %v5501
    %v5503 = vsel %vm1213, %v5321, -inf
    %v5504 = vrot.slane %v5503, 4
    %v5505 = vmax.f32 %v5503, %v5504
    %v5506 = vrot.slane %v5505, 2
    %v5507 = vmax.f32 %v5505, %v5506
    %v5508 = vrot.slane %v5507, 1
    %v5509 = vmax.f32 %v5507, %v5508
    %v5510 = vsel %vm1221, %v5322, -inf
    %v5511 = vrot.slane %v5510, 4
    %v5512 = vmax.f32 %v5510, %v5511
    %v5513 = vrot.slane %v5512, 2
    %v5514 = vmax.f32 %v5512, %v5513
    %v5515 = vrot.slane %v5514, 1
    %v5516 = vmax.f32 %v5514, %v5515
    %v5517 = vsel %vm1213, %v5329, -inf
    %v5518 = vrot.slane %v5517, 4
    %v5519 = vmax.f32 %v5517, %v5518
    %v5520 = vrot.slane %v5519, 2
    %v5521 = vmax.f32 %v5519, %v5520
    %v5522 = vrot.slane %v5521, 1
    %v5523 = vmax.f32 %v5521, %v5522
    %v5524 = vsel %vm1221, %v5330, -inf
    %v5525 = vrot.slane %v5524, 4
    %v5526 = vmax.f32 %v5524, %v5525
    %v5527 = vrot.slane %v5526, 2
    %v5528 = vmax.f32 %v5526, %v5527
    %v5529 = vrot.slane %v5528, 1
    %v5530 = vmax.f32 %v5528, %v5529
    %v5531 = vsel %vm1213, %v5337, -inf
    %v5532 = vrot.slane %v5531, 4
    %v5533 = vmax.f32 %v5531, %v5532
    %v5534 = vrot.slane %v5533, 2
    %v5535 = vmax.f32 %v5533, %v5534
    %v5536 = vrot.slane %v5535, 1
    %v5537 = vmax.f32 %v5535, %v5536
    %v5538 = vsel %vm1221, %v5338, -inf
    %v5539 = vrot.slane %v5538, 4
    %v5540 = vmax.f32 %v5538, %v5539
    %v5541 = vrot.slane %v5540, 2
    %v5542 = vmax.f32 %v5540, %v5541
    %v5543 = vrot.slane %v5542, 1
    %v5544 = vmax.f32 %v5542, %v5543
    %v5545 = vsel %vm1213, %v5345, -inf
    %v5546 = vrot.slane %v5545, 4
    %v5547 = vmax.f32 %v5545, %v5546
    %v5548 = vrot.slane %v5547, 2
    %v5549 = vmax.f32 %v5547, %v5548
    %v5550 = vrot.slane %v5549, 1
    %v5551 = vmax.f32 %v5549, %v5550
    %v5552 = vsel %vm1221, %v5346, -inf
    %v5553 = vrot.slane %v5552, 4
    %v5554 = vmax.f32 %v5552, %v5553
    %v5555 = vrot.slane %v5554, 2
    %v5556 = vmax.f32 %v5554, %v5555
    %v5557 = vrot.slane %v5556, 1
    %v5558 = vmax.f32 %v5556, %v5557
    %v5559 = vsel %vm1213, %v5353, -inf
    %v5560 = vrot.slane %v5559, 4
    %v5561 = vmax.f32 %v5559, %v5560
    %v5562 = vrot.slane %v5561, 2
    %v5563 = vmax.f32 %v5561, %v5562
    %v5564 = vrot.slane %v5563, 1
    %v5565 = vmax.f32 %v5563, %v5564
    %v5566 = vsel %vm1221, %v5354, -inf
    %v5567 = vrot.slane %v5566, 4
    %v5568 = vmax.f32 %v5566, %v5567
    %v5569 = vrot.slane %v5568, 2
    %v5570 = vmax.f32 %v5568, %v5569
    %v5571 = vrot.slane %v5570, 1
    %v5572 = vmax.f32 %v5570, %v5571
    %v5573 = vsel %vm1213, %v5361, -inf
    %v5574 = vrot.slane %v5573, 4
    %v5575 = vmax.f32 %v5573, %v5574
    %v5576 = vrot.slane %v5575, 2
    %v5577 = vmax.f32 %v5575, %v5576
    %v5578 = vrot.slane %v5577, 1
    %v5579 = vmax.f32 %v5577, %v5578
    %v5580 = vsel %vm1221, %v5362, -inf
    %v5581 = vrot.slane %v5580, 4
    %v5582 = vmax.f32 %v5580, %v5581
    %v5583 = vrot.slane %v5582, 2
    %v5584 = vmax.f32 %v5582, %v5583
    %v5585 = vrot.slane %v5584, 1
    %v5586 = vmax.f32 %v5584, %v5585
    %v5587 = vld [vmem:[#allocation8] sm:$0x3]
    %v5589 = vlaneseq
    %v5590 = vshrl.u32 %v5589, 7
    %v5591 = vsub.s32 0, %v5590
    %v5592 = vrot.slane %v5587, %v5591
    %v5593 = vlaneseq
    %v5594 = vshrl.u32 %v5593, 7
    %v5595 = vsub.s32 1, %v5594
    %v5596 = vrot.slane %v5587, %v5595
    %v5599 = vadd.f32 %v5397, %v5592
    %v5600 = vadd.f32 %v5404, %v5596
    %v5601 = vadd.f32 %v5411, %v5592
    %v5602 = vadd.f32 %v5418, %v5596
    %v5603 = vadd.f32 %v5425, %v5592
    %v5604 = vadd.f32 %v5432, %v5596
    %v5605 = vadd.f32 %v5439, %v5592
    %v5606 = vadd.f32 %v5446, %v5596
    %v5607 = vadd.f32 %v5453, %v5592
    %v5608 = vadd.f32 %v5460, %v5596
    %v5609 = vadd.f32 %v5467, %v5592
    %v5610 = vadd.f32 %v5474, %v5596
    %v5611 = vadd.f32 %v5481, %v5592
    %v5612 = vadd.f32 %v5488, %v5596
    %v5613 = vadd.f32 %v5495, %v5592
    %v5614 = vadd.f32 %v5502, %v5596
    %v5615 = vadd.f32 %v5509, %v5592
    %v5616 = vadd.f32 %v5516, %v5596
    %v5617 = vadd.f32 %v5523, %v5592
    %v5618 = vadd.f32 %v5530, %v5596
    %v5619 = vadd.f32 %v5537, %v5592
    %v5620 = vadd.f32 %v5544, %v5596
    %v5621 = vadd.f32 %v5551, %v5592
    %v5622 = vadd.f32 %v5558, %v5596
    %v5623 = vadd.f32 %v5565, %v5592
    %v5624 = vadd.f32 %v5572, %v5596
    %v5625 = vadd.f32 %v5579, %v5592
    %v5626 = vadd.f32 %v5586, %v5596
    %v5627 = vmax.f32 %v5599, 0.0
    %v5628 = vmax.f32 %v5600, 0.0
    %v5629 = vmax.f32 %v5601, 0.0
    %v5630 = vmax.f32 %v5602, 0.0
    %v5631 = vmax.f32 %v5603, 0.0
    %v5632 = vmax.f32 %v5604, 0.0
    %v5633 = vmax.f32 %v5605, 0.0
    %v5634 = vmax.f32 %v5606, 0.0
    %v5635 = vmax.f32 %v5607, 0.0
    %v5636 = vmax.f32 %v5608, 0.0
    %v5637 = vmax.f32 %v5609, 0.0
    %v5638 = vmax.f32 %v5610, 0.0
    %v5639 = vmax.f32 %v5611, 0.0
    %v5640 = vmax.f32 %v5612, 0.0
    %v5641 = vmax.f32 %v5613, 0.0
    %v5642 = vmax.f32 %v5614, 0.0
    %v5643 = vmax.f32 %v5615, 0.0
    %v5644 = vmax.f32 %v5616, 0.0
    %v5645 = vmax.f32 %v5617, 0.0
    %v5646 = vmax.f32 %v5618, 0.0
    %v5647 = vmax.f32 %v5619, 0.0
    %v5648 = vmax.f32 %v5620, 0.0
    %v5649 = vmax.f32 %v5621, 0.0
    %v5650 = vmax.f32 %v5622, 0.0
    %v5651 = vmax.f32 %v5623, 0.0
    %v5652 = vmax.f32 %v5624, 0.0
    %v5653 = vmax.f32 %v5625, 0.0
    %v5654 = vmax.f32 %v5626, 0.0
    %v5655 = vpack.c.bf16 %v5627, %v5627
    %v5656 = vpack.c.bf16 %v5628, %v5628
    %v5657 = vpack.c.bf16 %v5629, %v5629
    %v5658 = vpack.c.bf16 %v5630, %v5630
    %v5659 = vpack.c.bf16 %v5631, %v5631
    %v5660 = vpack.c.bf16 %v5632, %v5632
    %v5661 = vpack.c.bf16 %v5633, %v5633
    %v5662 = vpack.c.bf16 %v5634, %v5634
    %v5663 = vpack.c.bf16 %v5635, %v5635
    %v5664 = vpack.c.bf16 %v5636, %v5636
    %v5665 = vpack.c.bf16 %v5637, %v5637
    %v5666 = vpack.c.bf16 %v5638, %v5638
    %v5667 = vpack.c.bf16 %v5639, %v5639
    %v5668 = vpack.c.bf16 %v5640, %v5640
    %v5669 = vpack.c.bf16 %v5641, %v5641
    %v5670 = vpack.c.bf16 %v5642, %v5642
    %v5671 = vpack.c.bf16 %v5643, %v5643
    %v5672 = vpack.c.bf16 %v5644, %v5644
    %v5673 = vpack.c.bf16 %v5645, %v5645
    %v5674 = vpack.c.bf16 %v5646, %v5646
    %v5675 = vpack.c.bf16 %v5647, %v5647
    %v5676 = vpack.c.bf16 %v5648, %v5648
    %v5677 = vpack.c.bf16 %v5649, %v5649
    %v5678 = vpack.c.bf16 %v5650, %v5650
    %v5679 = vpack.c.bf16 %v5651, %v5651
    %v5680 = vpack.c.bf16 %v5652, %v5652
    %v5681 = vpack.c.bf16 %v5653, %v5653
    %v5682 = vpack.c.bf16 %v5654, %v5654
    %v5683 = vld [vmem:[#allocation10] sm:$0xf]
    %v5684 = vld [vmem:[#allocation10 + $0x4] sm:$0xf]
    %v5685 = vld [vmem:[#allocation10 + $0x8] sm:$0xf]
    %v5686 = vld [vmem:[#allocation10 + $0xc] sm:$0xf]
    %v5687 = vld [vmem:[#allocation10 + $0x10] sm:$0xf]
    %v5688 = vld [vmem:[#allocation10 + $0x14] sm:$0xf]
    %v5689 = vld [vmem:[#allocation10 + $0x18] sm:$0xf]
    %v5690 = vld [vmem:[#allocation10 + $0x1c] sm:$0xf]
    %v5691 = vld [vmem:[#allocation10 + $0x20] sm:$0xf]
    %v5692 = vld [vmem:[#allocation10 + $0x24] sm:$0xf]
    %v5693 = vld [vmem:[#allocation10 + $0x28] sm:$0xf]
    %v5694 = vld [vmem:[#allocation10 + $0x2c] sm:$0xf]
    %v5695 = vld [vmem:[#allocation10 + $0x30] sm:$0xf]
    %v5696 = vld [vmem:[#allocation10 + $0x34] sm:$0xf]
    %v5697 = vld [vmem:[#allocation10 + $0x38] sm:$0xf]
    %v5698 = vld [vmem:[#allocation10 + $0x3c] sm:$0xf]
    %v5699 = vld [vmem:[#allocation10 + $0x40] sm:$0xf]
    %v5700 = vld [vmem:[#allocation10 + $0x44] sm:$0xf]
    %v5701 = vld [vmem:[#allocation10 + $0x48] sm:$0xf]
    %v5702 = vld [vmem:[#allocation10 + $0x4c] sm:$0xf]
    %v5703 = vld [vmem:[#allocation10 + $0x50] sm:$0xf]
    %v5704 = vld [vmem:[#allocation10 + $0x54] sm:$0xf]
    %v5705 = vld [vmem:[#allocation10 + $0x58] sm:$0xf]
    %v5706 = vld [vmem:[#allocation10 + $0x5c] sm:$0xf]
    %v5707 = vld [vmem:[#allocation10 + $0x60] sm:$0xf]
    %v5708 = vld [vmem:[#allocation10 + $0x64] sm:$0xf]
    %v5709 = vld [vmem:[#allocation10 + $0x68] sm:$0xf]
    %v5710 = vld [vmem:[#allocation10 + $0x6c] sm:$0xf]
    %s5711 = scalar_lea.vmem [#allocation10], 112
    %v5712 = vld [vmem:[%s5711] sm:$0xf]
    %v5713 = vld [vmem:[%s5711 + $0x4] sm:$0xf]
    %v5714 = vld [vmem:[%s5711 + $0x8] sm:$0xf]
    %v5715 = vld [vmem:[%s5711 + $0xc] sm:$0xf]
    %v5716 = vld [vmem:[%s5711 + $0x10] sm:$0xf]
    %v5717 = vld [vmem:[%s5711 + $0x14] sm:$0xf]
    %v5718 = vld [vmem:[%s5711 + $0x18] sm:$0xf]
    %v5719 = vld [vmem:[%s5711 + $0x1c] sm:$0xf]
    %v5720 = vld [vmem:[%s5711 + $0x20] sm:$0xf]
    %v5721 = vld [vmem:[%s5711 + $0x24] sm:$0xf]
    %v5722 = vld [vmem:[%s5711 + $0x28] sm:$0xf]
    %v5723 = vld [vmem:[%s5711 + $0x2c] sm:$0xf]
    %v5724 = vld [vmem:[%s5711 + $0x30] sm:$0xf]
    %v5725 = vld [vmem:[%s5711 + $0x34] sm:$0xf]
    %v5726 = vld [vmem:[%s5711 + $0x38] sm:$0xf]
    %v5727 = vld [vmem:[%s5711 + $0x3c] sm:$0xf]
    %v5728 = vld [vmem:[%s5711 + $0x40] sm:$0xf]
    %v5729 = vld [vmem:[%s5711 + $0x44] sm:$0xf]
    %v5730 = vld [vmem:[%s5711 + $0x48] sm:$0xf]
    %v5731 = vld [vmem:[%s5711 + $0x4c] sm:$0xf]
    %v5732 = vld [vmem:[%s5711 + $0x50] sm:$0xf]
    %v5733 = vld [vmem:[%s5711 + $0x54] sm:$0xf]
    %v5734 = vld [vmem:[%s5711 + $0x58] sm:$0xf]
    %v5735 = vld [vmem:[%s5711 + $0x5c] sm:$0xf]
    %v5736 = vld [vmem:[%s5711 + $0x60] sm:$0xf]
    %v5737 = vld [vmem:[%s5711 + $0x64] sm:$0xf]
    %v5738 = vld [vmem:[%s5711 + $0x68] sm:$0xf]
    %v5739 = vld [vmem:[%s5711 + $0x6c] sm:$0xf]
    %v5744 = vunpack.c.l.b16 %v5657
    %v5745 = vunpack.c.l.b16 %v5658
    %v5746 = vunpack.c.l.b16 %v5671
    %v5747 = vunpack.c.l.b16 %v5672
    %v5748 = vrot.slane %v5746, 7
    %v5749 = vsel %vm1927, %v5748, %v5744
    %v5750 = vrot.slane %v5747, 7
    %v5751 = vsel %vm1927, %v5750, %v5745
    %v5752 = vpack.c.b16 %v5749, %v5749
    %v5753 = vpack.c.b16 %v5751, %v5751
    %v5783 = vunpack.c.l.b16 %v5712
    %v5784 = vunpack.c.l.b16 %v5713
    %v5785 = vunpack.c.l.b16 %v5714
    %v5786 = vunpack.c.l.b16 %v5715
    %v5787 = vunpack.c.l.b16 %v5716
    %v5788 = vunpack.c.l.b16 %v5717
    %v5789 = vunpack.c.l.b16 %v5718
    %v5790 = vunpack.c.l.b16 %v5719
    %v5791 = vunpack.c.l.b16 %v5720
    %v5792 = vunpack.c.l.b16 %v5721
    %v5793 = vunpack.c.l.b16 %v5722
    %v5794 = vunpack.c.l.b16 %v5723
    %v5795 = vunpack.c.l.b16 %v5724
    %v5796 = vunpack.c.l.b16 %v5725
    %v5797 = vunpack.c.l.b16 %v5726
    %v5798 = vunpack.c.l.b16 %v5727
    %v5799 = vunpack.c.l.b16 %v5728
    %v5800 = vunpack.c.l.b16 %v5729
    %v5801 = vunpack.c.l.b16 %v5730
    %v5802 = vunpack.c.l.b16 %v5731
    %v5803 = vunpack.c.l.b16 %v5732
    %v5804 = vunpack.c.l.b16 %v5733
    %v5805 = vunpack.c.l.b16 %v5734
    %v5806 = vunpack.c.l.b16 %v5735
    %v5807 = vunpack.c.l.b16 %v5736
    %v5808 = vunpack.c.l.b16 %v5737
    %v5809 = vunpack.c.l.b16 %v5738
    %v5810 = vunpack.c.l.b16 %v5739
    %v5811 = vpack.c.b16 %v5784, %v5783
    %v5812 = vpack.c.b16 %v5786, %v5785
    %v5813 = vpack.c.b16 %v5788, %v5787
    %v5814 = vpack.c.b16 %v5790, %v5789
    %v5815 = vpack.c.b16 %v5792, %v5791
    %v5816 = vpack.c.b16 %v5794, %v5793
    %v5817 = vpack.c.b16 %v5796, %v5795
    %v5818 = vpack.c.b16 %v5798, %v5797
    %v5819 = vpack.c.b16 %v5800, %v5799
    %v5820 = vpack.c.b16 %v5802, %v5801
    %v5821 = vpack.c.b16 %v5804, %v5803
    %v5822 = vpack.c.b16 %v5806, %v5805
    %v5823 = vpack.c.b16 %v5808, %v5807
    %v5824 = vpack.c.b16 %v5810, %v5809
    %v5840 = vsel %vm234, %v5753, 0
    %5842 = vmatprep.subr.bf16.mxu0 0
    %5843 = vmatpush1.bf16.msra.mxu0 %v5811
    %5844 = vmatprep.subr.bf16.mxu0 0
    %5845 = vmatpush1.bf16.msra.mxu0 %v5812
    %5846 = vmatprep.subr.bf16.mxu0 0
    %5847 = vmatpush1.bf16.msra.mxu0 %v5813
    %5848 = vmatprep.subr.bf16.mxu0 0
    %5849 = vmatpush1.bf16.msra.mxu0 %v5814
    %5850 = vmatprep.subr.bf16.mxu0 0
    %5851 = vmatpush1.bf16.msra.mxu0 %v5815
    %5852 = vmatprep.subr.bf16.mxu0 0
    %5853 = vmatpush1.bf16.msra.mxu0 %v5816
    %5854 = vmatprep.subr.bf16.mxu0 0
    %5855 = vmatpush1.bf16.msra.mxu0 %v5817
    %5856 = vmatprep.subr.bf16.mxu0 0
    %5857 = vmatpush1.bf16.msra.mxu0 %v5818
    %5858 = vmatprep.subr.bf16.mxu0 0
    %5859 = vmatpush1.bf16.msra.mxu0 %v5819
    %5860 = vmatprep.subr.bf16.mxu0 0
    %5861 = vmatpush1.bf16.msra.mxu0 %v5820
    %5862 = vmatprep.subr.bf16.mxu0 0
    %5863 = vmatpush1.bf16.msra.mxu0 %v5821
    %5864 = vmatprep.subr.bf16.mxu0 0
    %5865 = vmatpush1.bf16.msra.mxu0 %v5822
    %5866 = vmatprep.subr.bf16.mxu0 0
    %5867 = vmatpush1.bf16.msra.mxu0 %v5823
    %5868 = vmatprep.subr.bf16.mxu0 0
    %5869 = vmatpush1.bf16.msra.mxu0 %v5824
    %5870 = vmatprep.subr.bf16.mxu0 0
    %5871 = vmatpush1.bf16.msra.mxu0 0
    %5872 = vmatprep.subr.bf16.mxu0 0
    %5873 = vmatpush1.bf16.msra.mxu0 0
    %5874 = vmatprep.mubr.bf16.mxu0 %v5840
    %5875 = vmatmul.mubr.bf16.gmra.mrb[0].mxu0 %v5752
    %v5876 = vpop.f32.mrb[0].mxu0
    %v5877 = vadd.f32 0.0, %v5876
    %v5878 = vpop.f32.mrb[0].mxu0
    %v5879 = vpop.f32.mrb[0].mxu0
    %v5880 = vpop.f32.mrb[0].mxu0
    %5881 = vdwg.mxu0
    %v5886 = vunpack.c.l.b16 %v5655
    %v5887 = vunpack.c.l.b16 %v5656
    %v5888 = vunpack.c.l.b16 %v5669
    %v5889 = vunpack.c.l.b16 %v5670
    %v5890 = vrot.slane %v5888, 7
    %v5891 = vsel %vm1927, %v5890, %v5886
    %v5892 = vrot.slane %v5889, 7
    %v5893 = vsel %vm1927, %v5892, %v5887
    %v5894 = vpack.c.b16 %v5891, %v5891
    %v5895 = vpack.c.b16 %v5893, %v5893
    %v5925 = vunpack.c.l.b16 %v5683
    %v5926 = vunpack.c.l.b16 %v5684
    %v5927 = vunpack.c.l.b16 %v5685
    %v5928 = vunpack.c.l.b16 %v5686
    %v5929 = vunpack.c.l.b16 %v5687
    %v5930 = vunpack.c.l.b16 %v5688
    %v5931 = vunpack.c.l.b16 %v5689
    %v5932 = vunpack.c.l.b16 %v5690
    %v5933 = vunpack.c.l.b16 %v5691
    %v5934 = vunpack.c.l.b16 %v5692
    %v5935 = vunpack.c.l.b16 %v5693
    %v5936 = vunpack.c.l.b16 %v5694
    %v5937 = vunpack.c.l.b16 %v5695
    %v5938 = vunpack.c.l.b16 %v5696
    %v5939 = vunpack.c.l.b16 %v5697
    %v5940 = vunpack.c.l.b16 %v5698
    %v5941 = vunpack.c.l.b16 %v5699
    %v5942 = vunpack.c.l.b16 %v5700
    %v5943 = vunpack.c.l.b16 %v5701
    %v5944 = vunpack.c.l.b16 %v5702
    %v5945 = vunpack.c.l.b16 %v5703
    %v5946 = vunpack.c.l.b16 %v5704
    %v5947 = vunpack.c.l.b16 %v5705
    %v5948 = vunpack.c.l.b16 %v5706
    %v5949 = vunpack.c.l.b16 %v5707
    %v5950 = vunpack.c.l.b16 %v5708
    %v5951 = vunpack.c.l.b16 %v5709
    %v5952 = vunpack.c.l.b16 %v5710
    %v5953 = vpack.c.b16 %v5926, %v5925
    %v5954 = vpack.c.b16 %v5928, %v5927
    %v5955 = vpack.c.b16 %v5930, %v5929
    %v5956 = vpack.c.b16 %v5932, %v5931
    %v5957 = vpack.c.b16 %v5934, %v5933
    %v5958 = vpack.c.b16 %v5936, %v5935
    %v5959 = vpack.c.b16 %v5938, %v5937
    %v5960 = vpack.c.b16 %v5940, %v5939
    %v5961 = vpack.c.b16 %v5942, %v5941
    %v5962 = vpack.c.b16 %v5944, %v5943
    %v5963 = vpack.c.b16 %v5946, %v5945
    %v5964 = vpack.c.b16 %v5948, %v5947
    %v5965 = vpack.c.b16 %v5950, %v5949
    %v5966 = vpack.c.b16 %v5952, %v5951
    %v5982 = vsel %vm234, %v5895, 0
    %5984 = vmatprep.subr.bf16.mxu0 0
    %5985 = vmatpush1.bf16.msra.mxu0 %v5953
    %5986 = vmatprep.subr.bf16.mxu0 0
    %5987 = vmatpush1.bf16.msra.mxu0 %v5954
    %5988 = vmatprep.subr.bf16.mxu0 0
    %5989 = vmatpush1.bf16.msra.mxu0 %v5955
    %5990 = vmatprep.subr.bf16.mxu0 0
    %5991 = vmatpush1.bf16.msra.mxu0 %v5956
    %5992 = vmatprep.subr.bf16.mxu0 0
    %5993 = vmatpush1.bf16.msra.mxu0 %v5957
    %5994 = vmatprep.subr.bf16.mxu0 0
    %5995 = vmatpush1.bf16.msra.mxu0 %v5958
    %5996 = vmatprep.subr.bf16.mxu0 0
    %5997 = vmatpush1.bf16.msra.mxu0 %v5959
    %5998 = vmatprep.subr.bf16.mxu0 0
    %5999 = vmatpush1.bf16.msra.mxu0 %v5960
    %6000 = vmatprep.subr.bf16.mxu0 0
    %6001 = vmatpush1.bf16.msra.mxu0 %v5961
    %6002 = vmatprep.subr.bf16.mxu0 0
    %6003 = vmatpush1.bf16.msra.mxu0 %v5962
    %6004 = vmatprep.subr.bf16.mxu0 0
    %6005 = vmatpush1.bf16.msra.mxu0 %v5963
    %6006 = vmatprep.subr.bf16.mxu0 0
    %6007 = vmatpush1.bf16.msra.mxu0 %v5964
    %6008 = vmatprep.subr.bf16.mxu0 0
    %6009 = vmatpush1.bf16.msra.mxu0 %v5965
    %6010 = vmatprep.subr.bf16.mxu0 0
    %6011 = vmatpush1.bf16.msra.mxu0 %v5966
    %6012 = vmatprep.subr.bf16.mxu0 0
    %6013 = vmatpush1.bf16.msra.mxu0 0
    %6014 = vmatprep.subr.bf16.mxu0 0
    %6015 = vmatpush1.bf16.msra.mxu0 0
    %6016 = vmatprep.mubr.bf16.mxu0 %v5982
    %6017 = vmatmul.mubr.bf16.gmra.mrb[0].mxu0 %v5894
    %v6018 = vpop.f32.mrb[0].mxu0
    %v6019 = vadd.f32 %v5877, %v6018
    %v6020 = vpop.f32.mrb[0].mxu0
    %v6021 = vpop.f32.mrb[0].mxu0
    %v6022 = vpop.f32.mrb[0].mxu0
    %6023 = vdwg.mxu0
    %s6024 = scalar_lea.vmem [#allocation10], 224
    %v6025 = vld [vmem:[%s6024] sm:$0xf]
    %v6026 = vld [vmem:[%s6024 + $0x4] sm:$0xf]
    %v6027 = vld [vmem:[%s6024 + $0x8] sm:$0xf]
    %v6028 = vld [vmem:[%s6024 + $0xc] sm:$0xf]
    %v6029 = vld [vmem:[%s6024 + $0x10] sm:$0xf]
    %v6030 = vld [vmem:[%s6024 + $0x14] sm:$0xf]
    %v6031 = vld [vmem:[%s6024 + $0x18] sm:$0xf]
    %v6032 = vld [vmem:[%s6024 + $0x1c] sm:$0xf]
    %v6033 = vld [vmem:[%s6024 + $0x20] sm:$0xf]
    %v6034 = vld [vmem:[%s6024 + $0x24] sm:$0xf]
    %v6035 = vld [vmem:[%s6024 + $0x28] sm:$0xf]
    %v6036 = vld [vmem:[%s6024 + $0x2c] sm:$0xf]
    %v6037 = vld [vmem:[%s6024 + $0x30] sm:$0xf]
    %v6038 = vld [vmem:[%s6024 + $0x34] sm:$0xf]
    %v6039 = vld [vmem:[%s6024 + $0x38] sm:$0xf]
    %v6040 = vld [vmem:[%s6024 + $0x3c] sm:$0xf]
    %v6041 = vld [vmem:[%s6024 + $0x40] sm:$0xf]
    %v6042 = vld [vmem:[%s6024 + $0x44] sm:$0xf]
    %v6043 = vld [vmem:[%s6024 + $0x48] sm:$0xf]
    %v6044 = vld [vmem:[%s6024 + $0x4c] sm:$0xf]
    %v6045 = vld [vmem:[%s6024 + $0x50] sm:$0xf]
    %v6046 = vld [vmem:[%s6024 + $0x54] sm:$0xf]
    %v6047 = vld [vmem:[%s6024 + $0x58] sm:$0xf]
    %v6048 = vld [vmem:[%s6024 + $0x5c] sm:$0xf]
    %v6049 = vld [vmem:[%s6024 + $0x60] sm:$0xf]
    %v6050 = vld [vmem:[%s6024 + $0x64] sm:$0xf]
    %v6051 = vld [vmem:[%s6024 + $0x68] sm:$0xf]
    %v6052 = vld [vmem:[%s6024 + $0x6c] sm:$0xf]
    %v6057 = vunpack.c.l.b16 %v5659
    %v6058 = vunpack.c.l.b16 %v5660
    %v6059 = vunpack.c.l.b16 %v5673
    %v6060 = vunpack.c.l.b16 %v5674
    %v6061 = vrot.slane %v6059, 7
    %v6062 = vsel %vm1927, %v6061, %v6057
    %v6063 = vrot.slane %v6060, 7
    %v6064 = vsel %vm1927, %v6063, %v6058
    %v6065 = vpack.c.b16 %v6062, %v6062
    %v6066 = vpack.c.b16 %v6064, %v6064
    %v6096 = vunpack.c.l.b16 %v6025
    %v6097 = vunpack.c.l.b16 %v6026
    %v6098 = vunpack.c.l.b16 %v6027
    %v6099 = vunpack.c.l.b16 %v6028
    %v6100 = vunpack.c.l.b16 %v6029
    %v6101 = vunpack.c.l.b16 %v6030
    %v6102 = vunpack.c.l.b16 %v6031
    %v6103 = vunpack.c.l.b16 %v6032
    %v6104 = vunpack.c.l.b16 %v6033
    %v6105 = vunpack.c.l.b16 %v6034
    %v6106 = vunpack.c.l.b16 %v6035
    %v6107 = vunpack.c.l.b16 %v6036
    %v6108 = vunpack.c.l.b16 %v6037
    %v6109 = vunpack.c.l.b16 %v6038
    %v6110 = vunpack.c.l.b16 %v6039
    %v6111 = vunpack.c.l.b16 %v6040
    %v6112 = vunpack.c.l.b16 %v6041
    %v6113 = vunpack.c.l.b16 %v6042
    %v6114 = vunpack.c.l.b16 %v6043
    %v6115 = vunpack.c.l.b16 %v6044
    %v6116 = vunpack.c.l.b16 %v6045
    %v6117 = vunpack.c.l.b16 %v6046
    %v6118 = vunpack.c.l.b16 %v6047
    %v6119 = vunpack.c.l.b16 %v6048
    %v6120 = vunpack.c.l.b16 %v6049
    %v6121 = vunpack.c.l.b16 %v6050
    %v6122 = vunpack.c.l.b16 %v6051
    %v6123 = vunpack.c.l.b16 %v6052
    %v6124 = vpack.c.b16 %v6097, %v6096
    %v6125 = vpack.c.b16 %v6099, %v6098
    %v6126 = vpack.c.b16 %v6101, %v6100
    %v6127 = vpack.c.b16 %v6103, %v6102
    %v6128 = vpack.c.b16 %v6105, %v6104
    %v6129 = vpack.c.b16 %v6107, %v6106
    %v6130 = vpack.c.b16 %v6109, %v6108
    %v6131 = vpack.c.b16 %v6111, %v6110
    %v6132 = vpack.c.b16 %v6113, %v6112
    %v6133 = vpack.c.b16 %v6115, %v6114
    %v6134 = vpack.c.b16 %v6117, %v6116
    %v6135 = vpack.c.b16 %v6119, %v6118
    %v6136 = vpack.c.b16 %v6121, %v6120
    %v6137 = vpack.c.b16 %v6123, %v6122
    %v6153 = vsel %vm234, %v6066, 0
    %6155 = vmatprep.subr.bf16.mxu0 0
    %6156 = vmatpush1.bf16.msra.mxu0 %v6124
    %6157 = vmatprep.subr.bf16.mxu0 0
    %6158 = vmatpush1.bf16.msra.mxu0 %v6125
    %6159 = vmatprep.subr.bf16.mxu0 0
    %6160 = vmatpush1.bf16.msra.mxu0 %v6126
    %6161 = vmatprep.subr.bf16.mxu0 0
    %6162 = vmatpush1.bf16.msra.mxu0 %v6127
    %6163 = vmatprep.subr.bf16.mxu0 0
    %6164 = vmatpush1.bf16.msra.mxu0 %v6128
    %6165 = vmatprep.subr.bf16.mxu0 0
    %6166 = vmatpush1.bf16.msra.mxu0 %v6129
    %6167 = vmatprep.subr.bf16.mxu0 0
    %6168 = vmatpush1.bf16.msra.mxu0 %v6130
    %6169 = vmatprep.subr.bf16.mxu0 0
    %6170 = vmatpush1.bf16.msra.mxu0 %v6131
    %6171 = vmatprep.subr.bf16.mxu0 0
    %6172 = vmatpush1.bf16.msra.mxu0 %v6132
    %6173 = vmatprep.subr.bf16.mxu0 0
    %6174 = vmatpush1.bf16.msra.mxu0 %v6133
    %6175 = vmatprep.subr.bf16.mxu0 0
    %6176 = vmatpush1.bf16.msra.mxu0 %v6134
    %6177 = vmatprep.subr.bf16.mxu0 0
    %6178 = vmatpush1.bf16.msra.mxu0 %v6135
    %6179 = vmatprep.subr.bf16.mxu0 0
    %6180 = vmatpush1.bf16.msra.mxu0 %v6136
    %6181 = vmatprep.subr.bf16.mxu0 0
    %6182 = vmatpush1.bf16.msra.mxu0 %v6137
    %6183 = vmatprep.subr.bf16.mxu0 0
    %6184 = vmatpush1.bf16.msra.mxu0 0
    %6185 = vmatprep.subr.bf16.mxu0 0
    %6186 = vmatpush1.bf16.msra.mxu0 0
    %6187 = vmatprep.mubr.bf16.mxu0 %v6153
    %6188 = vmatmul.mubr.bf16.gmra.mrb[0].mxu0 %v6065
    %v6189 = vpop.f32.mrb[0].mxu0
    %v6190 = vadd.f32 0.0, %v6189
    %v6191 = vpop.f32.mrb[0].mxu0
    %v6192 = vpop.f32.mrb[0].mxu0
    %v6193 = vpop.f32.mrb[0].mxu0
    %6194 = vdwg.mxu0
    %v6195 = vadd.f32 %v6019, %v6190
    %s6196 = scalar_lea.vmem [#allocation10], 336
    %v6197 = vld [vmem:[%s6196] sm:$0xf]
    %v6198 = vld [vmem:[%s6196 + $0x4] sm:$0xf]
    %v6199 = vld [vmem:[%s6196 + $0x8] sm:$0xf]
    %v6200 = vld [vmem:[%s6196 + $0xc] sm:$0xf]
    %v6201 = vld [vmem:[%s6196 + $0x10] sm:$0xf]
    %v6202 = vld [vmem:[%s6196 + $0x14] sm:$0xf]
    %v6203 = vld [vmem:[%s6196 + $0x18] sm:$0xf]
    %v6204 = vld [vmem:[%s6196 + $0x1c] sm:$0xf]
    %v6205 = vld [vmem:[%s6196 + $0x20] sm:$0xf]
    %v6206 = vld [vmem:[%s6196 + $0x24] sm:$0xf]
    %v6207 = vld [vmem:[%s6196 + $0x28] sm:$0xf]
    %v6208 = vld [vmem:[%s6196 + $0x2c] sm:$0xf]
    %v6209 = vld [vmem:[%s6196 + $0x30] sm:$0xf]
    %v6210 = vld [vmem:[%s6196 + $0x34] sm:$0xf]
    %v6211 = vld [vmem:[%s6196 + $0x38] sm:$0xf]
    %v6212 = vld [vmem:[%s6196 + $0x3c] sm:$0xf]
    %v6213 = vld [vmem:[%s6196 + $0x40] sm:$0xf]
    %v6214 = vld [vmem:[%s6196 + $0x44] sm:$0xf]
    %v6215 = vld [vmem:[%s6196 + $0x48] sm:$0xf]
    %v6216 = vld [vmem:[%s6196 + $0x4c] sm:$0xf]
    %v6217 = vld [vmem:[%s6196 + $0x50] sm:$0xf]
    %v6218 = vld [vmem:[%s6196 + $0x54] sm:$0xf]
    %v6219 = vld [vmem:[%s6196 + $0x58] sm:$0xf]
    %v6220 = vld [vmem:[%s6196 + $0x5c] sm:$0xf]
    %v6221 = vld [vmem:[%s6196 + $0x60] sm:$0xf]
    %v6222 = vld [vmem:[%s6196 + $0x64] sm:$0xf]
    %v6223 = vld [vmem:[%s6196 + $0x68] sm:$0xf]
    %v6224 = vld [vmem:[%s6196 + $0x6c] sm:$0xf]
    %v6229 = vunpack.c.l.b16 %v5661
    %v6230 = vunpack.c.l.b16 %v5662
    %v6231 = vunpack.c.l.b16 %v5675
    %v6232 = vunpack.c.l.b16 %v5676
    %v6233 = vrot.slane %v6231, 7
    %v6234 = vsel %vm1927, %v6233, %v6229
    %v6235 = vrot.slane %v6232, 7
    %v6236 = vsel %vm1927, %v6235, %v6230
    %v6237 = vpack.c.b16 %v6234, %v6234
    %v6238 = vpack.c.b16 %v6236, %v6236
    %v6268 = vunpack.c.l.b16 %v6197
    %v6269 = vunpack.c.l.b16 %v6198
    %v6270 = vunpack.c.l.b16 %v6199
    %v6271 = vunpack.c.l.b16 %v6200
    %v6272 = vunpack.c.l.b16 %v6201
    %v6273 = vunpack.c.l.b16 %v6202
    %v6274 = vunpack.c.l.b16 %v6203
    %v6275 = vunpack.c.l.b16 %v6204
    %v6276 = vunpack.c.l.b16 %v6205
    %v6277 = vunpack.c.l.b16 %v6206
    %v6278 = vunpack.c.l.b16 %v6207
    %v6279 = vunpack.c.l.b16 %v6208
    %v6280 = vunpack.c.l.b16 %v6209
    %v6281 = vunpack.c.l.b16 %v6210
    %v6282 = vunpack.c.l.b16 %v6211
    %v6283 = vunpack.c.l.b16 %v6212
    %v6284 = vunpack.c.l.b16 %v6213
    %v6285 = vunpack.c.l.b16 %v6214
    %v6286 = vunpack.c.l.b16 %v6215
    %v6287 = vunpack.c.l.b16 %v6216
    %v6288 = vunpack.c.l.b16 %v6217
    %v6289 = vunpack.c.l.b16 %v6218
    %v6290 = vunpack.c.l.b16 %v6219
    %v6291 = vunpack.c.l.b16 %v6220
    %v6292 = vunpack.c.l.b16 %v6221
    %v6293 = vunpack.c.l.b16 %v6222
    %v6294 = vunpack.c.l.b16 %v6223
    %v6295 = vunpack.c.l.b16 %v6224
    %v6296 = vpack.c.b16 %v6269, %v6268
    %v6297 = vpack.c.b16 %v6271, %v6270
    %v6298 = vpack.c.b16 %v6273, %v6272
    %v6299 = vpack.c.b16 %v6275, %v6274
    %v6300 = vpack.c.b16 %v6277, %v6276
    %v6301 = vpack.c.b16 %v6279, %v6278
    %v6302 = vpack.c.b16 %v6281, %v6280
    %v6303 = vpack.c.b16 %v6283, %v6282
    %v6304 = vpack.c.b16 %v6285, %v6284
    %v6305 = vpack.c.b16 %v6287, %v6286
    %v6306 = vpack.c.b16 %v6289, %v6288
    %v6307 = vpack.c.b16 %v6291, %v6290
    %v6308 = vpack.c.b16 %v6293, %v6292
    %v6309 = vpack.c.b16 %v6295, %v6294
    %v6325 = vsel %vm234, %v6238, 0
    %6327 = vmatprep.subr.bf16.mxu0 0
    %6328 = vmatpush1.bf16.msra.mxu0 %v6296
    %6329 = vmatprep.subr.bf16.mxu0 0
    %6330 = vmatpush1.bf16.msra.mxu0 %v6297
    %6331 = vmatprep.subr.bf16.mxu0 0
    %6332 = vmatpush1.bf16.msra.mxu0 %v6298
    %6333 = vmatprep.subr.bf16.mxu0 0
    %6334 = vmatpush1.bf16.msra.mxu0 %v6299
    %6335 = vmatprep.subr.bf16.mxu0 0
    %6336 = vmatpush1.bf16.msra.mxu0 %v6300
    %6337 = vmatprep.subr.bf16.mxu0 0
    %6338 = vmatpush1.bf16.msra.mxu0 %v6301
    %6339 = vmatprep.subr.bf16.mxu0 0
    %6340 = vmatpush1.bf16.msra.mxu0 %v6302
    %6341 = vmatprep.subr.bf16.mxu0 0
    %6342 = vmatpush1.bf16.msra.mxu0 %v6303
    %6343 = vmatprep.subr.bf16.mxu0 0
    %6344 = vmatpush1.bf16.msra.mxu0 %v6304
    %6345 = vmatprep.subr.bf16.mxu0 0
    %6346 = vmatpush1.bf16.msra.mxu0 %v6305
    %6347 = vmatprep.subr.bf16.mxu0 0
    %6348 = vmatpush1.bf16.msra.mxu0 %v6306
    %6349 = vmatprep.subr.bf16.mxu0 0
    %6350 = vmatpush1.bf16.msra.mxu0 %v6307
    %6351 = vmatprep.subr.bf16.mxu0 0
    %6352 = vmatpush1.bf16.msra.mxu0 %v6308
    %6353 = vmatprep.subr.bf16.mxu0 0
    %6354 = vmatpush1.bf16.msra.mxu0 %v6309
    %6355 = vmatprep.subr.bf16.mxu0 0
    %6356 = vmatpush1.bf16.msra.mxu0 0
    %6357 = vmatprep.subr.bf16.mxu0 0
    %6358 = vmatpush1.bf16.msra.mxu0 0
    %6359 = vmatprep.mubr.bf16.mxu0 %v6325
    %6360 = vmatmul.mubr.bf16.gmra.mrb[0].mxu0 %v6237
    %v6361 = vpop.f32.mrb[0].mxu0
    %v6362 = vadd.f32 0.0, %v6361
    %v6363 = vpop.f32.mrb[0].mxu0
    %v6364 = vpop.f32.mrb[0].mxu0
    %v6365 = vpop.f32.mrb[0].mxu0
    %6366 = vdwg.mxu0
    %v6367 = vadd.f32 %v6195, %v6362
    %s6368 = scalar_lea.vmem [#allocation10], 448
    %v6369 = vld [vmem:[%s6368] sm:$0xf]
    %v6370 = vld [vmem:[%s6368 + $0x4] sm:$0xf]
    %v6371 = vld [vmem:[%s6368 + $0x8] sm:$0xf]
    %v6372 = vld [vmem:[%s6368 + $0xc] sm:$0xf]
    %v6373 = vld [vmem:[%s6368 + $0x10] sm:$0xf]
    %v6374 = vld [vmem:[%s6368 + $0x14] sm:$0xf]
    %v6375 = vld [vmem:[%s6368 + $0x18] sm:$0xf]
    %v6376 = vld [vmem:[%s6368 + $0x1c] sm:$0xf]
    %v6377 = vld [vmem:[%s6368 + $0x20] sm:$0xf]
    %v6378 = vld [vmem:[%s6368 + $0x24] sm:$0xf]
    %v6379 = vld [vmem:[%s6368 + $0x28] sm:$0xf]
    %v6380 = vld [vmem:[%s6368 + $0x2c] sm:$0xf]
    %v6381 = vld [vmem:[%s6368 + $0x30] sm:$0xf]
    %v6382 = vld [vmem:[%s6368 + $0x34] sm:$0xf]
    %v6383 = vld [vmem:[%s6368 + $0x38] sm:$0xf]
    %v6384 = vld [vmem:[%s6368 + $0x3c] sm:$0xf]
    %v6385 = vld [vmem:[%s6368 + $0x40] sm:$0xf]
    %v6386 = vld [vmem:[%s6368 + $0x44] sm:$0xf]
    %v6387 = vld [vmem:[%s6368 + $0x48] sm:$0xf]
    %v6388 = vld [vmem:[%s6368 + $0x4c] sm:$0xf]
    %v6389 = vld [vmem:[%s6368 + $0x50] sm:$0xf]
    %v6390 = vld [vmem:[%s6368 + $0x54] sm:$0xf]
    %v6391 = vld [vmem:[%s6368 + $0x58] sm:$0xf]
    %v6392 = vld [vmem:[%s6368 + $0x5c] sm:$0xf]
    %v6393 = vld [vmem:[%s6368 + $0x60] sm:$0xf]
    %v6394 = vld [vmem:[%s6368 + $0x64] sm:$0xf]
    %v6395 = vld [vmem:[%s6368 + $0x68] sm:$0xf]
    %v6396 = vld [vmem:[%s6368 + $0x6c] sm:$0xf]
    %v6401 = vunpack.c.l.b16 %v5663
    %v6402 = vunpack.c.l.b16 %v5664
    %v6403 = vunpack.c.l.b16 %v5677
    %v6404 = vunpack.c.l.b16 %v5678
    %v6405 = vrot.slane %v6403, 7
    %v6406 = vsel %vm1927, %v6405, %v6401
    %v6407 = vrot.slane %v6404, 7
    %v6408 = vsel %vm1927, %v6407, %v6402
    %v6409 = vpack.c.b16 %v6406, %v6406
    %v6410 = vpack.c.b16 %v6408, %v6408
    %v6440 = vunpack.c.l.b16 %v6369
    %v6441 = vunpack.c.l.b16 %v6370
    %v6442 = vunpack.c.l.b16 %v6371
    %v6443 = vunpack.c.l.b16 %v6372
    %v6444 = vunpack.c.l.b16 %v6373
    %v6445 = vunpack.c.l.b16 %v6374
    %v6446 = vunpack.c.l.b16 %v6375
    %v6447 = vunpack.c.l.b16 %v6376
    %v6448 = vunpack.c.l.b16 %v6377
    %v6449 = vunpack.c.l.b16 %v6378
    %v6450 = vunpack.c.l.b16 %v6379
    %v6451 = vunpack.c.l.b16 %v6380
    %v6452 = vunpack.c.l.b16 %v6381
    %v6453 = vunpack.c.l.b16 %v6382
    %v6454 = vunpack.c.l.b16 %v6383
    %v6455 = vunpack.c.l.b16 %v6384
    %v6456 = vunpack.c.l.b16 %v6385
    %v6457 = vunpack.c.l.b16 %v6386
    %v6458 = vunpack.c.l.b16 %v6387
    %v6459 = vunpack.c.l.b16 %v6388
    %v6460 = vunpack.c.l.b16 %v6389
    %v6461 = vunpack.c.l.b16 %v6390
    %v6462 = vunpack.c.l.b16 %v6391
    %v6463 = vunpack.c.l.b16 %v6392
    %v6464 = vunpack.c.l.b16 %v6393
    %v6465 = vunpack.c.l.b16 %v6394
    %v6466 = vunpack.c.l.b16 %v6395
    %v6467 = vunpack.c.l.b16 %v6396
    %v6468 = vpack.c.b16 %v6441, %v6440
    %v6469 = vpack.c.b16 %v6443, %v6442
    %v6470 = vpack.c.b16 %v6445, %v6444
    %v6471 = vpack.c.b16 %v6447, %v6446
    %v6472 = vpack.c.b16 %v6449, %v6448
    %v6473 = vpack.c.b16 %v6451, %v6450
    %v6474 = vpack.c.b16 %v6453, %v6452
    %v6475 = vpack.c.b16 %v6455, %v6454
    %v6476 = vpack.c.b16 %v6457, %v6456
    %v6477 = vpack.c.b16 %v6459, %v6458
    %v6478 = vpack.c.b16 %v6461, %v6460
    %v6479 = vpack.c.b16 %v6463, %v6462
    %v6480 = vpack.c.b16 %v6465, %v6464
    %v6481 = vpack.c.b16 %v6467, %v6466
    %v6497 = vsel %vm234, %v6410, 0
    %6499 = vmatprep.subr.bf16.mxu0 0
    %6500 = vmatpush1.bf16.msra.mxu0 %v6468
    %6501 = vmatprep.subr.bf16.mxu0 0
    %6502 = vmatpush1.bf16.msra.mxu0 %v6469
    %6503 = vmatprep.subr.bf16.mxu0 0
    %6504 = vmatpush1.bf16.msra.mxu0 %v6470
    %6505 = vmatprep.subr.bf16.mxu0 0
    %6506 = vmatpush1.bf16.msra.mxu0 %v6471
    %6507 = vmatprep.subr.bf16.mxu0 0
    %6508 = vmatpush1.bf16.msra.mxu0 %v6472
    %6509 = vmatprep.subr.bf16.mxu0 0
    %6510 = vmatpush1.bf16.msra.mxu0 %v6473
    %6511 = vmatprep.subr.bf16.mxu0 0
    %6512 = vmatpush1.bf16.msra.mxu0 %v6474
    %6513 = vmatprep.subr.bf16.mxu0 0
    %6514 = vmatpush1.bf16.msra.mxu0 %v6475
    %6515 = vmatprep.subr.bf16.mxu0 0
    %6516 = vmatpush1.bf16.msra.mxu0 %v6476
    %6517 = vmatprep.subr.bf16.mxu0 0
    %6518 = vmatpush1.bf16.msra.mxu0 %v6477
    %6519 = vmatprep.subr.bf16.mxu0 0
    %6520 = vmatpush1.bf16.msra.mxu0 %v6478
    %6521 = vmatprep.subr.bf16.mxu0 0
    %6522 = vmatpush1.bf16.msra.mxu0 %v6479
    %6523 = vmatprep.subr.bf16.mxu0 0
    %6524 = vmatpush1.bf16.msra.mxu0 %v6480
    %6525 = vmatprep.subr.bf16.mxu0 0
    %6526 = vmatpush1.bf16.msra.mxu0 %v6481
    %6527 = vmatprep.subr.bf16.mxu0 0
    %6528 = vmatpush1.bf16.msra.mxu0 0
    %6529 = vmatprep.subr.bf16.mxu0 0
    %6530 = vmatpush1.bf16.msra.mxu0 0
    %6531 = vmatprep.mubr.bf16.mxu0 %v6497
    %6532 = vmatmul.mubr.bf16.gmra.mrb[0].mxu0 %v6409
    %v6533 = vpop.f32.mrb[0].mxu0
    %v6534 = vadd.f32 0.0, %v6533
    %v6535 = vpop.f32.mrb[0].mxu0
    %v6536 = vpop.f32.mrb[0].mxu0
    %v6537 = vpop.f32.mrb[0].mxu0
    %6538 = vdwg.mxu0
    %v6539 = vadd.f32 %v6367, %v6534
    %s6540 = scalar_lea.vmem [#allocation10], 560
    %v6541 = vld [vmem:[%s6540] sm:$0xf]
    %v6542 = vld [vmem:[%s6540 + $0x4] sm:$0xf]
    %v6543 = vld [vmem:[%s6540 + $0x8] sm:$0xf]
    %v6544 = vld [vmem:[%s6540 + $0xc] sm:$0xf]
    %v6545 = vld [vmem:[%s6540 + $0x10] sm:$0xf]
    %v6546 = vld [vmem:[%s6540 + $0x14] sm:$0xf]
    %v6547 = vld [vmem:[%s6540 + $0x18] sm:$0xf]
    %v6548 = vld [vmem:[%s6540 + $0x1c] sm:$0xf]
    %v6549 = vld [vmem:[%s6540 + $0x20] sm:$0xf]
    %v6550 = vld [vmem:[%s6540 + $0x24] sm:$0xf]
    %v6551 = vld [vmem:[%s6540 + $0x28] sm:$0xf]
    %v6552 = vld [vmem:[%s6540 + $0x2c] sm:$0xf]
    %v6553 = vld [vmem:[%s6540 + $0x30] sm:$0xf]
    %v6554 = vld [vmem:[%s6540 + $0x34] sm:$0xf]
    %v6555 = vld [vmem:[%s6540 + $0x38] sm:$0xf]
    %v6556 = vld [vmem:[%s6540 + $0x3c] sm:$0xf]
    %v6557 = vld [vmem:[%s6540 + $0x40] sm:$0xf]
    %v6558 = vld [vmem:[%s6540 + $0x44] sm:$0xf]
    %v6559 = vld [vmem:[%s6540 + $0x48] sm:$0xf]
    %v6560 = vld [vmem:[%s6540 + $0x4c] sm:$0xf]
    %v6561 = vld [vmem:[%s6540 + $0x50] sm:$0xf]
    %v6562 = vld [vmem:[%s6540 + $0x54] sm:$0xf]
    %v6563 = vld [vmem:[%s6540 + $0x58] sm:$0xf]
    %v6564 = vld [vmem:[%s6540 + $0x5c] sm:$0xf]
    %v6565 = vld [vmem:[%s6540 + $0x60] sm:$0xf]
    %v6566 = vld [vmem:[%s6540 + $0x64] sm:$0xf]
    %v6567 = vld [vmem:[%s6540 + $0x68] sm:$0xf]
    %v6568 = vld [vmem:[%s6540 + $0x6c] sm:$0xf]
    %v6573 = vunpack.c.l.b16 %v5665
    %v6574 = vunpack.c.l.b16 %v5666
    %v6575 = vunpack.c.l.b16 %v5679
    %v6576 = vunpack.c.l.b16 %v5680
    %v6577 = vrot.slane %v6575, 7
    %v6578 = vsel %vm1927, %v6577, %v6573
    %v6579 = vrot.slane %v6576, 7
    %v6580 = vsel %vm1927, %v6579, %v6574
    %v6581 = vpack.c.b16 %v6578, %v6578
    %v6582 = vpack.c.b16 %v6580, %v6580
    %v6612 = vunpack.c.l.b16 %v6541
    %v6613 = vunpack.c.l.b16 %v6542
    %v6614 = vunpack.c.l.b16 %v6543
    %v6615 = vunpack.c.l.b16 %v6544
    %v6616 = vunpack.c.l.b16 %v6545
    %v6617 = vunpack.c.l.b16 %v6546
    %v6618 = vunpack.c.l.b16 %v6547
    %v6619 = vunpack.c.l.b16 %v6548
    %v6620 = vunpack.c.l.b16 %v6549
    %v6621 = vunpack.c.l.b16 %v6550
    %v6622 = vunpack.c.l.b16 %v6551
    %v6623 = vunpack.c.l.b16 %v6552
    %v6624 = vunpack.c.l.b16 %v6553
    %v6625 = vunpack.c.l.b16 %v6554
    %v6626 = vunpack.c.l.b16 %v6555
    %v6627 = vunpack.c.l.b16 %v6556
    %v6628 = vunpack.c.l.b16 %v6557
    %v6629 = vunpack.c.l.b16 %v6558
    %v6630 = vunpack.c.l.b16 %v6559
    %v6631 = vunpack.c.l.b16 %v6560
    %v6632 = vunpack.c.l.b16 %v6561
    %v6633 = vunpack.c.l.b16 %v6562
    %v6634 = vunpack.c.l.b16 %v6563
    %v6635 = vunpack.c.l.b16 %v6564
    %v6636 = vunpack.c.l.b16 %v6565
    %v6637 = vunpack.c.l.b16 %v6566
    %v6638 = vunpack.c.l.b16 %v6567
    %v6639 = vunpack.c.l.b16 %v6568
    %v6640 = vpack.c.b16 %v6613, %v6612
    %v6641 = vpack.c.b16 %v6615, %v6614
    %v6642 = vpack.c.b16 %v6617, %v6616
    %v6643 = vpack.c.b16 %v6619, %v6618
    %v6644 = vpack.c.b16 %v6621, %v6620
    %v6645 = vpack.c.b16 %v6623, %v6622
    %v6646 = vpack.c.b16 %v6625, %v6624
    %v6647 = vpack.c.b16 %v6627, %v6626
    %v6648 = vpack.c.b16 %v6629, %v6628
    %v6649 = vpack.c.b16 %v6631, %v6630
    %v6650 = vpack.c.b16 %v6633, %v6632
    %v6651 = vpack.c.b16 %v6635, %v6634
    %v6652 = vpack.c.b16 %v6637, %v6636
    %v6653 = vpack.c.b16 %v6639, %v6638
    %v6669 = vsel %vm234, %v6582, 0
    %6671 = vmatprep.subr.bf16.mxu0 0
    %6672 = vmatpush1.bf16.msra.mxu0 %v6640
    %6673 = vmatprep.subr.bf16.mxu0 0
    %6674 = vmatpush1.bf16.msra.mxu0 %v6641
    %6675 = vmatprep.subr.bf16.mxu0 0
    %6676 = vmatpush1.bf16.msra.mxu0 %v6642
    %6677 = vmatprep.subr.bf16.mxu0 0
    %6678 = vmatpush1.bf16.msra.mxu0 %v6643
    %6679 = vmatprep.subr.bf16.mxu0 0
    %6680 = vmatpush1.bf16.msra.mxu0 %v6644
    %6681 = vmatprep.subr.bf16.mxu0 0
    %6682 = vmatpush1.bf16.msra.mxu0 %v6645
    %6683 = vmatprep.subr.bf16.mxu0 0
    %6684 = vmatpush1.bf16.msra.mxu0 %v6646
    %6685 = vmatprep.subr.bf16.mxu0 0
    %6686 = vmatpush1.bf16.msra.mxu0 %v6647
    %6687 = vmatprep.subr.bf16.mxu0 0
    %6688 = vmatpush1.bf16.msra.mxu0 %v6648
    %6689 = vmatprep.subr.bf16.mxu0 0
    %6690 = vmatpush1.bf16.msra.mxu0 %v6649
    %6691 = vmatprep.subr.bf16.mxu0 0
    %6692 = vmatpush1.bf16.msra.mxu0 %v6650
    %6693 = vmatprep.subr.bf16.mxu0 0
    %6694 = vmatpush1.bf16.msra.mxu0 %v6651
    %6695 = vmatprep.subr.bf16.mxu0 0
    %6696 = vmatpush1.bf16.msra.mxu0 %v6652
    %6697 = vmatprep.subr.bf16.mxu0 0
    %6698 = vmatpush1.bf16.msra.mxu0 %v6653
    %6699 = vmatprep.subr.bf16.mxu0 0
    %6700 = vmatpush1.bf16.msra.mxu0 0
    %6701 = vmatprep.subr.bf16.mxu0 0
    %6702 = vmatpush1.bf16.msra.mxu0 0
    %6703 = vmatprep.mubr.bf16.mxu0 %v6669
    %6704 = vmatmul.mubr.bf16.gmra.mrb[0].mxu0 %v6581
    %v6705 = vpop.f32.mrb[0].mxu0
    %v6706 = vadd.f32 0.0, %v6705
    %v6707 = vpop.f32.mrb[0].mxu0
    %v6708 = vpop.f32.mrb[0].mxu0
    %v6709 = vpop.f32.mrb[0].mxu0
    %6710 = vdwg.mxu0
    %v6711 = vadd.f32 %v6539, %v6706
    %s6712 = scalar_lea.vmem [#allocation10], 672
    %v6713 = vld [vmem:[%s6712] sm:$0xf]
    %v6714 = vld [vmem:[%s6712 + $0x4] sm:$0xf]
    %v6715 = vld [vmem:[%s6712 + $0x8] sm:$0xf]
    %v6716 = vld [vmem:[%s6712 + $0xc] sm:$0xf]
    %v6717 = vld [vmem:[%s6712 + $0x10] sm:$0xf]
    %v6718 = vld [vmem:[%s6712 + $0x14] sm:$0xf]
    %v6719 = vld [vmem:[%s6712 + $0x18] sm:$0xf]
    %v6720 = vld [vmem:[%s6712 + $0x1c] sm:$0xf]
    %v6721 = vld [vmem:[%s6712 + $0x20] sm:$0xf]
    %v6722 = vld [vmem:[%s6712 + $0x24] sm:$0xf]
    %v6723 = vld [vmem:[%s6712 + $0x28] sm:$0xf]
    %v6724 = vld [vmem:[%s6712 + $0x2c] sm:$0xf]
    %v6725 = vld [vmem:[%s6712 + $0x30] sm:$0xf]
    %v6726 = vld [vmem:[%s6712 + $0x34] sm:$0xf]
    %v6727 = vld [vmem:[%s6712 + $0x38] sm:$0xf]
    %v6728 = vld [vmem:[%s6712 + $0x3c] sm:$0xf]
    %v6729 = vld [vmem:[%s6712 + $0x40] sm:$0xf]
    %v6730 = vld [vmem:[%s6712 + $0x44] sm:$0xf]
    %v6731 = vld [vmem:[%s6712 + $0x48] sm:$0xf]
    %v6732 = vld [vmem:[%s6712 + $0x4c] sm:$0xf]
    %v6733 = vld [vmem:[%s6712 + $0x50] sm:$0xf]
    %v6734 = vld [vmem:[%s6712 + $0x54] sm:$0xf]
    %v6735 = vld [vmem:[%s6712 + $0x58] sm:$0xf]
    %v6736 = vld [vmem:[%s6712 + $0x5c] sm:$0xf]
    %v6737 = vld [vmem:[%s6712 + $0x60] sm:$0xf]
    %v6738 = vld [vmem:[%s6712 + $0x64] sm:$0xf]
    %v6739 = vld [vmem:[%s6712 + $0x68] sm:$0xf]
    %v6740 = vld [vmem:[%s6712 + $0x6c] sm:$0xf]
    %v6745 = vunpack.c.l.b16 %v5667
    %v6746 = vunpack.c.l.b16 %v5668
    %v6747 = vunpack.c.l.b16 %v5681
    %v6748 = vunpack.c.l.b16 %v5682
    %v6749 = vrot.slane %v6747, 7
    %v6750 = vsel %vm1927, %v6749, %v6745
    %v6751 = vrot.slane %v6748, 7
    %v6752 = vsel %vm1927, %v6751, %v6746
    %v6753 = vpack.c.b16 %v6750, %v6750
    %v6754 = vpack.c.b16 %v6752, %v6752
    %v6784 = vunpack.c.l.b16 %v6713
    %v6785 = vunpack.c.l.b16 %v6714
    %v6786 = vunpack.c.l.b16 %v6715
    %v6787 = vunpack.c.l.b16 %v6716
    %v6788 = vunpack.c.l.b16 %v6717
    %v6789 = vunpack.c.l.b16 %v6718
    %v6790 = vunpack.c.l.b16 %v6719
    %v6791 = vunpack.c.l.b16 %v6720
    %v6792 = vunpack.c.l.b16 %v6721
    %v6793 = vunpack.c.l.b16 %v6722
    %v6794 = vunpack.c.l.b16 %v6723
    %v6795 = vunpack.c.l.b16 %v6724
    %v6796 = vunpack.c.l.b16 %v6725
    %v6797 = vunpack.c.l.b16 %v6726
    %v6798 = vunpack.c.l.b16 %v6727
    %v6799 = vunpack.c.l.b16 %v6728
    %v6800 = vunpack.c.l.b16 %v6729
    %v6801 = vunpack.c.l.b16 %v6730
    %v6802 = vunpack.c.l.b16 %v6731
    %v6803 = vunpack.c.l.b16 %v6732
    %v6804 = vunpack.c.l.b16 %v6733
    %v6805 = vunpack.c.l.b16 %v6734
    %v6806 = vunpack.c.l.b16 %v6735
    %v6807 = vunpack.c.l.b16 %v6736
    %v6808 = vunpack.c.l.b16 %v6737
    %v6809 = vunpack.c.l.b16 %v6738
    %v6810 = vunpack.c.l.b16 %v6739
    %v6811 = vunpack.c.l.b16 %v6740
    %v6812 = vpack.c.b16 %v6785, %v6784
    %v6813 = vpack.c.b16 %v6787, %v6786
    %v6814 = vpack.c.b16 %v6789, %v6788
    %v6815 = vpack.c.b16 %v6791, %v6790
    %v6816 = vpack.c.b16 %v6793, %v6792
    %v6817 = vpack.c.b16 %v6795, %v6794
    %v6818 = vpack.c.b16 %v6797, %v6796
    %v6819 = vpack.c.b16 %v6799, %v6798
    %v6820 = vpack.c.b16 %v6801, %v6800
    %v6821 = vpack.c.b16 %v6803, %v6802
    %v6822 = vpack.c.b16 %v6805, %v6804
    %v6823 = vpack.c.b16 %v6807, %v6806
    %v6824 = vpack.c.b16 %v6809, %v6808
    %v6825 = vpack.c.b16 %v6811, %v6810
    %v6841 = vsel %vm234, %v6754, 0
    %6843 = vmatprep.subr.bf16.mxu0 0
    %6844 = vmatpush1.bf16.msra.mxu0 %v6812
    %6845 = vmatprep.subr.bf16.mxu0 0
    %6846 = vmatpush1.bf16.msra.mxu0 %v6813
    %6847 = vmatprep.subr.bf16.mxu0 0
    %6848 = vmatpush1.bf16.msra.mxu0 %v6814
    %6849 = vmatprep.subr.bf16.mxu0 0
    %6850 = vmatpush1.bf16.msra.mxu0 %v6815
    %6851 = vmatprep.subr.bf16.mxu0 0
    %6852 = vmatpush1.bf16.msra.mxu0 %v6816
    %6853 = vmatprep.subr.bf16.mxu0 0
    %6854 = vmatpush1.bf16.msra.mxu0 %v6817
    %6855 = vmatprep.subr.bf16.mxu0 0
    %6856 = vmatpush1.bf16.msra.mxu0 %v6818
    %6857 = vmatprep.subr.bf16.mxu0 0
    %6858 = vmatpush1.bf16.msra.mxu0 %v6819
    %6859 = vmatprep.subr.bf16.mxu0 0
    %6860 = vmatpush1.bf16.msra.mxu0 %v6820
    %6861 = vmatprep.subr.bf16.mxu0 0
    %6862 = vmatpush1.bf16.msra.mxu0 %v6821
    %6863 = vmatprep.subr.bf16.mxu0 0
    %6864 = vmatpush1.bf16.msra.mxu0 %v6822
    %6865 = vmatprep.subr.bf16.mxu0 0
    %6866 = vmatpush1.bf16.msra.mxu0 %v6823
    %6867 = vmatprep.subr.bf16.mxu0 0
    %6868 = vmatpush1.bf16.msra.mxu0 %v6824
    %6869 = vmatprep.subr.bf16.mxu0 0
    %6870 = vmatpush1.bf16.msra.mxu0 %v6825
    %6871 = vmatprep.subr.bf16.mxu0 0
    %6872 = vmatpush1.bf16.msra.mxu0 0
    %6873 = vmatprep.subr.bf16.mxu0 0
    %6874 = vmatpush1.bf16.msra.mxu0 0
    %6875 = vmatprep.mubr.bf16.mxu0 %v6841
    %6876 = vmatmul.mubr.bf16.gmra.mrb[0].mxu0 %v6753
    %v6877 = vpop.f32.mrb[0].mxu0
    %v6878 = vadd.f32 0.0, %v6877
    %v6879 = vpop.f32.mrb[0].mxu0
    %v6880 = vpop.f32.mrb[0].mxu0
    %v6881 = vpop.f32.mrb[0].mxu0
    %6882 = vdwg.mxu0
    %v6883 = vadd.f32 %v6711, %v6878
    %v6884 = vld [vmem:[#allocation11] sm:$0x1]
    %v6886 = vlaneseq
    %v6887 = vshrl.u32 %v6886, 7
    %v6888 = vsub.s32 0, %v6887
    %v6889 = vrot.slane %v6884, %v6888
    %v6891 = vadd.f32 %v6883, %v6889
    %v6894 = vunpack.c.l.s4 1966171168
    %v6895 = vunpack.c.0.s8 %v6894
    %v6896 = vlaneseq
    %v6897 = vshrl.u32 %v6896, 7
    %v6898 = vsub.s32 %v6895, %v6897
    %v6899 = vrot.slane %v6891, %v6898
    %v6900 = vcombine.high %v6899, %v6899
    %v6902 = vunpack.c.l.s4 1966171168
    %v6903 = vunpack.c.0.s8 %v6902
    %v6904 = vlaneseq
    %v6905 = vshrl.u32 %v6904, 7
    %v6906 = vsub.s32 %v6903, %v6905
    %v6907 = vrot.slane %v6899, %v6906
    %v6909 = vunpack.c.l.s4 1966171168
    %v6910 = vunpack.c.0.s8 %v6909
    %v6911 = vlaneseq
    %v6912 = vshrl.u32 %v6911, 7
    %v6913 = vsub.s32 %v6910, %v6912
    %v6914 = vrot.slane %v6900, %v6913
    %6917 = vst [vmem:[#allocation13] sm:$0x1] %v6907
    %6918 = vst [vmem:[#allocation13 + $0x1] sm:$0x1] %v6914
    // Predicated region
    $region54: #{mnist_forward.1} parent=1 // pred_check
      _
    $region55: #{mnist_forward.1} parent=1 // pred_check_branch
      %6920 = sbr.rel (0) target = $region57
    $region56: #{mnist_forward.1} parent=1 // pred_region
      %s6922 = ssub.s32 32, 32
      %6923 = vsyncadd [#allocation4], %s6922
      %s6924 = sshll.u32 [#allocation13], 4
      %s6925 = int_to_ptr.vmem [resolvable:$true] %s6924
      %6930 = dma.vmem_to_hbm [thread:$0]  %s6925, 32, %s7, [#allocation4], 16, 16, 1
    $region57: #{mnist_forward.1} parent=1 // pred_fallthru
      _
    // Predicated region
    $region58: #{mnist_forward.1} parent=1 // pred_check
      _
    $region59: #{mnist_forward.1} parent=1 // pred_check_branch
      %6932 = sbr.rel (0) target = $region61
    $region60: #{mnist_forward.1} parent=1 // pred_region
      %6933 = dma.done [#allocation4], 32
    $region61: #{mnist_forward.1} parent=1 // pred_fallthru
      _
    %6934 = vsyncpa [#allocation3], 1
    %6935 = vsyncpa [#allocation6], 1
    %6936 = vsyncpa [#allocation9], 1
    %6937 = vsyncpa [#allocation12], 1
    %6938 = vsyncpa [#allocation4], 1

</llo_original>
